<compile_context>
chip_gen: v7x
topology: tpu7x:2x2x1
jax: 0.10.0
libtpu: 0.0.40
codegen_flags: <defaults>
</compile_context>

<pallas_src>
import jax
import jax.numpy as jnp
from jax.experimental import pallas as pl
from jax.experimental.pallas import tpu as pltpu

CLAMP_MIN = -0.2514298553466797
CLAMP_MAX = 0.5333021664619446

IN_FEATURES = 3072
OUT_FEATURES = 768


def _linear_clamp_kernel(x_ref, w_ref, b_ref, o_ref):
    # Single full-K matmul for this N tile; bias + clamp fused before the
    # single (lane-dense, 384-wide) store of this output tile.
    y = jnp.dot(x_ref[...], w_ref[...], preferred_element_type=jnp.float32)
    y = y + b_ref[...]                             # bias broadcast over rows
    y = jnp.minimum(jnp.maximum(y, CLAMP_MIN), CLAMP_MAX)
    o_ref[...] = y.astype(o_ref.dtype)


def _n_axis_semantics():
    """Explicit 2-TensorCore sharding of the N axis on v7x; 'parallel' elsewhere."""
    core_parallel = getattr(pltpu, "CORE_PARALLEL", None)
    try:
        kind = jax.devices()[0].device_kind.lower()
    except Exception:  # pragma: no cover - detection failure falls back safely
        kind = ""
    is_v7 = ("v7" in kind) or ("7x" in kind)
    if core_parallel is not None and is_v7:
        return (core_parallel,)
    return ("parallel",)


def linear_clamp(x_flat, w_t, bias, *, tn=384):
    """x_flat: (M, K); w_t: (K, N) (PyTorch weight transposed); bias: (N,)."""
    M, K = x_flat.shape
    K2, N = w_t.shape
    assert K == K2, "weight / activation K mismatch"
    assert N % tn == 0, "N must be divisible by the N tile"
    b2d = bias.reshape(1, N).astype(jnp.float32)

    grid = (N // tn,)  # 2 steps: W double-buffers; even 1-tile-per-TC split on v7x

    w_bytes = jnp.dtype(w_t.dtype).itemsize
    cost = pl.CostEstimate(
        flops=2 * M * K * N,
        transcendentals=0,
        bytes_accessed=K * N * w_bytes + M * K * 4 + M * N * 4 + N * 4,
    )

    return pl.pallas_call(
        _linear_clamp_kernel,
        out_shape=jax.ShapeDtypeStruct((M, N), jnp.float32),
        grid=grid,
        in_specs=[
            pl.BlockSpec((M, K), lambda j: (0, 0)),    # full activation block (resident)
            pl.BlockSpec((K, tn), lambda j: (0, j)),   # full-K weight slab per N tile
            pl.BlockSpec((1, tn), lambda j: (0, j)),   # bias tile
        ],
        out_specs=pl.BlockSpec((M, tn), lambda j: (0, j)),
        compiler_params=pltpu.CompilerParams(
            dimension_semantics=_n_axis_semantics(),
        ),
        cost_estimate=cost,
    )(x_flat, w_t, b2d)


def model_forward(x, w_t, bias, *, use_bf16_weights=False):
    # torch.flatten(x, 1): contiguous reshape, free in the XLA wrapper.
    x_flat = x.reshape(x.shape[0], -1)
    if use_bf16_weights:
        # Halves the dominant W HBM stream (~2x wall clock on all generations)
        # at the cost of bf16 weight precision; off by default to keep the
        # module's f32 numerics and the 1e-5 check.
        w_t = w_t.astype(jnp.bfloat16)
    return linear_clamp(x_flat, w_t, bias)


if __name__ == "__main__":
    key = jax.random.PRNGKey(0)
    kx, kw, kb = jax.random.split(key, 3)

    # Deterministic synthetic parameters (PyTorch Linear: weight (768, 3072),
    # bias (768,)), stored as W^T (3072, 768) for the (M,K)x(K,N) kernel layout.
    scale = 1.0 / jnp.sqrt(jnp.float32(IN_FEATURES))
    w_t = jax.random.uniform(
        kw, (IN_FEATURES, OUT_FEATURES), jnp.float32, minval=-scale, maxval=scale
    )
    bias = jax.random.uniform(
        kb, (OUT_FEATURES,), jnp.float32, minval=-scale, maxval=scale
    )

    # Input consistent with flatten(x, 1) -> 3072 features: (B, 3, 32, 32).
    x = jax.random.normal(kx, (8, 3, 32, 32), jnp.float32)

    out = model_forward(x, w_t, bias)
    out = jax.block_until_ready(out)

    # Reference check in plain JAX (matches the PyTorch forward semantics).
    ref = jnp.clip(x.reshape(x.shape[0], -1) @ w_t + bias, CLAMP_MIN, CLAMP_MAX)
    assert out.shape == (8, OUT_FEATURES)
    assert jnp.allclose(out, ref, atol=1e-5, rtol=1e-5)

    print("KERNEL_OK")
</pallas_src>

<mosaic_0001>
module attributes {stable_mosaic.version = 11 : i64} {
  func.func @_linear_clamp_kernel(%arg0: i32, %arg1: memref<8x3072xf32, #tpu.memory_space<vmem>>, %arg2: memref<3072x384xf32, #tpu.memory_space<vmem>>, %arg3: memref<1x384xf32, #tpu.memory_space<vmem>>, %arg4: memref<8x384xf32, #tpu.memory_space<vmem>>) attributes {dimension_semantics = [#tpu.dimension_semantics<parallel>], iteration_bounds = array<i64: 2>, scalar_prefetch = 0 : i64, scratch_operands = 0 : i64, tpu.core_type = #tpu.core_type<tc>, window_params = [{pipeline_mode = #tpu.pipeline_mode<synchronous>, transform_indices = @transform_0, window_bounds = array<i64: 8, 3072>}, {transform_indices = @transform_1, window_bounds = array<i64: 3072, 384>}, {transform_indices = @transform_2, window_bounds = array<i64: 1, 384>}, {transform_indices = @transform_3, window_bounds = array<i64: 8, 384>}]} {
    %c0 = arith.constant 0 : index
    %c0_0 = arith.constant 0 : index
    %0 = vector.load %arg1[%c0, %c0_0] : memref<8x3072xf32, #tpu.memory_space<vmem>>, vector<8x3072xf32>
    %c0_1 = arith.constant 0 : index
    %c0_2 = arith.constant 0 : index
    %1 = vector.load %arg2[%c0_1, %c0_2] : memref<3072x384xf32, #tpu.memory_space<vmem>>, vector<3072x384xf32>
    %cst = arith.constant dense<0.000000e+00> : vector<8x384xf32>
    %2 = tpu.matmul %0, %1, %cst {dimension_numbers = #tpu.dot_dimension_numbers<[1], [0], [0], [1], [0, 0, 1, 1], [], []>} : vector<8x3072xf32>, vector<3072x384xf32>, vector<8x384xf32> -> vector<8x384xf32>
    %c0_3 = arith.constant 0 : index
    %c0_4 = arith.constant 0 : index
    %3 = vector.load %arg3[%c0_3, %c0_4] : memref<1x384xf32, #tpu.memory_space<vmem>>, vector<1x384xf32>
    %4 = vector.broadcast %3 : vector<1x384xf32> to vector<8x384xf32>
    %5 = arith.addf %2, %4 : vector<8x384xf32>
    %cst_5 = arith.constant -0.251429856 : f32
    %6 = vector.broadcast %cst_5 : f32 to vector<8x384xf32>
    %7 = arith.maximumf %5, %6 : vector<8x384xf32>
    %cst_6 = arith.constant 0.533302188 : f32
    %8 = vector.broadcast %cst_6 : f32 to vector<8x384xf32>
    %9 = arith.minimumf %7, %8 : vector<8x384xf32>
    %c0_7 = arith.constant 0 : index
    %c0_8 = arith.constant 0 : index
    %10 = vector.load %arg4[%c0_7, %c0_8] : memref<8x384xf32, #tpu.memory_space<vmem>>, vector<8x384xf32>
    tpu.vector_store %arg4[%c0_7, %c0_8], %9 {strides = array<i32>} : memref<8x384xf32, #tpu.memory_space<vmem>>, vector<8x384xf32>,
    return
  }
  func.func @transform_0(%arg0: i32) -> (i32, i32) {
    %c0_i32 = arith.constant 0 : i32
    %c0_i32_0 = arith.constant 0 : i32
    %c0_i32_1 = arith.constant 0 : i32
    return %c0_i32, %c0_i32_0 : i32, i32
  }
  func.func @transform_1(%arg0: i32) -> (i32, i32) {
    %c0_i32 = arith.constant 0 : i32
    %c0_i32_0 = arith.constant 0 : i32
    return %c0_i32, %arg0 : i32, i32
  }
  func.func @transform_2(%arg0: i32) -> (i32, i32) {
    %c0_i32 = arith.constant 0 : i32
    %c0_i32_0 = arith.constant 0 : i32
    return %c0_i32, %arg0 : i32, i32
  }
  func.func @transform_3(%arg0: i32) -> (i32, i32) {
    %c0_i32 = arith.constant 0 : i32
    %c0_i32_0 = arith.constant 0 : i32
    return %c0_i32, %arg0 : i32, i32
  }
}

</mosaic_0001>

<llo_original>
// kernel: tpu_custom_call.1
$region0: #{tpu_custom_call.1}
  #allocation0 [shape = 'u32[]', space=smem, size = 0x4, offset = 0x4, fixed_abs, tag = 'smem constant byte address 0x4 - core index']
  #allocation1 [shape = 'u32[144,128]{1,0:T(1,128)}', space=vmem, size = 0x12000, scoped, tag = 'internal scratch']
  %s0 = inlined_call_operand.hbm [shape: f32[8,3072], index: 0, kind: input, shape index: {}]
  %s1 = inlined_call_operand.hbm [shape: f32[3072,768], index: 1, kind: input, shape index: {}]
  %s2 = inlined_call_operand.hbm [shape: f32[1,768], index: 2, kind: input, shape index: {}]
  %s3 = inlined_call_operand.hbm [shape: f32[8,768], index: 3, kind: output, shape index: {}]
  %s4 = sld [smem:[#allocation0]]
  $region57: #{tpu_custom_call.1} parent=0
    _
  %s6 = ssub.s32 1, %s4
  %s7 = scalar_select 0, %s6, %s4
  $region1: #{tpu_custom_call.1} parent=0
    #allocation2 [shape = 'u8[98304]{0}', space=vmem, size = 0x18000, scoped, tag = 'input window, operand 0, single buffered']
    #allocation3 [shape = 's32[2]{0}', space=sflag, size = 0x8, scoped, tag = 'scoped memory for tpu_custom_call.1']
    #allocation4 [shape = 's32[2]{0}', space=sflag, size = 0x8, scoped, tag = 'scoped memory for tpu_custom_call.1']
    #allocation5 [shape = 'u8[9437184]{0}', space=vmem, size = 0x900000, scoped, tag = 'input window, operand 1']
    #allocation6 [shape = 's32[2]{0}', space=sflag, size = 0x8, scoped, tag = 'scoped memory for tpu_custom_call.1']
    #allocation7 [shape = 'u8[3072]{0}', space=vmem, size = 0xc00, scoped, tag = 'input window, operand 2']
    #allocation8 [shape = 'u8[24576]{0}', space=vmem, size = 0x6000, scoped, tag = 'output window, operand 0']
    %8 = vsyncpa [#allocation3], 0
    %9 = vsyncpa [#allocation6], 0
    %s10 = scalar_lea.sflag [#allocation6], 1
    %11 = vsyncpa %s10, 0
    %12 = vsyncpa [#allocation4], 0
    %s13 = scalar_lea.sflag [#allocation4], 1
    %14 = vsyncpa %s13, 0
    loop: start=0, step=1, limit=4
    $region2: #{tpu_custom_call.1} parent=1 // loop_pre_header
      _
    $region3: #{tpu_custom_call.1} parent=1 // loop_header
      %s16 = sphi 0, %s20
      %p17 = scmp.ge.s32.totalorder %s16, 4
      %s24 = sphi 0, %s24
      %s26 = sphi 0, %s24
      %s27 = sphi 0, %s26
      %s41 = sphi 0, %s27
      %s47 = sphi 0, %s49
      %s50 = sphi 0, %s47
      %s51 = sphi 0, %s50
      %s67 = sphi 0, %s51
      %s73 = sphi 0, %s75
      %s76 = sphi 0, %s73
      %s77 = sphi 0, %s76
      %s93 = sphi 0, %s77
      %s99 = sphi 0, %s101
      %s102 = sphi 0, %s99
      %s103 = sphi 0, %s102
      %s119 = sphi 0, %s103
    $region4: #{tpu_custom_call.1} parent=1 // loop_header_branch
      %19 = sbr.rel (%p17) target = $region8
    $region5: #{tpu_custom_call.1} parent=1 // loop_body
      %s21 = ssub.s32 %s16, 1
      %s22 = ssub.s32 %s16, 2
      %s23 = sadd.s32 %s16, 1
      %s25 = sadd.s32 %s24, 1
      %p28 = scmp.eq.s32.totalorder %s16, 1
      %p29 = scmp.ne.s32.totalorder %s24, %s26
      %p30 = scmp.eq.s32.totalorder %s16, 0
      %p31 = por %p29, %p30
      %p32 = scmp.ne.s32.totalorder %s24, %s26
      %p33 = scmp.eq.s32.totalorder %s21, 1
      %p34 = por %p32, %p33
      %p35 = scmp.ne.s32.totalorder %s26, %s27
      %p36 = scmp.eq.s32.totalorder %s21, 0
      %p37 = por %p35, %p36
      %p38 = scmp.ne.s32.totalorder %s26, %s27
      %p39 = scmp.eq.s32.totalorder %s22, 1
      %p40 = por %p38, %p39
      %p42 = scmp.ne.s32.totalorder %s27, %s41
      %p43 = scmp.eq.s32.totalorder %s22, 0
      %p44 = por %p42, %p43
      %s45 = ssub.s32 %s16, %s23
      %p46 = scmp.eq.s32.totalorder %s45, 0
      %s48 = sadd.s32 %s47, 1
      %s49 = scalar_select %p46, %s47, %s48
      %p52 = pneg %p46
      %p53 = scmp.eq.s32.totalorder %s16, 1
      %p54 = por %p52, %p53
      %p55 = scmp.ne.s32.totalorder %s47, %s50
      %p56 = scmp.eq.s32.totalorder %s16, 0
      %p57 = por %p55, %p56
      %p58 = scmp.ne.s32.totalorder %s47, %s50
      %p59 = scmp.eq.s32.totalorder %s21, 1
      %p60 = por %p58, %p59
      %p61 = scmp.ne.s32.totalorder %s50, %s51
      %p62 = scmp.eq.s32.totalorder %s21, 0
      %p63 = por %p61, %p62
      %p64 = scmp.ne.s32.totalorder %s50, %s51
      %p65 = scmp.eq.s32.totalorder %s22, 1
      %p66 = por %p64, %p65
      %p68 = scmp.ne.s32.totalorder %s51, %s67
      %p69 = scmp.eq.s32.totalorder %s22, 0
      %p70 = por %p68, %p69
      %s71 = ssub.s32 %s16, %s23
      %p72 = scmp.eq.s32.totalorder %s71, 0
      %s74 = sadd.s32 %s73, 1
      %s75 = scalar_select %p72, %s73, %s74
      %p78 = pneg %p72
      %p79 = scmp.eq.s32.totalorder %s16, 1
      %p80 = por %p78, %p79
      %p81 = scmp.ne.s32.totalorder %s73, %s76
      %p82 = scmp.eq.s32.totalorder %s16, 0
      %p83 = por %p81, %p82
      %p84 = scmp.ne.s32.totalorder %s73, %s76
      %p85 = scmp.eq.s32.totalorder %s21, 1
      %p86 = por %p84, %p85
      %p87 = scmp.ne.s32.totalorder %s76, %s77
      %p88 = scmp.eq.s32.totalorder %s21, 0
      %p89 = por %p87, %p88
      %p90 = scmp.ne.s32.totalorder %s76, %s77
      %p91 = scmp.eq.s32.totalorder %s22, 1
      %p92 = por %p90, %p91
      %p94 = scmp.ne.s32.totalorder %s77, %s93
      %p95 = scmp.eq.s32.totalorder %s22, 0
      %p96 = por %p94, %p95
      %s97 = ssub.s32 %s16, %s23
      %p98 = scmp.eq.s32.totalorder %s97, 0
      %s100 = sadd.s32 %s99, 1
      %s101 = scalar_select %p98, %s99, %s100
      %p104 = pneg %p98
      %p105 = scmp.eq.s32.totalorder %s16, 1
      %p106 = por %p104, %p105
      %p107 = scmp.ne.s32.totalorder %s99, %s102
      %p108 = scmp.eq.s32.totalorder %s16, 0
      %p109 = por %p107, %p108
      %p110 = scmp.ne.s32.totalorder %s99, %s102
      %p111 = scmp.eq.s32.totalorder %s21, 1
      %p112 = por %p110, %p111
      %p113 = scmp.ne.s32.totalorder %s102, %s103
      %p114 = scmp.eq.s32.totalorder %s21, 0
      %p115 = por %p113, %p114
      %p116 = scmp.ne.s32.totalorder %s102, %s103
      %p117 = scmp.eq.s32.totalorder %s22, 1
      %p118 = por %p116, %p117
      %p120 = scmp.ne.s32.totalorder %s103, %s119
      %p121 = scmp.eq.s32.totalorder %s22, 0
      %p122 = por %p120, %p121
      %p123 = scmp.le.s32.totalorder 1, %s16
      %p124 = scmp.lt.s32.totalorder %s16, 3
      %p125 = pnand %p123, %p124
      %p126 = pneg %p125
      // Predicated region
      $region9: #{tpu_custom_call.1} parent=5 // pred_check
        _
      $region10: #{tpu_custom_call.1} parent=5 // pred_check_branch
        %128 = sbr.rel (%p125) target = $region12
      $region11: #{tpu_custom_call.1} parent=5 // pred_region
        %s129 = ssub.s32 %s16, 1
        // Predicated region
        $region13: #{tpu_custom_call.1} parent=11 // pred_check
          %p130 = pneg %p37
        $region14: #{tpu_custom_call.1} parent=11 // pred_check_branch
          %132 = sbr.rel (%p130) target = $region16
        $region15: #{tpu_custom_call.1} parent=11 // pred_region
          %s134 = ssub.s32 3072, 3072
          %135 = vsyncadd [#allocation3], %s134
          %s137 = sshll.u32 [#allocation2], 4
          %s138 = int_to_ptr.vmem [resolvable:$true] %s137
          %140 = dma.hbm_to_vmem [thread:$0]  %s0, 3072, %s138, [#allocation3]
        $region16: #{tpu_custom_call.1} parent=11 // pred_fallthru
          _
      $region12: #{tpu_custom_call.1} parent=5 // pred_fallthru
        _
      %p141 = scmp.lt.s32.totalorder %s16, 2
      // Predicated region
      $region17: #{tpu_custom_call.1} parent=5 // pred_check
        %p142 = pneg %p141
      $region18: #{tpu_custom_call.1} parent=5 // pred_check_branch
        %144 = sbr.rel (%p142) target = $region20
      $region19: #{tpu_custom_call.1} parent=5 // pred_region
        // Predicated region
        $region21: #{tpu_custom_call.1} parent=19 // pred_check
          %p145 = pneg %p57
        $region22: #{tpu_custom_call.1} parent=19 // pred_check_branch
          %147 = sbr.rel (%p145) target = $region24
        $region23: #{tpu_custom_call.1} parent=19 // pred_region
          %s148 = sand.u32 %s16, 1
          %s149 = scalar_lea.sflag [#allocation6], %s148
          %s150 = sand.u32 %s47, 1
          %s151 = smul.addr %s150, 9216
          %s152 = scalar_lea.vmem [#allocation5], %s151
          %s153 = smul.u32 3, %s16
          %s155 = ssub.s32 147456, 147456
          %156 = vsyncadd %s149, %s155
          %s157 = smul.addr %s153, 128
          %s158 = scalar_lea.hbm %s1, %s157
          %s159 = sshll.u32 %s152, 4
          %s160 = int_to_ptr.vmem [resolvable:$true] %s159
          %165 = dma.hbm_to_vmem [thread:$0]  %s158, 147456, %s160, %s149, 768, 384, 24
        $region24: #{tpu_custom_call.1} parent=19 // pred_fallthru
          _
        // Predicated region
        $region25: #{tpu_custom_call.1} parent=19 // pred_check
          %p166 = pneg %p83
        $region26: #{tpu_custom_call.1} parent=19 // pred_check_branch
          %168 = sbr.rel (%p166) target = $region28
        $region27: #{tpu_custom_call.1} parent=19 // pred_region
          %s169 = sand.u32 %s16, 1
          %s170 = scalar_lea.sflag [#allocation6], %s169
          %s171 = sand.u32 %s73, 1
          %s172 = smul.addr %s171, 3
          %s173 = scalar_lea.vmem [#allocation7], %s172
          %s174 = smul.u32 3, %s16
          %s176 = ssub.s32 48, 48
          %177 = vsyncadd %s170, %s176
          %s178 = smul.addr %s174, 16
          %s179 = scalar_lea.hbm %s2, %s178
          %s181 = sshll.u32 %s173, 4
          %s182 = int_to_ptr.vmem [resolvable:$true] %s181
          %184 = dma.hbm_to_vmem [thread:$0]  %s179, 48, %s182, %s170
        $region28: #{tpu_custom_call.1} parent=19 // pred_fallthru
          _
      $region20: #{tpu_custom_call.1} parent=5 // pred_fallthru
        _
      %p185 = scmp.le.s32.totalorder 1, %s16
      %p186 = scmp.lt.s32.totalorder %s16, 3
      %p187 = pnand %p185, %p186
      %p188 = pneg %p187
      // Predicated region
      $region29: #{tpu_custom_call.1} parent=5 // pred_check
        _
      $region30: #{tpu_custom_call.1} parent=5 // pred_check_branch
        %190 = sbr.rel (%p187) target = $region32
      $region31: #{tpu_custom_call.1} parent=5 // pred_region
        %s191 = ssub.s32 %s16, 1
        // Predicated region
        $region33: #{tpu_custom_call.1} parent=31 // pred_check
          %p192 = pneg %p37
        $region34: #{tpu_custom_call.1} parent=31 // pred_check_branch
          %194 = sbr.rel (%p192) target = $region36
        $region35: #{tpu_custom_call.1} parent=31 // pred_region
          %195 = dma.done [#allocation3], 3072
        $region36: #{tpu_custom_call.1} parent=31 // pred_fallthru
          _
        %s196 = sand.u32 %s21, 1
        %s197 = scalar_lea.sflag [#allocation6], %s196
        %s198 = sand.u32 %s50, 1
        %s199 = smul.addr %s198, 9216
        %s200 = scalar_lea.vmem [#allocation5], %s199
        // Predicated region
        $region37: #{tpu_custom_call.1} parent=31 // pred_check
          %p201 = pneg %p63
        $region38: #{tpu_custom_call.1} parent=31 // pred_check_branch
          %203 = sbr.rel (%p201) target = $region40
        $region39: #{tpu_custom_call.1} parent=31 // pred_region
          %204 = dma.done %s197, 147456
        $region40: #{tpu_custom_call.1} parent=31 // pred_fallthru
          _
        %s205 = sand.u32 %s21, 1
        %s206 = scalar_lea.sflag [#allocation6], %s205
        %s207 = sand.u32 %s76, 1
        %s208 = smul.addr %s207, 3
        %s209 = scalar_lea.vmem [#allocation7], %s208
        // Predicated region
        $region41: #{tpu_custom_call.1} parent=31 // pred_check
          %p210 = pneg %p89
        $region42: #{tpu_custom_call.1} parent=31 // pred_check_branch
          %212 = sbr.rel (%p210) target = $region44
        $region43: #{tpu_custom_call.1} parent=31 // pred_region
          %213 = dma.done %s206, 48
        $region44: #{tpu_custom_call.1} parent=31 // pred_fallthru
          _
        %p214 = pneg %p37
        %p215 = pneg %p34
        %s216 = sand.u32 %s21, 1
        %s217 = scalar_lea.sflag [#allocation6], %s216
        %s218 = sand.u32 %s50, 1
        %s219 = smul.addr %s218, 9216
        %s220 = scalar_lea.vmem [#allocation5], %s219
        %p221 = pneg %p63
        %p222 = pneg %p60
        %s223 = sand.u32 %s21, 1
        %s224 = scalar_lea.sflag [#allocation6], %s223
        %s225 = sand.u32 %s76, 1
        %s226 = smul.addr %s225, 3
        %s227 = scalar_lea.vmem [#allocation7], %s226
        %p228 = pneg %p89
        %p229 = pneg %p86
        %p230 = pneg %p115
        %p231 = pneg %p112
        %s232 = sand.u32 %s102, 1
        %s233 = scalar_lea.sflag [#allocation4], %s232
        %s234 = sand.u32 %s102, 1
        %s235 = smul.addr %s234, 24
        %s236 = scalar_lea.vmem [#allocation8], %s235
        %s237 = smul.u32 3, %s21
        %s238 = smul.u32 3, %s21
        %s239 = smul.u32 3, %s21
        %v240 = vld [vmem:[#allocation2] sm:$0xff]
        %v241 = vld [vmem:[#allocation2 + $0x8] sm:$0xff]
        %v242 = vld [vmem:[#allocation2 + $0x10] sm:$0xff]
        %v243 = vld [vmem:[#allocation2 + $0x18] sm:$0xff]
        %v244 = vld [vmem:[#allocation2 + $0x20] sm:$0xff]
        %v245 = vld [vmem:[#allocation2 + $0x28] sm:$0xff]
        %v246 = vld [vmem:[#allocation2 + $0x30] sm:$0xff]
        %v247 = vld [vmem:[#allocation2 + $0x38] sm:$0xff]
        %v248 = vld [vmem:[#allocation2 + $0x40] sm:$0xff]
        %v249 = vld [vmem:[#allocation2 + $0x48] sm:$0xff]
        %v250 = vld [vmem:[#allocation2 + $0x50] sm:$0xff]
        %v251 = vld [vmem:[#allocation2 + $0x58] sm:$0xff]
        %v252 = vld [vmem:[#allocation2 + $0x60] sm:$0xff]
        %v253 = vld [vmem:[#allocation2 + $0x68] sm:$0xff]
        %v254 = vld [vmem:[#allocation2 + $0x70] sm:$0xff]
        %v255 = vld [vmem:[#allocation2 + $0x78] sm:$0xff]
        %v256 = vld [vmem:[#allocation2 + $0x80] sm:$0xff]
        %v257 = vld [vmem:[#allocation2 + $0x88] sm:$0xff]
        %v258 = vld [vmem:[#allocation2 + $0x90] sm:$0xff]
        %v259 = vld [vmem:[#allocation2 + $0x98] sm:$0xff]
        %v260 = vld [vmem:[#allocation2 + $0xa0] sm:$0xff]
        %v261 = vld [vmem:[#allocation2 + $0xa8] sm:$0xff]
        %v262 = vld [vmem:[#allocation2 + $0xb0] sm:$0xff]
        %v263 = vld [vmem:[#allocation2 + $0xb8] sm:$0xff]
        %v264 = vld [vmem:[%s200] sm:$0xff]
        %v265 = vld [vmem:[%s200 + $0x8] sm:$0xff]
        %v266 = vld [vmem:[%s200 + $0x10] sm:$0xff]
        %v267 = vld [vmem:[%s200 + $0x18] sm:$0xff]
        %v268 = vld [vmem:[%s200 + $0x20] sm:$0xff]
        %v269 = vld [vmem:[%s200 + $0x28] sm:$0xff]
        %v270 = vld [vmem:[%s200 + $0x30] sm:$0xff]
        %v271 = vld [vmem:[%s200 + $0x38] sm:$0xff]
        %v272 = vld [vmem:[%s200 + $0x40] sm:$0xff]
        %v273 = vld [vmem:[%s200 + $0x48] sm:$0xff]
        %v274 = vld [vmem:[%s200 + $0x50] sm:$0xff]
        %v275 = vld [vmem:[%s200 + $0x58] sm:$0xff]
        %v276 = vld [vmem:[%s200 + $0x60] sm:$0xff]
        %v277 = vld [vmem:[%s200 + $0x68] sm:$0xff]
        %v278 = vld [vmem:[%s200 + $0x70] sm:$0xff]
        %v279 = vld [vmem:[%s200 + $0x78] sm:$0xff]
        %v280 = vld [vmem:[%s200 + $0x80] sm:$0xff]
        %v281 = vld [vmem:[%s200 + $0x88] sm:$0xff]
        %v282 = vld [vmem:[%s200 + $0x90] sm:$0xff]
        %v283 = vld [vmem:[%s200 + $0x98] sm:$0xff]
        %v284 = vld [vmem:[%s200 + $0xa0] sm:$0xff]
        %v285 = vld [vmem:[%s200 + $0xa8] sm:$0xff]
        %v286 = vld [vmem:[%s200 + $0xb0] sm:$0xff]
        %v287 = vld [vmem:[%s200 + $0xb8] sm:$0xff]
        %v288 = vld [vmem:[%s200 + $0xc0] sm:$0xff]
        %v289 = vld [vmem:[%s200 + $0xc8] sm:$0xff]
        %v290 = vld [vmem:[%s200 + $0xd0] sm:$0xff]
        %v291 = vld [vmem:[%s200 + $0xd8] sm:$0xff]
        %v292 = vld [vmem:[%s200 + $0xe0] sm:$0xff]
        %v293 = vld [vmem:[%s200 + $0xe8] sm:$0xff]
        %v294 = vld [vmem:[%s200 + $0xf0] sm:$0xff]
        %v295 = vld [vmem:[%s200 + $0xf8] sm:$0xff]
        %v296 = vld [vmem:[%s200 + $0x100] sm:$0xff]
        %v297 = vld [vmem:[%s200 + $0x108] sm:$0xff]
        %v298 = vld [vmem:[%s200 + $0x110] sm:$0xff]
        %v299 = vld [vmem:[%s200 + $0x118] sm:$0xff]
        %v300 = vld [vmem:[%s200 + $0x120] sm:$0xff]
        %v301 = vld [vmem:[%s200 + $0x128] sm:$0xff]
        %v302 = vld [vmem:[%s200 + $0x130] sm:$0xff]
        %v303 = vld [vmem:[%s200 + $0x138] sm:$0xff]
        %v304 = vld [vmem:[%s200 + $0x140] sm:$0xff]
        %v305 = vld [vmem:[%s200 + $0x148] sm:$0xff]
        %v306 = vld [vmem:[%s200 + $0x150] sm:$0xff]
        %v307 = vld [vmem:[%s200 + $0x158] sm:$0xff]
        %v308 = vld [vmem:[%s200 + $0x160] sm:$0xff]
        %v309 = vld [vmem:[%s200 + $0x168] sm:$0xff]
        %v310 = vld [vmem:[%s200 + $0x170] sm:$0xff]
        %v311 = vld [vmem:[%s200 + $0x178] sm:$0xff]
        %v312 = vld [vmem:[%s200 + $0x180] sm:$0xff]
        %v313 = vld [vmem:[%s200 + $0x188] sm:$0xff]
        %v314 = vld [vmem:[%s200 + $0x190] sm:$0xff]
        %v315 = vld [vmem:[%s200 + $0x198] sm:$0xff]
        %v316 = vld [vmem:[%s200 + $0x1a0] sm:$0xff]
        %v317 = vld [vmem:[%s200 + $0x1a8] sm:$0xff]
        %v318 = vld [vmem:[%s200 + $0x1b0] sm:$0xff]
        %v319 = vld [vmem:[%s200 + $0x1b8] sm:$0xff]
        %v320 = vld [vmem:[%s200 + $0x1c0] sm:$0xff]
        %v321 = vld [vmem:[%s200 + $0x1c8] sm:$0xff]
        %v322 = vld [vmem:[%s200 + $0x1d0] sm:$0xff]
        %v323 = vld [vmem:[%s200 + $0x1d8] sm:$0xff]
        %v324 = vld [vmem:[%s200 + $0x1e0] sm:$0xff]
        %v325 = vld [vmem:[%s200 + $0x1e8] sm:$0xff]
        %v326 = vld [vmem:[%s200 + $0x1f0] sm:$0xff]
        %v327 = vld [vmem:[%s200 + $0x1f8] sm:$0xff]
        %v328 = vld [vmem:[%s200 + $0x200] sm:$0xff]
        %v329 = vld [vmem:[%s200 + $0x208] sm:$0xff]
        %v330 = vld [vmem:[%s200 + $0x210] sm:$0xff]
        %v331 = vld [vmem:[%s200 + $0x218] sm:$0xff]
        %v332 = vld [vmem:[%s200 + $0x220] sm:$0xff]
        %v333 = vld [vmem:[%s200 + $0x228] sm:$0xff]
        %v334 = vld [vmem:[%s200 + $0x230] sm:$0xff]
        %v335 = vld [vmem:[%s200 + $0x238] sm:$0xff]
        %v336 = vld [vmem:[%s200 + $0x240] sm:$0xff]
        %v337 = vld [vmem:[%s200 + $0x248] sm:$0xff]
        %v338 = vld [vmem:[%s200 + $0x250] sm:$0xff]
        %v339 = vld [vmem:[%s200 + $0x258] sm:$0xff]
        %v340 = vld [vmem:[%s200 + $0x260] sm:$0xff]
        %v341 = vld [vmem:[%s200 + $0x268] sm:$0xff]
        %v342 = vld [vmem:[%s200 + $0x270] sm:$0xff]
        %v343 = vld [vmem:[%s200 + $0x278] sm:$0xff]
        %v344 = vld [vmem:[%s200 + $0x280] sm:$0xff]
        %v345 = vld [vmem:[%s200 + $0x288] sm:$0xff]
        %v346 = vld [vmem:[%s200 + $0x290] sm:$0xff]
        %v347 = vld [vmem:[%s200 + $0x298] sm:$0xff]
        %v348 = vld [vmem:[%s200 + $0x2a0] sm:$0xff]
        %v349 = vld [vmem:[%s200 + $0x2a8] sm:$0xff]
        %v350 = vld [vmem:[%s200 + $0x2b0] sm:$0xff]
        %v351 = vld [vmem:[%s200 + $0x2b8] sm:$0xff]
        %v352 = vld [vmem:[%s200 + $0x2c0] sm:$0xff]
        %v353 = vld [vmem:[%s200 + $0x2c8] sm:$0xff]
        %v354 = vld [vmem:[%s200 + $0x2d0] sm:$0xff]
        %v355 = vld [vmem:[%s200 + $0x2d8] sm:$0xff]
        %v356 = vld [vmem:[%s200 + $0x2e0] sm:$0xff]
        %v357 = vld [vmem:[%s200 + $0x2e8] sm:$0xff]
        %v358 = vld [vmem:[%s200 + $0x2f0] sm:$0xff]
        %v359 = vld [vmem:[%s200 + $0x2f8] sm:$0xff]
        %v360 = vld [vmem:[%s200 + $0x300] sm:$0xff]
        %v361 = vld [vmem:[%s200 + $0x308] sm:$0xff]
        %v362 = vld [vmem:[%s200 + $0x310] sm:$0xff]
        %v363 = vld [vmem:[%s200 + $0x318] sm:$0xff]
        %v364 = vld [vmem:[%s200 + $0x320] sm:$0xff]
        %v365 = vld [vmem:[%s200 + $0x328] sm:$0xff]
        %v366 = vld [vmem:[%s200 + $0x330] sm:$0xff]
        %v367 = vld [vmem:[%s200 + $0x338] sm:$0xff]
        %v368 = vld [vmem:[%s200 + $0x340] sm:$0xff]
        %v369 = vld [vmem:[%s200 + $0x348] sm:$0xff]
        %v370 = vld [vmem:[%s200 + $0x350] sm:$0xff]
        %v371 = vld [vmem:[%s200 + $0x358] sm:$0xff]
        %v372 = vld [vmem:[%s200 + $0x360] sm:$0xff]
        %v373 = vld [vmem:[%s200 + $0x368] sm:$0xff]
        %v374 = vld [vmem:[%s200 + $0x370] sm:$0xff]
        %v375 = vld [vmem:[%s200 + $0x378] sm:$0xff]
        %v376 = vld [vmem:[%s200 + $0x380] sm:$0xff]
        %v377 = vld [vmem:[%s200 + $0x388] sm:$0xff]
        %v378 = vld [vmem:[%s200 + $0x390] sm:$0xff]
        %v379 = vld [vmem:[%s200 + $0x398] sm:$0xff]
        %v380 = vld [vmem:[%s200 + $0x3a0] sm:$0xff]
        %v381 = vld [vmem:[%s200 + $0x3a8] sm:$0xff]
        %v382 = vld [vmem:[%s200 + $0x3b0] sm:$0xff]
        %v383 = vld [vmem:[%s200 + $0x3b8] sm:$0xff]
        %v384 = vld [vmem:[%s200 + $0x3c0] sm:$0xff]
        %v385 = vld [vmem:[%s200 + $0x3c8] sm:$0xff]
        %v386 = vld [vmem:[%s200 + $0x3d0] sm:$0xff]
        %v387 = vld [vmem:[%s200 + $0x3d8] sm:$0xff]
        %v388 = vld [vmem:[%s200 + $0x3e0] sm:$0xff]
        %v389 = vld [vmem:[%s200 + $0x3e8] sm:$0xff]
        %v390 = vld [vmem:[%s200 + $0x3f0] sm:$0xff]
        %v391 = vld [vmem:[%s200 + $0x3f8] sm:$0xff]
        %v392 = vld [vmem:[%s200 + $0x400] sm:$0xff]
        %v393 = vld [vmem:[%s200 + $0x408] sm:$0xff]
        %v394 = vld [vmem:[%s200 + $0x410] sm:$0xff]
        %v395 = vld [vmem:[%s200 + $0x418] sm:$0xff]
        %v396 = vld [vmem:[%s200 + $0x420] sm:$0xff]
        %v397 = vld [vmem:[%s200 + $0x428] sm:$0xff]
        %v398 = vld [vmem:[%s200 + $0x430] sm:$0xff]
        %v399 = vld [vmem:[%s200 + $0x438] sm:$0xff]
        %v400 = vld [vmem:[%s200 + $0x440] sm:$0xff]
        %v401 = vld [vmem:[%s200 + $0x448] sm:$0xff]
        %v402 = vld [vmem:[%s200 + $0x450] sm:$0xff]
        %v403 = vld [vmem:[%s200 + $0x458] sm:$0xff]
        %v404 = vld [vmem:[%s200 + $0x460] sm:$0xff]
        %v405 = vld [vmem:[%s200 + $0x468] sm:$0xff]
        %v406 = vld [vmem:[%s200 + $0x470] sm:$0xff]
        %v407 = vld [vmem:[%s200 + $0x478] sm:$0xff]
        %v408 = vld [vmem:[%s200 + $0x480] sm:$0xff]
        %v409 = vld [vmem:[%s200 + $0x488] sm:$0xff]
        %v410 = vld [vmem:[%s200 + $0x490] sm:$0xff]
        %v411 = vld [vmem:[%s200 + $0x498] sm:$0xff]
        %v412 = vld [vmem:[%s200 + $0x4a0] sm:$0xff]
        %v413 = vld [vmem:[%s200 + $0x4a8] sm:$0xff]
        %v414 = vld [vmem:[%s200 + $0x4b0] sm:$0xff]
        %v415 = vld [vmem:[%s200 + $0x4b8] sm:$0xff]
        %v416 = vld [vmem:[%s200 + $0x4c0] sm:$0xff]
        %v417 = vld [vmem:[%s200 + $0x4c8] sm:$0xff]
        %v418 = vld [vmem:[%s200 + $0x4d0] sm:$0xff]
        %v419 = vld [vmem:[%s200 + $0x4d8] sm:$0xff]
        %v420 = vld [vmem:[%s200 + $0x4e0] sm:$0xff]
        %v421 = vld [vmem:[%s200 + $0x4e8] sm:$0xff]
        %v422 = vld [vmem:[%s200 + $0x4f0] sm:$0xff]
        %v423 = vld [vmem:[%s200 + $0x4f8] sm:$0xff]
        %v424 = vld [vmem:[%s200 + $0x500] sm:$0xff]
        %v425 = vld [vmem:[%s200 + $0x508] sm:$0xff]
        %v426 = vld [vmem:[%s200 + $0x510] sm:$0xff]
        %v427 = vld [vmem:[%s200 + $0x518] sm:$0xff]
        %v428 = vld [vmem:[%s200 + $0x520] sm:$0xff]
        %v429 = vld [vmem:[%s200 + $0x528] sm:$0xff]
        %v430 = vld [vmem:[%s200 + $0x530] sm:$0xff]
        %v431 = vld [vmem:[%s200 + $0x538] sm:$0xff]
        %v432 = vld [vmem:[%s200 + $0x540] sm:$0xff]
        %v433 = vld [vmem:[%s200 + $0x548] sm:$0xff]
        %v434 = vld [vmem:[%s200 + $0x550] sm:$0xff]
        %v435 = vld [vmem:[%s200 + $0x558] sm:$0xff]
        %v436 = vld [vmem:[%s200 + $0x560] sm:$0xff]
        %v437 = vld [vmem:[%s200 + $0x568] sm:$0xff]
        %v438 = vld [vmem:[%s200 + $0x570] sm:$0xff]
        %v439 = vld [vmem:[%s200 + $0x578] sm:$0xff]
        %v440 = vld [vmem:[%s200 + $0x580] sm:$0xff]
        %v441 = vld [vmem:[%s200 + $0x588] sm:$0xff]
        %v442 = vld [vmem:[%s200 + $0x590] sm:$0xff]
        %v443 = vld [vmem:[%s200 + $0x598] sm:$0xff]
        %v444 = vld [vmem:[%s200 + $0x5a0] sm:$0xff]
        %v445 = vld [vmem:[%s200 + $0x5a8] sm:$0xff]
        %v446 = vld [vmem:[%s200 + $0x5b0] sm:$0xff]
        %v447 = vld [vmem:[%s200 + $0x5b8] sm:$0xff]
        %v448 = vld [vmem:[%s200 + $0x5c0] sm:$0xff]
        %v449 = vld [vmem:[%s200 + $0x5c8] sm:$0xff]
        %v450 = vld [vmem:[%s200 + $0x5d0] sm:$0xff]
        %v451 = vld [vmem:[%s200 + $0x5d8] sm:$0xff]
        %v452 = vld [vmem:[%s200 + $0x5e0] sm:$0xff]
        %v453 = vld [vmem:[%s200 + $0x5e8] sm:$0xff]
        %v454 = vld [vmem:[%s200 + $0x5f0] sm:$0xff]
        %v455 = vld [vmem:[%s200 + $0x5f8] sm:$0xff]
        %v456 = vld [vmem:[%s200 + $0x600] sm:$0xff]
        %v457 = vld [vmem:[%s200 + $0x608] sm:$0xff]
        %v458 = vld [vmem:[%s200 + $0x610] sm:$0xff]
        %v459 = vld [vmem:[%s200 + $0x618] sm:$0xff]
        %v460 = vld [vmem:[%s200 + $0x620] sm:$0xff]
        %v461 = vld [vmem:[%s200 + $0x628] sm:$0xff]
        %v462 = vld [vmem:[%s200 + $0x630] sm:$0xff]
        %v463 = vld [vmem:[%s200 + $0x638] sm:$0xff]
        %v464 = vld [vmem:[%s200 + $0x640] sm:$0xff]
        %v465 = vld [vmem:[%s200 + $0x648] sm:$0xff]
        %v466 = vld [vmem:[%s200 + $0x650] sm:$0xff]
        %v467 = vld [vmem:[%s200 + $0x658] sm:$0xff]
        %v468 = vld [vmem:[%s200 + $0x660] sm:$0xff]
        %v469 = vld [vmem:[%s200 + $0x668] sm:$0xff]
        %v470 = vld [vmem:[%s200 + $0x670] sm:$0xff]
        %v471 = vld [vmem:[%s200 + $0x678] sm:$0xff]
        %v472 = vld [vmem:[%s200 + $0x680] sm:$0xff]
        %v473 = vld [vmem:[%s200 + $0x688] sm:$0xff]
        %v474 = vld [vmem:[%s200 + $0x690] sm:$0xff]
        %v475 = vld [vmem:[%s200 + $0x698] sm:$0xff]
        %v476 = vld [vmem:[%s200 + $0x6a0] sm:$0xff]
        %v477 = vld [vmem:[%s200 + $0x6a8] sm:$0xff]
        %v478 = vld [vmem:[%s200 + $0x6b0] sm:$0xff]
        %v479 = vld [vmem:[%s200 + $0x6b8] sm:$0xff]
        %v480 = vld [vmem:[%s200 + $0x6c0] sm:$0xff]
        %v481 = vld [vmem:[%s200 + $0x6c8] sm:$0xff]
        %v482 = vld [vmem:[%s200 + $0x6d0] sm:$0xff]
        %v483 = vld [vmem:[%s200 + $0x6d8] sm:$0xff]
        %v484 = vld [vmem:[%s200 + $0x6e0] sm:$0xff]
        %v485 = vld [vmem:[%s200 + $0x6e8] sm:$0xff]
        %v486 = vld [vmem:[%s200 + $0x6f0] sm:$0xff]
        %v487 = vld [vmem:[%s200 + $0x6f8] sm:$0xff]
        %v488 = vld [vmem:[%s200 + $0x700] sm:$0xff]
        %v489 = vld [vmem:[%s200 + $0x708] sm:$0xff]
        %v490 = vld [vmem:[%s200 + $0x710] sm:$0xff]
        %v491 = vld [vmem:[%s200 + $0x718] sm:$0xff]
        %v492 = vld [vmem:[%s200 + $0x720] sm:$0xff]
        %v493 = vld [vmem:[%s200 + $0x728] sm:$0xff]
        %v494 = vld [vmem:[%s200 + $0x730] sm:$0xff]
        %v495 = vld [vmem:[%s200 + $0x738] sm:$0xff]
        %v496 = vld [vmem:[%s200 + $0x740] sm:$0xff]
        %v497 = vld [vmem:[%s200 + $0x748] sm:$0xff]
        %v498 = vld [vmem:[%s200 + $0x750] sm:$0xff]
        %v499 = vld [vmem:[%s200 + $0x758] sm:$0xff]
        %v500 = vld [vmem:[%s200 + $0x760] sm:$0xff]
        %v501 = vld [vmem:[%s200 + $0x768] sm:$0xff]
        %v502 = vld [vmem:[%s200 + $0x770] sm:$0xff]
        %v503 = vld [vmem:[%s200 + $0x778] sm:$0xff]
        %v504 = vld [vmem:[%s200 + $0x780] sm:$0xff]
        %v505 = vld [vmem:[%s200 + $0x788] sm:$0xff]
        %v506 = vld [vmem:[%s200 + $0x790] sm:$0xff]
        %v507 = vld [vmem:[%s200 + $0x798] sm:$0xff]
        %v508 = vld [vmem:[%s200 + $0x7a0] sm:$0xff]
        %v509 = vld [vmem:[%s200 + $0x7a8] sm:$0xff]
        %v510 = vld [vmem:[%s200 + $0x7b0] sm:$0xff]
        %v511 = vld [vmem:[%s200 + $0x7b8] sm:$0xff]
        %v512 = vld [vmem:[%s200 + $0x7c0] sm:$0xff]
        %v513 = vld [vmem:[%s200 + $0x7c8] sm:$0xff]
        %v514 = vld [vmem:[%s200 + $0x7d0] sm:$0xff]
        %v515 = vld [vmem:[%s200 + $0x7d8] sm:$0xff]
        %v516 = vld [vmem:[%s200 + $0x7e0] sm:$0xff]
        %v517 = vld [vmem:[%s200 + $0x7e8] sm:$0xff]
        %v518 = vld [vmem:[%s200 + $0x7f0] sm:$0xff]
        %v519 = vld [vmem:[%s200 + $0x7f8] sm:$0xff]
        %v520 = vld [vmem:[%s200 + $0x800] sm:$0xff]
        %v521 = vld [vmem:[%s200 + $0x808] sm:$0xff]
        %v522 = vld [vmem:[%s200 + $0x810] sm:$0xff]
        %v523 = vld [vmem:[%s200 + $0x818] sm:$0xff]
        %v524 = vld [vmem:[%s200 + $0x820] sm:$0xff]
        %v525 = vld [vmem:[%s200 + $0x828] sm:$0xff]
        %v526 = vld [vmem:[%s200 + $0x830] sm:$0xff]
        %v527 = vld [vmem:[%s200 + $0x838] sm:$0xff]
        %v528 = vld [vmem:[%s200 + $0x840] sm:$0xff]
        %v529 = vld [vmem:[%s200 + $0x848] sm:$0xff]
        %v530 = vld [vmem:[%s200 + $0x850] sm:$0xff]
        %v531 = vld [vmem:[%s200 + $0x858] sm:$0xff]
        %v532 = vld [vmem:[%s200 + $0x860] sm:$0xff]
        %v533 = vld [vmem:[%s200 + $0x868] sm:$0xff]
        %v534 = vld [vmem:[%s200 + $0x870] sm:$0xff]
        %v535 = vld [vmem:[%s200 + $0x878] sm:$0xff]
        %v536 = vld [vmem:[%s200 + $0x880] sm:$0xff]
        %v537 = vld [vmem:[%s200 + $0x888] sm:$0xff]
        %v538 = vld [vmem:[%s200 + $0x890] sm:$0xff]
        %v539 = vld [vmem:[%s200 + $0x898] sm:$0xff]
        %v540 = vld [vmem:[%s200 + $0x8a0] sm:$0xff]
        %v541 = vld [vmem:[%s200 + $0x8a8] sm:$0xff]
        %v542 = vld [vmem:[%s200 + $0x8b0] sm:$0xff]
        %v543 = vld [vmem:[%s200 + $0x8b8] sm:$0xff]
        %v544 = vld [vmem:[%s200 + $0x8c0] sm:$0xff]
        %v545 = vld [vmem:[%s200 + $0x8c8] sm:$0xff]
        %v546 = vld [vmem:[%s200 + $0x8d0] sm:$0xff]
        %v547 = vld [vmem:[%s200 + $0x8d8] sm:$0xff]
        %v548 = vld [vmem:[%s200 + $0x8e0] sm:$0xff]
        %v549 = vld [vmem:[%s200 + $0x8e8] sm:$0xff]
        %v550 = vld [vmem:[%s200 + $0x8f0] sm:$0xff]
        %v551 = vld [vmem:[%s200 + $0x8f8] sm:$0xff]
        %v552 = vld [vmem:[%s200 + $0x900] sm:$0xff]
        %v553 = vld [vmem:[%s200 + $0x908] sm:$0xff]
        %v554 = vld [vmem:[%s200 + $0x910] sm:$0xff]
        %v555 = vld [vmem:[%s200 + $0x918] sm:$0xff]
        %v556 = vld [vmem:[%s200 + $0x920] sm:$0xff]
        %v557 = vld [vmem:[%s200 + $0x928] sm:$0xff]
        %v558 = vld [vmem:[%s200 + $0x930] sm:$0xff]
        %v559 = vld [vmem:[%s200 + $0x938] sm:$0xff]
        %v560 = vld [vmem:[%s200 + $0x940] sm:$0xff]
        %v561 = vld [vmem:[%s200 + $0x948] sm:$0xff]
        %v562 = vld [vmem:[%s200 + $0x950] sm:$0xff]
        %v563 = vld [vmem:[%s200 + $0x958] sm:$0xff]
        %v564 = vld [vmem:[%s200 + $0x960] sm:$0xff]
        %v565 = vld [vmem:[%s200 + $0x968] sm:$0xff]
        %v566 = vld [vmem:[%s200 + $0x970] sm:$0xff]
        %v567 = vld [vmem:[%s200 + $0x978] sm:$0xff]
        %v568 = vld [vmem:[%s200 + $0x980] sm:$0xff]
        %v569 = vld [vmem:[%s200 + $0x988] sm:$0xff]
        %v570 = vld [vmem:[%s200 + $0x990] sm:$0xff]
        %v571 = vld [vmem:[%s200 + $0x998] sm:$0xff]
        %v572 = vld [vmem:[%s200 + $0x9a0] sm:$0xff]
        %v573 = vld [vmem:[%s200 + $0x9a8] sm:$0xff]
        %v574 = vld [vmem:[%s200 + $0x9b0] sm:$0xff]
        %v575 = vld [vmem:[%s200 + $0x9b8] sm:$0xff]
        %v576 = vld [vmem:[%s200 + $0x9c0] sm:$0xff]
        %v577 = vld [vmem:[%s200 + $0x9c8] sm:$0xff]
        %v578 = vld [vmem:[%s200 + $0x9d0] sm:$0xff]
        %v579 = vld [vmem:[%s200 + $0x9d8] sm:$0xff]
        %v580 = vld [vmem:[%s200 + $0x9e0] sm:$0xff]
        %v581 = vld [vmem:[%s200 + $0x9e8] sm:$0xff]
        %v582 = vld [vmem:[%s200 + $0x9f0] sm:$0xff]
        %v583 = vld [vmem:[%s200 + $0x9f8] sm:$0xff]
        %v584 = vld [vmem:[%s200 + $0xa00] sm:$0xff]
        %v585 = vld [vmem:[%s200 + $0xa08] sm:$0xff]
        %v586 = vld [vmem:[%s200 + $0xa10] sm:$0xff]
        %v587 = vld [vmem:[%s200 + $0xa18] sm:$0xff]
        %v588 = vld [vmem:[%s200 + $0xa20] sm:$0xff]
        %v589 = vld [vmem:[%s200 + $0xa28] sm:$0xff]
        %v590 = vld [vmem:[%s200 + $0xa30] sm:$0xff]
        %v591 = vld [vmem:[%s200 + $0xa38] sm:$0xff]
        %v592 = vld [vmem:[%s200 + $0xa40] sm:$0xff]
        %v593 = vld [vmem:[%s200 + $0xa48] sm:$0xff]
        %v594 = vld [vmem:[%s200 + $0xa50] sm:$0xff]
        %v595 = vld [vmem:[%s200 + $0xa58] sm:$0xff]
        %v596 = vld [vmem:[%s200 + $0xa60] sm:$0xff]
        %v597 = vld [vmem:[%s200 + $0xa68] sm:$0xff]
        %v598 = vld [vmem:[%s200 + $0xa70] sm:$0xff]
        %v599 = vld [vmem:[%s200 + $0xa78] sm:$0xff]
        %v600 = vld [vmem:[%s200 + $0xa80] sm:$0xff]
        %v601 = vld [vmem:[%s200 + $0xa88] sm:$0xff]
        %v602 = vld [vmem:[%s200 + $0xa90] sm:$0xff]
        %v603 = vld [vmem:[%s200 + $0xa98] sm:$0xff]
        %v604 = vld [vmem:[%s200 + $0xaa0] sm:$0xff]
        %v605 = vld [vmem:[%s200 + $0xaa8] sm:$0xff]
        %v606 = vld [vmem:[%s200 + $0xab0] sm:$0xff]
        %v607 = vld [vmem:[%s200 + $0xab8] sm:$0xff]
        %v608 = vld [vmem:[%s200 + $0xac0] sm:$0xff]
        %v609 = vld [vmem:[%s200 + $0xac8] sm:$0xff]
        %v610 = vld [vmem:[%s200 + $0xad0] sm:$0xff]
        %v611 = vld [vmem:[%s200 + $0xad8] sm:$0xff]
        %v612 = vld [vmem:[%s200 + $0xae0] sm:$0xff]
        %v613 = vld [vmem:[%s200 + $0xae8] sm:$0xff]
        %v614 = vld [vmem:[%s200 + $0xaf0] sm:$0xff]
        %v615 = vld [vmem:[%s200 + $0xaf8] sm:$0xff]
        %v616 = vld [vmem:[%s200 + $0xb00] sm:$0xff]
        %v617 = vld [vmem:[%s200 + $0xb08] sm:$0xff]
        %v618 = vld [vmem:[%s200 + $0xb10] sm:$0xff]
        %v619 = vld [vmem:[%s200 + $0xb18] sm:$0xff]
        %v620 = vld [vmem:[%s200 + $0xb20] sm:$0xff]
        %v621 = vld [vmem:[%s200 + $0xb28] sm:$0xff]
        %v622 = vld [vmem:[%s200 + $0xb30] sm:$0xff]
        %v623 = vld [vmem:[%s200 + $0xb38] sm:$0xff]
        %v624 = vld [vmem:[%s200 + $0xb40] sm:$0xff]
        %v625 = vld [vmem:[%s200 + $0xb48] sm:$0xff]
        %v626 = vld [vmem:[%s200 + $0xb50] sm:$0xff]
        %v627 = vld [vmem:[%s200 + $0xb58] sm:$0xff]
        %v628 = vld [vmem:[%s200 + $0xb60] sm:$0xff]
        %v629 = vld [vmem:[%s200 + $0xb68] sm:$0xff]
        %v630 = vld [vmem:[%s200 + $0xb70] sm:$0xff]
        %v631 = vld [vmem:[%s200 + $0xb78] sm:$0xff]
        %v632 = vld [vmem:[%s200 + $0xb80] sm:$0xff]
        %v633 = vld [vmem:[%s200 + $0xb88] sm:$0xff]
        %v634 = vld [vmem:[%s200 + $0xb90] sm:$0xff]
        %v635 = vld [vmem:[%s200 + $0xb98] sm:$0xff]
        %v636 = vld [vmem:[%s200 + $0xba0] sm:$0xff]
        %v637 = vld [vmem:[%s200 + $0xba8] sm:$0xff]
        %v638 = vld [vmem:[%s200 + $0xbb0] sm:$0xff]
        %v639 = vld [vmem:[%s200 + $0xbb8] sm:$0xff]
        %v640 = vld [vmem:[%s200 + $0xbc0] sm:$0xff]
        %v641 = vld [vmem:[%s200 + $0xbc8] sm:$0xff]
        %v642 = vld [vmem:[%s200 + $0xbd0] sm:$0xff]
        %v643 = vld [vmem:[%s200 + $0xbd8] sm:$0xff]
        %v644 = vld [vmem:[%s200 + $0xbe0] sm:$0xff]
        %v645 = vld [vmem:[%s200 + $0xbe8] sm:$0xff]
        %v646 = vld [vmem:[%s200 + $0xbf0] sm:$0xff]
        %v647 = vld [vmem:[%s200 + $0xbf8] sm:$0xff]
        %v648 = vld [vmem:[%s200 + $0xc00] sm:$0xff]
        %v649 = vld [vmem:[%s200 + $0xc08] sm:$0xff]
        %v650 = vld [vmem:[%s200 + $0xc10] sm:$0xff]
        %v651 = vld [vmem:[%s200 + $0xc18] sm:$0xff]
        %v652 = vld [vmem:[%s200 + $0xc20] sm:$0xff]
        %v653 = vld [vmem:[%s200 + $0xc28] sm:$0xff]
        %v654 = vld [vmem:[%s200 + $0xc30] sm:$0xff]
        %v655 = vld [vmem:[%s200 + $0xc38] sm:$0xff]
        %v656 = vld [vmem:[%s200 + $0xc40] sm:$0xff]
        %v657 = vld [vmem:[%s200 + $0xc48] sm:$0xff]
        %v658 = vld [vmem:[%s200 + $0xc50] sm:$0xff]
        %v659 = vld [vmem:[%s200 + $0xc58] sm:$0xff]
        %v660 = vld [vmem:[%s200 + $0xc60] sm:$0xff]
        %v661 = vld [vmem:[%s200 + $0xc68] sm:$0xff]
        %v662 = vld [vmem:[%s200 + $0xc70] sm:$0xff]
        %v663 = vld [vmem:[%s200 + $0xc78] sm:$0xff]
        %v664 = vld [vmem:[%s200 + $0xc80] sm:$0xff]
        %v665 = vld [vmem:[%s200 + $0xc88] sm:$0xff]
        %v666 = vld [vmem:[%s200 + $0xc90] sm:$0xff]
        %v667 = vld [vmem:[%s200 + $0xc98] sm:$0xff]
        %v668 = vld [vmem:[%s200 + $0xca0] sm:$0xff]
        %v669 = vld [vmem:[%s200 + $0xca8] sm:$0xff]
        %v670 = vld [vmem:[%s200 + $0xcb0] sm:$0xff]
        %v671 = vld [vmem:[%s200 + $0xcb8] sm:$0xff]
        %v672 = vld [vmem:[%s200 + $0xcc0] sm:$0xff]
        %v673 = vld [vmem:[%s200 + $0xcc8] sm:$0xff]
        %v674 = vld [vmem:[%s200 + $0xcd0] sm:$0xff]
        %v675 = vld [vmem:[%s200 + $0xcd8] sm:$0xff]
        %v676 = vld [vmem:[%s200 + $0xce0] sm:$0xff]
        %v677 = vld [vmem:[%s200 + $0xce8] sm:$0xff]
        %v678 = vld [vmem:[%s200 + $0xcf0] sm:$0xff]
        %v679 = vld [vmem:[%s200 + $0xcf8] sm:$0xff]
        %v680 = vld [vmem:[%s200 + $0xd00] sm:$0xff]
        %v681 = vld [vmem:[%s200 + $0xd08] sm:$0xff]
        %v682 = vld [vmem:[%s200 + $0xd10] sm:$0xff]
        %v683 = vld [vmem:[%s200 + $0xd18] sm:$0xff]
        %v684 = vld [vmem:[%s200 + $0xd20] sm:$0xff]
        %v685 = vld [vmem:[%s200 + $0xd28] sm:$0xff]
        %v686 = vld [vmem:[%s200 + $0xd30] sm:$0xff]
        %v687 = vld [vmem:[%s200 + $0xd38] sm:$0xff]
        %v688 = vld [vmem:[%s200 + $0xd40] sm:$0xff]
        %v689 = vld [vmem:[%s200 + $0xd48] sm:$0xff]
        %v690 = vld [vmem:[%s200 + $0xd50] sm:$0xff]
        %v691 = vld [vmem:[%s200 + $0xd58] sm:$0xff]
        %v692 = vld [vmem:[%s200 + $0xd60] sm:$0xff]
        %v693 = vld [vmem:[%s200 + $0xd68] sm:$0xff]
        %v694 = vld [vmem:[%s200 + $0xd70] sm:$0xff]
        %v695 = vld [vmem:[%s200 + $0xd78] sm:$0xff]
        %v696 = vld [vmem:[%s200 + $0xd80] sm:$0xff]
        %v697 = vld [vmem:[%s200 + $0xd88] sm:$0xff]
        %v698 = vld [vmem:[%s200 + $0xd90] sm:$0xff]
        %v699 = vld [vmem:[%s200 + $0xd98] sm:$0xff]
        %v700 = vld [vmem:[%s200 + $0xda0] sm:$0xff]
        %v701 = vld [vmem:[%s200 + $0xda8] sm:$0xff]
        %v702 = vld [vmem:[%s200 + $0xdb0] sm:$0xff]
        %v703 = vld [vmem:[%s200 + $0xdb8] sm:$0xff]
        %v704 = vld [vmem:[%s200 + $0xdc0] sm:$0xff]
        %v705 = vld [vmem:[%s200 + $0xdc8] sm:$0xff]
        %v706 = vld [vmem:[%s200 + $0xdd0] sm:$0xff]
        %v707 = vld [vmem:[%s200 + $0xdd8] sm:$0xff]
        %v708 = vld [vmem:[%s200 + $0xde0] sm:$0xff]
        %v709 = vld [vmem:[%s200 + $0xde8] sm:$0xff]
        %v710 = vld [vmem:[%s200 + $0xdf0] sm:$0xff]
        %v711 = vld [vmem:[%s200 + $0xdf8] sm:$0xff]
        %v712 = vld [vmem:[%s200 + $0xe00] sm:$0xff]
        %v713 = vld [vmem:[%s200 + $0xe08] sm:$0xff]
        %v714 = vld [vmem:[%s200 + $0xe10] sm:$0xff]
        %v715 = vld [vmem:[%s200 + $0xe18] sm:$0xff]
        %v716 = vld [vmem:[%s200 + $0xe20] sm:$0xff]
        %v717 = vld [vmem:[%s200 + $0xe28] sm:$0xff]
        %v718 = vld [vmem:[%s200 + $0xe30] sm:$0xff]
        %v719 = vld [vmem:[%s200 + $0xe38] sm:$0xff]
        %v720 = vld [vmem:[%s200 + $0xe40] sm:$0xff]
        %v721 = vld [vmem:[%s200 + $0xe48] sm:$0xff]
        %v722 = vld [vmem:[%s200 + $0xe50] sm:$0xff]
        %v723 = vld [vmem:[%s200 + $0xe58] sm:$0xff]
        %v724 = vld [vmem:[%s200 + $0xe60] sm:$0xff]
        %v725 = vld [vmem:[%s200 + $0xe68] sm:$0xff]
        %v726 = vld [vmem:[%s200 + $0xe70] sm:$0xff]
        %v727 = vld [vmem:[%s200 + $0xe78] sm:$0xff]
        %v728 = vld [vmem:[%s200 + $0xe80] sm:$0xff]
        %v729 = vld [vmem:[%s200 + $0xe88] sm:$0xff]
        %v730 = vld [vmem:[%s200 + $0xe90] sm:$0xff]
        %v731 = vld [vmem:[%s200 + $0xe98] sm:$0xff]
        %v732 = vld [vmem:[%s200 + $0xea0] sm:$0xff]
        %v733 = vld [vmem:[%s200 + $0xea8] sm:$0xff]
        %v734 = vld [vmem:[%s200 + $0xeb0] sm:$0xff]
        %v735 = vld [vmem:[%s200 + $0xeb8] sm:$0xff]
        %v736 = vld [vmem:[%s200 + $0xec0] sm:$0xff]
        %v737 = vld [vmem:[%s200 + $0xec8] sm:$0xff]
        %v738 = vld [vmem:[%s200 + $0xed0] sm:$0xff]
        %v739 = vld [vmem:[%s200 + $0xed8] sm:$0xff]
        %v740 = vld [vmem:[%s200 + $0xee0] sm:$0xff]
        %v741 = vld [vmem:[%s200 + $0xee8] sm:$0xff]
        %v742 = vld [vmem:[%s200 + $0xef0] sm:$0xff]
        %v743 = vld [vmem:[%s200 + $0xef8] sm:$0xff]
        %v744 = vld [vmem:[%s200 + $0xf00] sm:$0xff]
        %v745 = vld [vmem:[%s200 + $0xf08] sm:$0xff]
        %v746 = vld [vmem:[%s200 + $0xf10] sm:$0xff]
        %v747 = vld [vmem:[%s200 + $0xf18] sm:$0xff]
        %v748 = vld [vmem:[%s200 + $0xf20] sm:$0xff]
        %v749 = vld [vmem:[%s200 + $0xf28] sm:$0xff]
        %v750 = vld [vmem:[%s200 + $0xf30] sm:$0xff]
        %v751 = vld [vmem:[%s200 + $0xf38] sm:$0xff]
        %v752 = vld [vmem:[%s200 + $0xf40] sm:$0xff]
        %v753 = vld [vmem:[%s200 + $0xf48] sm:$0xff]
        %v754 = vld [vmem:[%s200 + $0xf50] sm:$0xff]
        %v755 = vld [vmem:[%s200 + $0xf58] sm:$0xff]
        %v756 = vld [vmem:[%s200 + $0xf60] sm:$0xff]
        %v757 = vld [vmem:[%s200 + $0xf68] sm:$0xff]
        %v758 = vld [vmem:[%s200 + $0xf70] sm:$0xff]
        %v759 = vld [vmem:[%s200 + $0xf78] sm:$0xff]
        %v760 = vld [vmem:[%s200 + $0xf80] sm:$0xff]
        %v761 = vld [vmem:[%s200 + $0xf88] sm:$0xff]
        %v762 = vld [vmem:[%s200 + $0xf90] sm:$0xff]
        %v763 = vld [vmem:[%s200 + $0xf98] sm:$0xff]
        %v764 = vld [vmem:[%s200 + $0xfa0] sm:$0xff]
        %v765 = vld [vmem:[%s200 + $0xfa8] sm:$0xff]
        %v766 = vld [vmem:[%s200 + $0xfb0] sm:$0xff]
        %v767 = vld [vmem:[%s200 + $0xfb8] sm:$0xff]
        %v768 = vld [vmem:[%s200 + $0xfc0] sm:$0xff]
        %v769 = vld [vmem:[%s200 + $0xfc8] sm:$0xff]
        %v770 = vld [vmem:[%s200 + $0xfd0] sm:$0xff]
        %v771 = vld [vmem:[%s200 + $0xfd8] sm:$0xff]
        %v772 = vld [vmem:[%s200 + $0xfe0] sm:$0xff]
        %v773 = vld [vmem:[%s200 + $0xfe8] sm:$0xff]
        %v774 = vld [vmem:[%s200 + $0xff0] sm:$0xff]
        %v775 = vld [vmem:[%s200 + $0xff8] sm:$0xff]
        %v776 = vld [vmem:[%s200 + $0x1000] sm:$0xff]
        %v777 = vld [vmem:[%s200 + $0x1008] sm:$0xff]
        %v778 = vld [vmem:[%s200 + $0x1010] sm:$0xff]
        %v779 = vld [vmem:[%s200 + $0x1018] sm:$0xff]
        %v780 = vld [vmem:[%s200 + $0x1020] sm:$0xff]
        %v781 = vld [vmem:[%s200 + $0x1028] sm:$0xff]
        %v782 = vld [vmem:[%s200 + $0x1030] sm:$0xff]
        %v783 = vld [vmem:[%s200 + $0x1038] sm:$0xff]
        %v784 = vld [vmem:[%s200 + $0x1040] sm:$0xff]
        %v785 = vld [vmem:[%s200 + $0x1048] sm:$0xff]
        %v786 = vld [vmem:[%s200 + $0x1050] sm:$0xff]
        %v787 = vld [vmem:[%s200 + $0x1058] sm:$0xff]
        %v788 = vld [vmem:[%s200 + $0x1060] sm:$0xff]
        %v789 = vld [vmem:[%s200 + $0x1068] sm:$0xff]
        %v790 = vld [vmem:[%s200 + $0x1070] sm:$0xff]
        %v791 = vld [vmem:[%s200 + $0x1078] sm:$0xff]
        %v792 = vld [vmem:[%s200 + $0x1080] sm:$0xff]
        %v793 = vld [vmem:[%s200 + $0x1088] sm:$0xff]
        %v794 = vld [vmem:[%s200 + $0x1090] sm:$0xff]
        %v795 = vld [vmem:[%s200 + $0x1098] sm:$0xff]
        %v796 = vld [vmem:[%s200 + $0x10a0] sm:$0xff]
        %v797 = vld [vmem:[%s200 + $0x10a8] sm:$0xff]
        %v798 = vld [vmem:[%s200 + $0x10b0] sm:$0xff]
        %v799 = vld [vmem:[%s200 + $0x10b8] sm:$0xff]
        %v800 = vld [vmem:[%s200 + $0x10c0] sm:$0xff]
        %v801 = vld [vmem:[%s200 + $0x10c8] sm:$0xff]
        %v802 = vld [vmem:[%s200 + $0x10d0] sm:$0xff]
        %v803 = vld [vmem:[%s200 + $0x10d8] sm:$0xff]
        %v804 = vld [vmem:[%s200 + $0x10e0] sm:$0xff]
        %v805 = vld [vmem:[%s200 + $0x10e8] sm:$0xff]
        %v806 = vld [vmem:[%s200 + $0x10f0] sm:$0xff]
        %v807 = vld [vmem:[%s200 + $0x10f8] sm:$0xff]
        %v808 = vld [vmem:[%s200 + $0x1100] sm:$0xff]
        %v809 = vld [vmem:[%s200 + $0x1108] sm:$0xff]
        %v810 = vld [vmem:[%s200 + $0x1110] sm:$0xff]
        %v811 = vld [vmem:[%s200 + $0x1118] sm:$0xff]
        %v812 = vld [vmem:[%s200 + $0x1120] sm:$0xff]
        %v813 = vld [vmem:[%s200 + $0x1128] sm:$0xff]
        %v814 = vld [vmem:[%s200 + $0x1130] sm:$0xff]
        %v815 = vld [vmem:[%s200 + $0x1138] sm:$0xff]
        %v816 = vld [vmem:[%s200 + $0x1140] sm:$0xff]
        %v817 = vld [vmem:[%s200 + $0x1148] sm:$0xff]
        %v818 = vld [vmem:[%s200 + $0x1150] sm:$0xff]
        %v819 = vld [vmem:[%s200 + $0x1158] sm:$0xff]
        %v820 = vld [vmem:[%s200 + $0x1160] sm:$0xff]
        %v821 = vld [vmem:[%s200 + $0x1168] sm:$0xff]
        %v822 = vld [vmem:[%s200 + $0x1170] sm:$0xff]
        %v823 = vld [vmem:[%s200 + $0x1178] sm:$0xff]
        %v824 = vld [vmem:[%s200 + $0x1180] sm:$0xff]
        %v825 = vld [vmem:[%s200 + $0x1188] sm:$0xff]
        %v826 = vld [vmem:[%s200 + $0x1190] sm:$0xff]
        %v827 = vld [vmem:[%s200 + $0x1198] sm:$0xff]
        %v828 = vld [vmem:[%s200 + $0x11a0] sm:$0xff]
        %v829 = vld [vmem:[%s200 + $0x11a8] sm:$0xff]
        %v830 = vld [vmem:[%s200 + $0x11b0] sm:$0xff]
        %v831 = vld [vmem:[%s200 + $0x11b8] sm:$0xff]
        %v832 = vld [vmem:[%s200 + $0x11c0] sm:$0xff]
        %v833 = vld [vmem:[%s200 + $0x11c8] sm:$0xff]
        %v834 = vld [vmem:[%s200 + $0x11d0] sm:$0xff]
        %v835 = vld [vmem:[%s200 + $0x11d8] sm:$0xff]
        %v836 = vld [vmem:[%s200 + $0x11e0] sm:$0xff]
        %v837 = vld [vmem:[%s200 + $0x11e8] sm:$0xff]
        %v838 = vld [vmem:[%s200 + $0x11f0] sm:$0xff]
        %v839 = vld [vmem:[%s200 + $0x11f8] sm:$0xff]
        %v840 = vld [vmem:[%s200 + $0x1200] sm:$0xff]
        %v841 = vld [vmem:[%s200 + $0x1208] sm:$0xff]
        %v842 = vld [vmem:[%s200 + $0x1210] sm:$0xff]
        %v843 = vld [vmem:[%s200 + $0x1218] sm:$0xff]
        %v844 = vld [vmem:[%s200 + $0x1220] sm:$0xff]
        %v845 = vld [vmem:[%s200 + $0x1228] sm:$0xff]
        %v846 = vld [vmem:[%s200 + $0x1230] sm:$0xff]
        %v847 = vld [vmem:[%s200 + $0x1238] sm:$0xff]
        %v848 = vld [vmem:[%s200 + $0x1240] sm:$0xff]
        %v849 = vld [vmem:[%s200 + $0x1248] sm:$0xff]
        %v850 = vld [vmem:[%s200 + $0x1250] sm:$0xff]
        %v851 = vld [vmem:[%s200 + $0x1258] sm:$0xff]
        %v852 = vld [vmem:[%s200 + $0x1260] sm:$0xff]
        %v853 = vld [vmem:[%s200 + $0x1268] sm:$0xff]
        %v854 = vld [vmem:[%s200 + $0x1270] sm:$0xff]
        %v855 = vld [vmem:[%s200 + $0x1278] sm:$0xff]
        %v856 = vld [vmem:[%s200 + $0x1280] sm:$0xff]
        %v857 = vld [vmem:[%s200 + $0x1288] sm:$0xff]
        %v858 = vld [vmem:[%s200 + $0x1290] sm:$0xff]
        %v859 = vld [vmem:[%s200 + $0x1298] sm:$0xff]
        %v860 = vld [vmem:[%s200 + $0x12a0] sm:$0xff]
        %v861 = vld [vmem:[%s200 + $0x12a8] sm:$0xff]
        %v862 = vld [vmem:[%s200 + $0x12b0] sm:$0xff]
        %v863 = vld [vmem:[%s200 + $0x12b8] sm:$0xff]
        %v864 = vld [vmem:[%s200 + $0x12c0] sm:$0xff]
        %v865 = vld [vmem:[%s200 + $0x12c8] sm:$0xff]
        %v866 = vld [vmem:[%s200 + $0x12d0] sm:$0xff]
        %v867 = vld [vmem:[%s200 + $0x12d8] sm:$0xff]
        %v868 = vld [vmem:[%s200 + $0x12e0] sm:$0xff]
        %v869 = vld [vmem:[%s200 + $0x12e8] sm:$0xff]
        %v870 = vld [vmem:[%s200 + $0x12f0] sm:$0xff]
        %v871 = vld [vmem:[%s200 + $0x12f8] sm:$0xff]
        %v872 = vld [vmem:[%s200 + $0x1300] sm:$0xff]
        %v873 = vld [vmem:[%s200 + $0x1308] sm:$0xff]
        %v874 = vld [vmem:[%s200 + $0x1310] sm:$0xff]
        %v875 = vld [vmem:[%s200 + $0x1318] sm:$0xff]
        %v876 = vld [vmem:[%s200 + $0x1320] sm:$0xff]
        %v877 = vld [vmem:[%s200 + $0x1328] sm:$0xff]
        %v878 = vld [vmem:[%s200 + $0x1330] sm:$0xff]
        %v879 = vld [vmem:[%s200 + $0x1338] sm:$0xff]
        %v880 = vld [vmem:[%s200 + $0x1340] sm:$0xff]
        %v881 = vld [vmem:[%s200 + $0x1348] sm:$0xff]
        %v882 = vld [vmem:[%s200 + $0x1350] sm:$0xff]
        %v883 = vld [vmem:[%s200 + $0x1358] sm:$0xff]
        %v884 = vld [vmem:[%s200 + $0x1360] sm:$0xff]
        %v885 = vld [vmem:[%s200 + $0x1368] sm:$0xff]
        %v886 = vld [vmem:[%s200 + $0x1370] sm:$0xff]
        %v887 = vld [vmem:[%s200 + $0x1378] sm:$0xff]
        %v888 = vld [vmem:[%s200 + $0x1380] sm:$0xff]
        %v889 = vld [vmem:[%s200 + $0x1388] sm:$0xff]
        %v890 = vld [vmem:[%s200 + $0x1390] sm:$0xff]
        %v891 = vld [vmem:[%s200 + $0x1398] sm:$0xff]
        %v892 = vld [vmem:[%s200 + $0x13a0] sm:$0xff]
        %v893 = vld [vmem:[%s200 + $0x13a8] sm:$0xff]
        %v894 = vld [vmem:[%s200 + $0x13b0] sm:$0xff]
        %v895 = vld [vmem:[%s200 + $0x13b8] sm:$0xff]
        %v896 = vld [vmem:[%s200 + $0x13c0] sm:$0xff]
        %v897 = vld [vmem:[%s200 + $0x13c8] sm:$0xff]
        %v898 = vld [vmem:[%s200 + $0x13d0] sm:$0xff]
        %v899 = vld [vmem:[%s200 + $0x13d8] sm:$0xff]
        %v900 = vld [vmem:[%s200 + $0x13e0] sm:$0xff]
        %v901 = vld [vmem:[%s200 + $0x13e8] sm:$0xff]
        %v902 = vld [vmem:[%s200 + $0x13f0] sm:$0xff]
        %v903 = vld [vmem:[%s200 + $0x13f8] sm:$0xff]
        %v904 = vld [vmem:[%s200 + $0x1400] sm:$0xff]
        %v905 = vld [vmem:[%s200 + $0x1408] sm:$0xff]
        %v906 = vld [vmem:[%s200 + $0x1410] sm:$0xff]
        %v907 = vld [vmem:[%s200 + $0x1418] sm:$0xff]
        %v908 = vld [vmem:[%s200 + $0x1420] sm:$0xff]
        %v909 = vld [vmem:[%s200 + $0x1428] sm:$0xff]
        %v910 = vld [vmem:[%s200 + $0x1430] sm:$0xff]
        %v911 = vld [vmem:[%s200 + $0x1438] sm:$0xff]
        %v912 = vld [vmem:[%s200 + $0x1440] sm:$0xff]
        %v913 = vld [vmem:[%s200 + $0x1448] sm:$0xff]
        %v914 = vld [vmem:[%s200 + $0x1450] sm:$0xff]
        %v915 = vld [vmem:[%s200 + $0x1458] sm:$0xff]
        %v916 = vld [vmem:[%s200 + $0x1460] sm:$0xff]
        %v917 = vld [vmem:[%s200 + $0x1468] sm:$0xff]
        %v918 = vld [vmem:[%s200 + $0x1470] sm:$0xff]
        %v919 = vld [vmem:[%s200 + $0x1478] sm:$0xff]
        %v920 = vld [vmem:[%s200 + $0x1480] sm:$0xff]
        %v921 = vld [vmem:[%s200 + $0x1488] sm:$0xff]
        %v922 = vld [vmem:[%s200 + $0x1490] sm:$0xff]
        %v923 = vld [vmem:[%s200 + $0x1498] sm:$0xff]
        %v924 = vld [vmem:[%s200 + $0x14a0] sm:$0xff]
        %v925 = vld [vmem:[%s200 + $0x14a8] sm:$0xff]
        %v926 = vld [vmem:[%s200 + $0x14b0] sm:$0xff]
        %v927 = vld [vmem:[%s200 + $0x14b8] sm:$0xff]
        %v928 = vld [vmem:[%s200 + $0x14c0] sm:$0xff]
        %v929 = vld [vmem:[%s200 + $0x14c8] sm:$0xff]
        %v930 = vld [vmem:[%s200 + $0x14d0] sm:$0xff]
        %v931 = vld [vmem:[%s200 + $0x14d8] sm:$0xff]
        %v932 = vld [vmem:[%s200 + $0x14e0] sm:$0xff]
        %v933 = vld [vmem:[%s200 + $0x14e8] sm:$0xff]
        %v934 = vld [vmem:[%s200 + $0x14f0] sm:$0xff]
        %v935 = vld [vmem:[%s200 + $0x14f8] sm:$0xff]
        %v936 = vld [vmem:[%s200 + $0x1500] sm:$0xff]
        %v937 = vld [vmem:[%s200 + $0x1508] sm:$0xff]
        %v938 = vld [vmem:[%s200 + $0x1510] sm:$0xff]
        %v939 = vld [vmem:[%s200 + $0x1518] sm:$0xff]
        %v940 = vld [vmem:[%s200 + $0x1520] sm:$0xff]
        %v941 = vld [vmem:[%s200 + $0x1528] sm:$0xff]
        %v942 = vld [vmem:[%s200 + $0x1530] sm:$0xff]
        %v943 = vld [vmem:[%s200 + $0x1538] sm:$0xff]
        %v944 = vld [vmem:[%s200 + $0x1540] sm:$0xff]
        %v945 = vld [vmem:[%s200 + $0x1548] sm:$0xff]
        %v946 = vld [vmem:[%s200 + $0x1550] sm:$0xff]
        %v947 = vld [vmem:[%s200 + $0x1558] sm:$0xff]
        %v948 = vld [vmem:[%s200 + $0x1560] sm:$0xff]
        %v949 = vld [vmem:[%s200 + $0x1568] sm:$0xff]
        %v950 = vld [vmem:[%s200 + $0x1570] sm:$0xff]
        %v951 = vld [vmem:[%s200 + $0x1578] sm:$0xff]
        %v952 = vld [vmem:[%s200 + $0x1580] sm:$0xff]
        %v953 = vld [vmem:[%s200 + $0x1588] sm:$0xff]
        %v954 = vld [vmem:[%s200 + $0x1590] sm:$0xff]
        %v955 = vld [vmem:[%s200 + $0x1598] sm:$0xff]
        %v956 = vld [vmem:[%s200 + $0x15a0] sm:$0xff]
        %v957 = vld [vmem:[%s200 + $0x15a8] sm:$0xff]
        %v958 = vld [vmem:[%s200 + $0x15b0] sm:$0xff]
        %v959 = vld [vmem:[%s200 + $0x15b8] sm:$0xff]
        %v960 = vld [vmem:[%s200 + $0x15c0] sm:$0xff]
        %v961 = vld [vmem:[%s200 + $0x15c8] sm:$0xff]
        %v962 = vld [vmem:[%s200 + $0x15d0] sm:$0xff]
        %v963 = vld [vmem:[%s200 + $0x15d8] sm:$0xff]
        %v964 = vld [vmem:[%s200 + $0x15e0] sm:$0xff]
        %v965 = vld [vmem:[%s200 + $0x15e8] sm:$0xff]
        %v966 = vld [vmem:[%s200 + $0x15f0] sm:$0xff]
        %v967 = vld [vmem:[%s200 + $0x15f8] sm:$0xff]
        %v968 = vld [vmem:[%s200 + $0x1600] sm:$0xff]
        %v969 = vld [vmem:[%s200 + $0x1608] sm:$0xff]
        %v970 = vld [vmem:[%s200 + $0x1610] sm:$0xff]
        %v971 = vld [vmem:[%s200 + $0x1618] sm:$0xff]
        %v972 = vld [vmem:[%s200 + $0x1620] sm:$0xff]
        %v973 = vld [vmem:[%s200 + $0x1628] sm:$0xff]
        %v974 = vld [vmem:[%s200 + $0x1630] sm:$0xff]
        %v975 = vld [vmem:[%s200 + $0x1638] sm:$0xff]
        %v976 = vld [vmem:[%s200 + $0x1640] sm:$0xff]
        %v977 = vld [vmem:[%s200 + $0x1648] sm:$0xff]
        %v978 = vld [vmem:[%s200 + $0x1650] sm:$0xff]
        %v979 = vld [vmem:[%s200 + $0x1658] sm:$0xff]
        %v980 = vld [vmem:[%s200 + $0x1660] sm:$0xff]
        %v981 = vld [vmem:[%s200 + $0x1668] sm:$0xff]
        %v982 = vld [vmem:[%s200 + $0x1670] sm:$0xff]
        %v983 = vld [vmem:[%s200 + $0x1678] sm:$0xff]
        %v984 = vld [vmem:[%s200 + $0x1680] sm:$0xff]
        %v985 = vld [vmem:[%s200 + $0x1688] sm:$0xff]
        %v986 = vld [vmem:[%s200 + $0x1690] sm:$0xff]
        %v987 = vld [vmem:[%s200 + $0x1698] sm:$0xff]
        %v988 = vld [vmem:[%s200 + $0x16a0] sm:$0xff]
        %v989 = vld [vmem:[%s200 + $0x16a8] sm:$0xff]
        %v990 = vld [vmem:[%s200 + $0x16b0] sm:$0xff]
        %v991 = vld [vmem:[%s200 + $0x16b8] sm:$0xff]
        %v992 = vld [vmem:[%s200 + $0x16c0] sm:$0xff]
        %v993 = vld [vmem:[%s200 + $0x16c8] sm:$0xff]
        %v994 = vld [vmem:[%s200 + $0x16d0] sm:$0xff]
        %v995 = vld [vmem:[%s200 + $0x16d8] sm:$0xff]
        %v996 = vld [vmem:[%s200 + $0x16e0] sm:$0xff]
        %v997 = vld [vmem:[%s200 + $0x16e8] sm:$0xff]
        %v998 = vld [vmem:[%s200 + $0x16f0] sm:$0xff]
        %v999 = vld [vmem:[%s200 + $0x16f8] sm:$0xff]
        %v1000 = vld [vmem:[%s200 + $0x1700] sm:$0xff]
        %v1001 = vld [vmem:[%s200 + $0x1708] sm:$0xff]
        %v1002 = vld [vmem:[%s200 + $0x1710] sm:$0xff]
        %v1003 = vld [vmem:[%s200 + $0x1718] sm:$0xff]
        %v1004 = vld [vmem:[%s200 + $0x1720] sm:$0xff]
        %v1005 = vld [vmem:[%s200 + $0x1728] sm:$0xff]
        %v1006 = vld [vmem:[%s200 + $0x1730] sm:$0xff]
        %v1007 = vld [vmem:[%s200 + $0x1738] sm:$0xff]
        %v1008 = vld [vmem:[%s200 + $0x1740] sm:$0xff]
        %v1009 = vld [vmem:[%s200 + $0x1748] sm:$0xff]
        %v1010 = vld [vmem:[%s200 + $0x1750] sm:$0xff]
        %v1011 = vld [vmem:[%s200 + $0x1758] sm:$0xff]
        %v1012 = vld [vmem:[%s200 + $0x1760] sm:$0xff]
        %v1013 = vld [vmem:[%s200 + $0x1768] sm:$0xff]
        %v1014 = vld [vmem:[%s200 + $0x1770] sm:$0xff]
        %v1015 = vld [vmem:[%s200 + $0x1778] sm:$0xff]
        %v1016 = vld [vmem:[%s200 + $0x1780] sm:$0xff]
        %v1017 = vld [vmem:[%s200 + $0x1788] sm:$0xff]
        %v1018 = vld [vmem:[%s200 + $0x1790] sm:$0xff]
        %v1019 = vld [vmem:[%s200 + $0x1798] sm:$0xff]
        %v1020 = vld [vmem:[%s200 + $0x17a0] sm:$0xff]
        %v1021 = vld [vmem:[%s200 + $0x17a8] sm:$0xff]
        %v1022 = vld [vmem:[%s200 + $0x17b0] sm:$0xff]
        %v1023 = vld [vmem:[%s200 + $0x17b8] sm:$0xff]
        %v1024 = vld [vmem:[%s200 + $0x17c0] sm:$0xff]
        %v1025 = vld [vmem:[%s200 + $0x17c8] sm:$0xff]
        %v1026 = vld [vmem:[%s200 + $0x17d0] sm:$0xff]
        %v1027 = vld [vmem:[%s200 + $0x17d8] sm:$0xff]
        %v1028 = vld [vmem:[%s200 + $0x17e0] sm:$0xff]
        %v1029 = vld [vmem:[%s200 + $0x17e8] sm:$0xff]
        %v1030 = vld [vmem:[%s200 + $0x17f0] sm:$0xff]
        %v1031 = vld [vmem:[%s200 + $0x17f8] sm:$0xff]
        %v1032 = vld [vmem:[%s200 + $0x1800] sm:$0xff]
        %v1033 = vld [vmem:[%s200 + $0x1808] sm:$0xff]
        %v1034 = vld [vmem:[%s200 + $0x1810] sm:$0xff]
        %v1035 = vld [vmem:[%s200 + $0x1818] sm:$0xff]
        %v1036 = vld [vmem:[%s200 + $0x1820] sm:$0xff]
        %v1037 = vld [vmem:[%s200 + $0x1828] sm:$0xff]
        %v1038 = vld [vmem:[%s200 + $0x1830] sm:$0xff]
        %v1039 = vld [vmem:[%s200 + $0x1838] sm:$0xff]
        %v1040 = vld [vmem:[%s200 + $0x1840] sm:$0xff]
        %v1041 = vld [vmem:[%s200 + $0x1848] sm:$0xff]
        %v1042 = vld [vmem:[%s200 + $0x1850] sm:$0xff]
        %v1043 = vld [vmem:[%s200 + $0x1858] sm:$0xff]
        %v1044 = vld [vmem:[%s200 + $0x1860] sm:$0xff]
        %v1045 = vld [vmem:[%s200 + $0x1868] sm:$0xff]
        %v1046 = vld [vmem:[%s200 + $0x1870] sm:$0xff]
        %v1047 = vld [vmem:[%s200 + $0x1878] sm:$0xff]
        %v1048 = vld [vmem:[%s200 + $0x1880] sm:$0xff]
        %v1049 = vld [vmem:[%s200 + $0x1888] sm:$0xff]
        %v1050 = vld [vmem:[%s200 + $0x1890] sm:$0xff]
        %v1051 = vld [vmem:[%s200 + $0x1898] sm:$0xff]
        %v1052 = vld [vmem:[%s200 + $0x18a0] sm:$0xff]
        %v1053 = vld [vmem:[%s200 + $0x18a8] sm:$0xff]
        %v1054 = vld [vmem:[%s200 + $0x18b0] sm:$0xff]
        %v1055 = vld [vmem:[%s200 + $0x18b8] sm:$0xff]
        %v1056 = vld [vmem:[%s200 + $0x18c0] sm:$0xff]
        %v1057 = vld [vmem:[%s200 + $0x18c8] sm:$0xff]
        %v1058 = vld [vmem:[%s200 + $0x18d0] sm:$0xff]
        %v1059 = vld [vmem:[%s200 + $0x18d8] sm:$0xff]
        %v1060 = vld [vmem:[%s200 + $0x18e0] sm:$0xff]
        %v1061 = vld [vmem:[%s200 + $0x18e8] sm:$0xff]
        %v1062 = vld [vmem:[%s200 + $0x18f0] sm:$0xff]
        %v1063 = vld [vmem:[%s200 + $0x18f8] sm:$0xff]
        %v1064 = vld [vmem:[%s200 + $0x1900] sm:$0xff]
        %v1065 = vld [vmem:[%s200 + $0x1908] sm:$0xff]
        %v1066 = vld [vmem:[%s200 + $0x1910] sm:$0xff]
        %v1067 = vld [vmem:[%s200 + $0x1918] sm:$0xff]
        %v1068 = vld [vmem:[%s200 + $0x1920] sm:$0xff]
        %v1069 = vld [vmem:[%s200 + $0x1928] sm:$0xff]
        %v1070 = vld [vmem:[%s200 + $0x1930] sm:$0xff]
        %v1071 = vld [vmem:[%s200 + $0x1938] sm:$0xff]
        %v1072 = vld [vmem:[%s200 + $0x1940] sm:$0xff]
        %v1073 = vld [vmem:[%s200 + $0x1948] sm:$0xff]
        %v1074 = vld [vmem:[%s200 + $0x1950] sm:$0xff]
        %v1075 = vld [vmem:[%s200 + $0x1958] sm:$0xff]
        %v1076 = vld [vmem:[%s200 + $0x1960] sm:$0xff]
        %v1077 = vld [vmem:[%s200 + $0x1968] sm:$0xff]
        %v1078 = vld [vmem:[%s200 + $0x1970] sm:$0xff]
        %v1079 = vld [vmem:[%s200 + $0x1978] sm:$0xff]
        %v1080 = vld [vmem:[%s200 + $0x1980] sm:$0xff]
        %v1081 = vld [vmem:[%s200 + $0x1988] sm:$0xff]
        %v1082 = vld [vmem:[%s200 + $0x1990] sm:$0xff]
        %v1083 = vld [vmem:[%s200 + $0x1998] sm:$0xff]
        %v1084 = vld [vmem:[%s200 + $0x19a0] sm:$0xff]
        %v1085 = vld [vmem:[%s200 + $0x19a8] sm:$0xff]
        %v1086 = vld [vmem:[%s200 + $0x19b0] sm:$0xff]
        %v1087 = vld [vmem:[%s200 + $0x19b8] sm:$0xff]
        %v1088 = vld [vmem:[%s200 + $0x19c0] sm:$0xff]
        %v1089 = vld [vmem:[%s200 + $0x19c8] sm:$0xff]
        %v1090 = vld [vmem:[%s200 + $0x19d0] sm:$0xff]
        %v1091 = vld [vmem:[%s200 + $0x19d8] sm:$0xff]
        %v1092 = vld [vmem:[%s200 + $0x19e0] sm:$0xff]
        %v1093 = vld [vmem:[%s200 + $0x19e8] sm:$0xff]
        %v1094 = vld [vmem:[%s200 + $0x19f0] sm:$0xff]
        %v1095 = vld [vmem:[%s200 + $0x19f8] sm:$0xff]
        %v1096 = vld [vmem:[%s200 + $0x1a00] sm:$0xff]
        %v1097 = vld [vmem:[%s200 + $0x1a08] sm:$0xff]
        %v1098 = vld [vmem:[%s200 + $0x1a10] sm:$0xff]
        %v1099 = vld [vmem:[%s200 + $0x1a18] sm:$0xff]
        %v1100 = vld [vmem:[%s200 + $0x1a20] sm:$0xff]
        %v1101 = vld [vmem:[%s200 + $0x1a28] sm:$0xff]
        %v1102 = vld [vmem:[%s200 + $0x1a30] sm:$0xff]
        %v1103 = vld [vmem:[%s200 + $0x1a38] sm:$0xff]
        %v1104 = vld [vmem:[%s200 + $0x1a40] sm:$0xff]
        %v1105 = vld [vmem:[%s200 + $0x1a48] sm:$0xff]
        %v1106 = vld [vmem:[%s200 + $0x1a50] sm:$0xff]
        %v1107 = vld [vmem:[%s200 + $0x1a58] sm:$0xff]
        %v1108 = vld [vmem:[%s200 + $0x1a60] sm:$0xff]
        %v1109 = vld [vmem:[%s200 + $0x1a68] sm:$0xff]
        %v1110 = vld [vmem:[%s200 + $0x1a70] sm:$0xff]
        %v1111 = vld [vmem:[%s200 + $0x1a78] sm:$0xff]
        %v1112 = vld [vmem:[%s200 + $0x1a80] sm:$0xff]
        %v1113 = vld [vmem:[%s200 + $0x1a88] sm:$0xff]
        %v1114 = vld [vmem:[%s200 + $0x1a90] sm:$0xff]
        %v1115 = vld [vmem:[%s200 + $0x1a98] sm:$0xff]
        %v1116 = vld [vmem:[%s200 + $0x1aa0] sm:$0xff]
        %v1117 = vld [vmem:[%s200 + $0x1aa8] sm:$0xff]
        %v1118 = vld [vmem:[%s200 + $0x1ab0] sm:$0xff]
        %v1119 = vld [vmem:[%s200 + $0x1ab8] sm:$0xff]
        %v1120 = vld [vmem:[%s200 + $0x1ac0] sm:$0xff]
        %v1121 = vld [vmem:[%s200 + $0x1ac8] sm:$0xff]
        %v1122 = vld [vmem:[%s200 + $0x1ad0] sm:$0xff]
        %v1123 = vld [vmem:[%s200 + $0x1ad8] sm:$0xff]
        %v1124 = vld [vmem:[%s200 + $0x1ae0] sm:$0xff]
        %v1125 = vld [vmem:[%s200 + $0x1ae8] sm:$0xff]
        %v1126 = vld [vmem:[%s200 + $0x1af0] sm:$0xff]
        %v1127 = vld [vmem:[%s200 + $0x1af8] sm:$0xff]
        %v1128 = vld [vmem:[%s200 + $0x1b00] sm:$0xff]
        %v1129 = vld [vmem:[%s200 + $0x1b08] sm:$0xff]
        %v1130 = vld [vmem:[%s200 + $0x1b10] sm:$0xff]
        %v1131 = vld [vmem:[%s200 + $0x1b18] sm:$0xff]
        %v1132 = vld [vmem:[%s200 + $0x1b20] sm:$0xff]
        %v1133 = vld [vmem:[%s200 + $0x1b28] sm:$0xff]
        %v1134 = vld [vmem:[%s200 + $0x1b30] sm:$0xff]
        %v1135 = vld [vmem:[%s200 + $0x1b38] sm:$0xff]
        %v1136 = vld [vmem:[%s200 + $0x1b40] sm:$0xff]
        %v1137 = vld [vmem:[%s200 + $0x1b48] sm:$0xff]
        %v1138 = vld [vmem:[%s200 + $0x1b50] sm:$0xff]
        %v1139 = vld [vmem:[%s200 + $0x1b58] sm:$0xff]
        %v1140 = vld [vmem:[%s200 + $0x1b60] sm:$0xff]
        %v1141 = vld [vmem:[%s200 + $0x1b68] sm:$0xff]
        %v1142 = vld [vmem:[%s200 + $0x1b70] sm:$0xff]
        %v1143 = vld [vmem:[%s200 + $0x1b78] sm:$0xff]
        %v1144 = vld [vmem:[%s200 + $0x1b80] sm:$0xff]
        %v1145 = vld [vmem:[%s200 + $0x1b88] sm:$0xff]
        %v1146 = vld [vmem:[%s200 + $0x1b90] sm:$0xff]
        %v1147 = vld [vmem:[%s200 + $0x1b98] sm:$0xff]
        %v1148 = vld [vmem:[%s200 + $0x1ba0] sm:$0xff]
        %v1149 = vld [vmem:[%s200 + $0x1ba8] sm:$0xff]
        %v1150 = vld [vmem:[%s200 + $0x1bb0] sm:$0xff]
        %v1151 = vld [vmem:[%s200 + $0x1bb8] sm:$0xff]
        %v1152 = vld [vmem:[%s200 + $0x1bc0] sm:$0xff]
        %v1153 = vld [vmem:[%s200 + $0x1bc8] sm:$0xff]
        %v1154 = vld [vmem:[%s200 + $0x1bd0] sm:$0xff]
        %v1155 = vld [vmem:[%s200 + $0x1bd8] sm:$0xff]
        %v1156 = vld [vmem:[%s200 + $0x1be0] sm:$0xff]
        %v1157 = vld [vmem:[%s200 + $0x1be8] sm:$0xff]
        %v1158 = vld [vmem:[%s200 + $0x1bf0] sm:$0xff]
        %v1159 = vld [vmem:[%s200 + $0x1bf8] sm:$0xff]
        %v1160 = vld [vmem:[%s200 + $0x1c00] sm:$0xff]
        %v1161 = vld [vmem:[%s200 + $0x1c08] sm:$0xff]
        %v1162 = vld [vmem:[%s200 + $0x1c10] sm:$0xff]
        %v1163 = vld [vmem:[%s200 + $0x1c18] sm:$0xff]
        %v1164 = vld [vmem:[%s200 + $0x1c20] sm:$0xff]
        %v1165 = vld [vmem:[%s200 + $0x1c28] sm:$0xff]
        %v1166 = vld [vmem:[%s200 + $0x1c30] sm:$0xff]
        %v1167 = vld [vmem:[%s200 + $0x1c38] sm:$0xff]
        %v1168 = vld [vmem:[%s200 + $0x1c40] sm:$0xff]
        %v1169 = vld [vmem:[%s200 + $0x1c48] sm:$0xff]
        %v1170 = vld [vmem:[%s200 + $0x1c50] sm:$0xff]
        %v1171 = vld [vmem:[%s200 + $0x1c58] sm:$0xff]
        %v1172 = vld [vmem:[%s200 + $0x1c60] sm:$0xff]
        %v1173 = vld [vmem:[%s200 + $0x1c68] sm:$0xff]
        %v1174 = vld [vmem:[%s200 + $0x1c70] sm:$0xff]
        %v1175 = vld [vmem:[%s200 + $0x1c78] sm:$0xff]
        %v1176 = vld [vmem:[%s200 + $0x1c80] sm:$0xff]
        %v1177 = vld [vmem:[%s200 + $0x1c88] sm:$0xff]
        %v1178 = vld [vmem:[%s200 + $0x1c90] sm:$0xff]
        %v1179 = vld [vmem:[%s200 + $0x1c98] sm:$0xff]
        %v1180 = vld [vmem:[%s200 + $0x1ca0] sm:$0xff]
        %v1181 = vld [vmem:[%s200 + $0x1ca8] sm:$0xff]
        %v1182 = vld [vmem:[%s200 + $0x1cb0] sm:$0xff]
        %v1183 = vld [vmem:[%s200 + $0x1cb8] sm:$0xff]
        %v1184 = vld [vmem:[%s200 + $0x1cc0] sm:$0xff]
        %v1185 = vld [vmem:[%s200 + $0x1cc8] sm:$0xff]
        %v1186 = vld [vmem:[%s200 + $0x1cd0] sm:$0xff]
        %v1187 = vld [vmem:[%s200 + $0x1cd8] sm:$0xff]
        %v1188 = vld [vmem:[%s200 + $0x1ce0] sm:$0xff]
        %v1189 = vld [vmem:[%s200 + $0x1ce8] sm:$0xff]
        %v1190 = vld [vmem:[%s200 + $0x1cf0] sm:$0xff]
        %v1191 = vld [vmem:[%s200 + $0x1cf8] sm:$0xff]
        %v1192 = vld [vmem:[%s200 + $0x1d00] sm:$0xff]
        %v1193 = vld [vmem:[%s200 + $0x1d08] sm:$0xff]
        %v1194 = vld [vmem:[%s200 + $0x1d10] sm:$0xff]
        %v1195 = vld [vmem:[%s200 + $0x1d18] sm:$0xff]
        %v1196 = vld [vmem:[%s200 + $0x1d20] sm:$0xff]
        %v1197 = vld [vmem:[%s200 + $0x1d28] sm:$0xff]
        %v1198 = vld [vmem:[%s200 + $0x1d30] sm:$0xff]
        %v1199 = vld [vmem:[%s200 + $0x1d38] sm:$0xff]
        %v1200 = vld [vmem:[%s200 + $0x1d40] sm:$0xff]
        %v1201 = vld [vmem:[%s200 + $0x1d48] sm:$0xff]
        %v1202 = vld [vmem:[%s200 + $0x1d50] sm:$0xff]
        %v1203 = vld [vmem:[%s200 + $0x1d58] sm:$0xff]
        %v1204 = vld [vmem:[%s200 + $0x1d60] sm:$0xff]
        %v1205 = vld [vmem:[%s200 + $0x1d68] sm:$0xff]
        %v1206 = vld [vmem:[%s200 + $0x1d70] sm:$0xff]
        %v1207 = vld [vmem:[%s200 + $0x1d78] sm:$0xff]
        %v1208 = vld [vmem:[%s200 + $0x1d80] sm:$0xff]
        %v1209 = vld [vmem:[%s200 + $0x1d88] sm:$0xff]
        %v1210 = vld [vmem:[%s200 + $0x1d90] sm:$0xff]
        %v1211 = vld [vmem:[%s200 + $0x1d98] sm:$0xff]
        %v1212 = vld [vmem:[%s200 + $0x1da0] sm:$0xff]
        %v1213 = vld [vmem:[%s200 + $0x1da8] sm:$0xff]
        %v1214 = vld [vmem:[%s200 + $0x1db0] sm:$0xff]
        %v1215 = vld [vmem:[%s200 + $0x1db8] sm:$0xff]
        %v1216 = vld [vmem:[%s200 + $0x1dc0] sm:$0xff]
        %v1217 = vld [vmem:[%s200 + $0x1dc8] sm:$0xff]
        %v1218 = vld [vmem:[%s200 + $0x1dd0] sm:$0xff]
        %v1219 = vld [vmem:[%s200 + $0x1dd8] sm:$0xff]
        %v1220 = vld [vmem:[%s200 + $0x1de0] sm:$0xff]
        %v1221 = vld [vmem:[%s200 + $0x1de8] sm:$0xff]
        %v1222 = vld [vmem:[%s200 + $0x1df0] sm:$0xff]
        %v1223 = vld [vmem:[%s200 + $0x1df8] sm:$0xff]
        %v1224 = vld [vmem:[%s200 + $0x1e00] sm:$0xff]
        %v1225 = vld [vmem:[%s200 + $0x1e08] sm:$0xff]
        %v1226 = vld [vmem:[%s200 + $0x1e10] sm:$0xff]
        %v1227 = vld [vmem:[%s200 + $0x1e18] sm:$0xff]
        %v1228 = vld [vmem:[%s200 + $0x1e20] sm:$0xff]
        %v1229 = vld [vmem:[%s200 + $0x1e28] sm:$0xff]
        %v1230 = vld [vmem:[%s200 + $0x1e30] sm:$0xff]
        %v1231 = vld [vmem:[%s200 + $0x1e38] sm:$0xff]
        %v1232 = vld [vmem:[%s200 + $0x1e40] sm:$0xff]
        %v1233 = vld [vmem:[%s200 + $0x1e48] sm:$0xff]
        %v1234 = vld [vmem:[%s200 + $0x1e50] sm:$0xff]
        %v1235 = vld [vmem:[%s200 + $0x1e58] sm:$0xff]
        %v1236 = vld [vmem:[%s200 + $0x1e60] sm:$0xff]
        %v1237 = vld [vmem:[%s200 + $0x1e68] sm:$0xff]
        %v1238 = vld [vmem:[%s200 + $0x1e70] sm:$0xff]
        %v1239 = vld [vmem:[%s200 + $0x1e78] sm:$0xff]
        %v1240 = vld [vmem:[%s200 + $0x1e80] sm:$0xff]
        %v1241 = vld [vmem:[%s200 + $0x1e88] sm:$0xff]
        %v1242 = vld [vmem:[%s200 + $0x1e90] sm:$0xff]
        %v1243 = vld [vmem:[%s200 + $0x1e98] sm:$0xff]
        %v1244 = vld [vmem:[%s200 + $0x1ea0] sm:$0xff]
        %v1245 = vld [vmem:[%s200 + $0x1ea8] sm:$0xff]
        %v1246 = vld [vmem:[%s200 + $0x1eb0] sm:$0xff]
        %v1247 = vld [vmem:[%s200 + $0x1eb8] sm:$0xff]
        %v1248 = vld [vmem:[%s200 + $0x1ec0] sm:$0xff]
        %v1249 = vld [vmem:[%s200 + $0x1ec8] sm:$0xff]
        %v1250 = vld [vmem:[%s200 + $0x1ed0] sm:$0xff]
        %v1251 = vld [vmem:[%s200 + $0x1ed8] sm:$0xff]
        %v1252 = vld [vmem:[%s200 + $0x1ee0] sm:$0xff]
        %v1253 = vld [vmem:[%s200 + $0x1ee8] sm:$0xff]
        %v1254 = vld [vmem:[%s200 + $0x1ef0] sm:$0xff]
        %v1255 = vld [vmem:[%s200 + $0x1ef8] sm:$0xff]
        %v1256 = vld [vmem:[%s200 + $0x1f00] sm:$0xff]
        %v1257 = vld [vmem:[%s200 + $0x1f08] sm:$0xff]
        %v1258 = vld [vmem:[%s200 + $0x1f10] sm:$0xff]
        %v1259 = vld [vmem:[%s200 + $0x1f18] sm:$0xff]
        %v1260 = vld [vmem:[%s200 + $0x1f20] sm:$0xff]
        %v1261 = vld [vmem:[%s200 + $0x1f28] sm:$0xff]
        %v1262 = vld [vmem:[%s200 + $0x1f30] sm:$0xff]
        %v1263 = vld [vmem:[%s200 + $0x1f38] sm:$0xff]
        %v1264 = vld [vmem:[%s200 + $0x1f40] sm:$0xff]
        %v1265 = vld [vmem:[%s200 + $0x1f48] sm:$0xff]
        %v1266 = vld [vmem:[%s200 + $0x1f50] sm:$0xff]
        %v1267 = vld [vmem:[%s200 + $0x1f58] sm:$0xff]
        %v1268 = vld [vmem:[%s200 + $0x1f60] sm:$0xff]
        %v1269 = vld [vmem:[%s200 + $0x1f68] sm:$0xff]
        %v1270 = vld [vmem:[%s200 + $0x1f70] sm:$0xff]
        %v1271 = vld [vmem:[%s200 + $0x1f78] sm:$0xff]
        %v1272 = vld [vmem:[%s200 + $0x1f80] sm:$0xff]
        %v1273 = vld [vmem:[%s200 + $0x1f88] sm:$0xff]
        %v1274 = vld [vmem:[%s200 + $0x1f90] sm:$0xff]
        %v1275 = vld [vmem:[%s200 + $0x1f98] sm:$0xff]
        %v1276 = vld [vmem:[%s200 + $0x1fa0] sm:$0xff]
        %v1277 = vld [vmem:[%s200 + $0x1fa8] sm:$0xff]
        %v1278 = vld [vmem:[%s200 + $0x1fb0] sm:$0xff]
        %v1279 = vld [vmem:[%s200 + $0x1fb8] sm:$0xff]
        %v1280 = vld [vmem:[%s200 + $0x1fc0] sm:$0xff]
        %v1281 = vld [vmem:[%s200 + $0x1fc8] sm:$0xff]
        %v1282 = vld [vmem:[%s200 + $0x1fd0] sm:$0xff]
        %v1283 = vld [vmem:[%s200 + $0x1fd8] sm:$0xff]
        %v1284 = vld [vmem:[%s200 + $0x1fe0] sm:$0xff]
        %v1285 = vld [vmem:[%s200 + $0x1fe8] sm:$0xff]
        %v1286 = vld [vmem:[%s200 + $0x1ff0] sm:$0xff]
        %v1287 = vld [vmem:[%s200 + $0x1ff8] sm:$0xff]
        %v1288 = vld [vmem:[%s200 + $0x2000] sm:$0xff]
        %v1289 = vld [vmem:[%s200 + $0x2008] sm:$0xff]
        %v1290 = vld [vmem:[%s200 + $0x2010] sm:$0xff]
        %v1291 = vld [vmem:[%s200 + $0x2018] sm:$0xff]
        %v1292 = vld [vmem:[%s200 + $0x2020] sm:$0xff]
        %v1293 = vld [vmem:[%s200 + $0x2028] sm:$0xff]
        %v1294 = vld [vmem:[%s200 + $0x2030] sm:$0xff]
        %v1295 = vld [vmem:[%s200 + $0x2038] sm:$0xff]
        %v1296 = vld [vmem:[%s200 + $0x2040] sm:$0xff]
        %v1297 = vld [vmem:[%s200 + $0x2048] sm:$0xff]
        %v1298 = vld [vmem:[%s200 + $0x2050] sm:$0xff]
        %v1299 = vld [vmem:[%s200 + $0x2058] sm:$0xff]
        %v1300 = vld [vmem:[%s200 + $0x2060] sm:$0xff]
        %v1301 = vld [vmem:[%s200 + $0x2068] sm:$0xff]
        %v1302 = vld [vmem:[%s200 + $0x2070] sm:$0xff]
        %v1303 = vld [vmem:[%s200 + $0x2078] sm:$0xff]
        %v1304 = vld [vmem:[%s200 + $0x2080] sm:$0xff]
        %v1305 = vld [vmem:[%s200 + $0x2088] sm:$0xff]
        %v1306 = vld [vmem:[%s200 + $0x2090] sm:$0xff]
        %v1307 = vld [vmem:[%s200 + $0x2098] sm:$0xff]
        %v1308 = vld [vmem:[%s200 + $0x20a0] sm:$0xff]
        %v1309 = vld [vmem:[%s200 + $0x20a8] sm:$0xff]
        %v1310 = vld [vmem:[%s200 + $0x20b0] sm:$0xff]
        %v1311 = vld [vmem:[%s200 + $0x20b8] sm:$0xff]
        %v1312 = vld [vmem:[%s200 + $0x20c0] sm:$0xff]
        %v1313 = vld [vmem:[%s200 + $0x20c8] sm:$0xff]
        %v1314 = vld [vmem:[%s200 + $0x20d0] sm:$0xff]
        %v1315 = vld [vmem:[%s200 + $0x20d8] sm:$0xff]
        %v1316 = vld [vmem:[%s200 + $0x20e0] sm:$0xff]
        %v1317 = vld [vmem:[%s200 + $0x20e8] sm:$0xff]
        %v1318 = vld [vmem:[%s200 + $0x20f0] sm:$0xff]
        %v1319 = vld [vmem:[%s200 + $0x20f8] sm:$0xff]
        %v1320 = vld [vmem:[%s200 + $0x2100] sm:$0xff]
        %v1321 = vld [vmem:[%s200 + $0x2108] sm:$0xff]
        %v1322 = vld [vmem:[%s200 + $0x2110] sm:$0xff]
        %v1323 = vld [vmem:[%s200 + $0x2118] sm:$0xff]
        %v1324 = vld [vmem:[%s200 + $0x2120] sm:$0xff]
        %v1325 = vld [vmem:[%s200 + $0x2128] sm:$0xff]
        %v1326 = vld [vmem:[%s200 + $0x2130] sm:$0xff]
        %v1327 = vld [vmem:[%s200 + $0x2138] sm:$0xff]
        %v1328 = vld [vmem:[%s200 + $0x2140] sm:$0xff]
        %v1329 = vld [vmem:[%s200 + $0x2148] sm:$0xff]
        %v1330 = vld [vmem:[%s200 + $0x2150] sm:$0xff]
        %v1331 = vld [vmem:[%s200 + $0x2158] sm:$0xff]
        %v1332 = vld [vmem:[%s200 + $0x2160] sm:$0xff]
        %v1333 = vld [vmem:[%s200 + $0x2168] sm:$0xff]
        %v1334 = vld [vmem:[%s200 + $0x2170] sm:$0xff]
        %v1335 = vld [vmem:[%s200 + $0x2178] sm:$0xff]
        %v1336 = vld [vmem:[%s200 + $0x2180] sm:$0xff]
        %v1337 = vld [vmem:[%s200 + $0x2188] sm:$0xff]
        %v1338 = vld [vmem:[%s200 + $0x2190] sm:$0xff]
        %v1339 = vld [vmem:[%s200 + $0x2198] sm:$0xff]
        %v1340 = vld [vmem:[%s200 + $0x21a0] sm:$0xff]
        %v1341 = vld [vmem:[%s200 + $0x21a8] sm:$0xff]
        %v1342 = vld [vmem:[%s200 + $0x21b0] sm:$0xff]
        %v1343 = vld [vmem:[%s200 + $0x21b8] sm:$0xff]
        %v1344 = vld [vmem:[%s200 + $0x21c0] sm:$0xff]
        %v1345 = vld [vmem:[%s200 + $0x21c8] sm:$0xff]
        %v1346 = vld [vmem:[%s200 + $0x21d0] sm:$0xff]
        %v1347 = vld [vmem:[%s200 + $0x21d8] sm:$0xff]
        %v1348 = vld [vmem:[%s200 + $0x21e0] sm:$0xff]
        %v1349 = vld [vmem:[%s200 + $0x21e8] sm:$0xff]
        %v1350 = vld [vmem:[%s200 + $0x21f0] sm:$0xff]
        %v1351 = vld [vmem:[%s200 + $0x21f8] sm:$0xff]
        %v1352 = vld [vmem:[%s200 + $0x2200] sm:$0xff]
        %v1353 = vld [vmem:[%s200 + $0x2208] sm:$0xff]
        %v1354 = vld [vmem:[%s200 + $0x2210] sm:$0xff]
        %v1355 = vld [vmem:[%s200 + $0x2218] sm:$0xff]
        %v1356 = vld [vmem:[%s200 + $0x2220] sm:$0xff]
        %v1357 = vld [vmem:[%s200 + $0x2228] sm:$0xff]
        %v1358 = vld [vmem:[%s200 + $0x2230] sm:$0xff]
        %v1359 = vld [vmem:[%s200 + $0x2238] sm:$0xff]
        %v1360 = vld [vmem:[%s200 + $0x2240] sm:$0xff]
        %v1361 = vld [vmem:[%s200 + $0x2248] sm:$0xff]
        %v1362 = vld [vmem:[%s200 + $0x2250] sm:$0xff]
        %v1363 = vld [vmem:[%s200 + $0x2258] sm:$0xff]
        %v1364 = vld [vmem:[%s200 + $0x2260] sm:$0xff]
        %v1365 = vld [vmem:[%s200 + $0x2268] sm:$0xff]
        %v1366 = vld [vmem:[%s200 + $0x2270] sm:$0xff]
        %v1367 = vld [vmem:[%s200 + $0x2278] sm:$0xff]
        %v1368 = vld [vmem:[%s200 + $0x2280] sm:$0xff]
        %v1369 = vld [vmem:[%s200 + $0x2288] sm:$0xff]
        %v1370 = vld [vmem:[%s200 + $0x2290] sm:$0xff]
        %v1371 = vld [vmem:[%s200 + $0x2298] sm:$0xff]
        %v1372 = vld [vmem:[%s200 + $0x22a0] sm:$0xff]
        %v1373 = vld [vmem:[%s200 + $0x22a8] sm:$0xff]
        %v1374 = vld [vmem:[%s200 + $0x22b0] sm:$0xff]
        %v1375 = vld [vmem:[%s200 + $0x22b8] sm:$0xff]
        %v1376 = vld [vmem:[%s200 + $0x22c0] sm:$0xff]
        %v1377 = vld [vmem:[%s200 + $0x22c8] sm:$0xff]
        %v1378 = vld [vmem:[%s200 + $0x22d0] sm:$0xff]
        %v1379 = vld [vmem:[%s200 + $0x22d8] sm:$0xff]
        %v1380 = vld [vmem:[%s200 + $0x22e0] sm:$0xff]
        %v1381 = vld [vmem:[%s200 + $0x22e8] sm:$0xff]
        %v1382 = vld [vmem:[%s200 + $0x22f0] sm:$0xff]
        %v1383 = vld [vmem:[%s200 + $0x22f8] sm:$0xff]
        %v1384 = vld [vmem:[%s200 + $0x2300] sm:$0xff]
        %v1385 = vld [vmem:[%s200 + $0x2308] sm:$0xff]
        %v1386 = vld [vmem:[%s200 + $0x2310] sm:$0xff]
        %v1387 = vld [vmem:[%s200 + $0x2318] sm:$0xff]
        %v1388 = vld [vmem:[%s200 + $0x2320] sm:$0xff]
        %v1389 = vld [vmem:[%s200 + $0x2328] sm:$0xff]
        %v1390 = vld [vmem:[%s200 + $0x2330] sm:$0xff]
        %v1391 = vld [vmem:[%s200 + $0x2338] sm:$0xff]
        %v1392 = vld [vmem:[%s200 + $0x2340] sm:$0xff]
        %v1393 = vld [vmem:[%s200 + $0x2348] sm:$0xff]
        %v1394 = vld [vmem:[%s200 + $0x2350] sm:$0xff]
        %v1395 = vld [vmem:[%s200 + $0x2358] sm:$0xff]
        %v1396 = vld [vmem:[%s200 + $0x2360] sm:$0xff]
        %v1397 = vld [vmem:[%s200 + $0x2368] sm:$0xff]
        %v1398 = vld [vmem:[%s200 + $0x2370] sm:$0xff]
        %v1399 = vld [vmem:[%s200 + $0x2378] sm:$0xff]
        %v1400 = vld [vmem:[%s200 + $0x2380] sm:$0xff]
        %v1401 = vld [vmem:[%s200 + $0x2388] sm:$0xff]
        %v1402 = vld [vmem:[%s200 + $0x2390] sm:$0xff]
        %v1403 = vld [vmem:[%s200 + $0x2398] sm:$0xff]
        %v1404 = vld [vmem:[%s200 + $0x23a0] sm:$0xff]
        %v1405 = vld [vmem:[%s200 + $0x23a8] sm:$0xff]
        %v1406 = vld [vmem:[%s200 + $0x23b0] sm:$0xff]
        %v1407 = vld [vmem:[%s200 + $0x23b8] sm:$0xff]
        %v1408 = vld [vmem:[%s200 + $0x23c0] sm:$0xff]
        %v1409 = vld [vmem:[%s200 + $0x23c8] sm:$0xff]
        %v1410 = vld [vmem:[%s200 + $0x23d0] sm:$0xff]
        %v1411 = vld [vmem:[%s200 + $0x23d8] sm:$0xff]
        %v1412 = vld [vmem:[%s200 + $0x23e0] sm:$0xff]
        %v1413 = vld [vmem:[%s200 + $0x23e8] sm:$0xff]
        %v1414 = vld [vmem:[%s200 + $0x23f0] sm:$0xff]
        %v1415 = vld [vmem:[%s200 + $0x23f8] sm:$0xff]
        %v1416 = vld [vmem:[%s209] sm:$0x7]
        %v1418 = vlaneseq
        %v1419 = vshrl.u32 %v1418, 7
        %v1420 = vsub.s32 0, %v1419
        %v1421 = vrot.slane %v1416, %v1420
        %v1422 = vlaneseq
        %v1423 = vshrl.u32 %v1422, 7
        %v1424 = vsub.s32 1, %v1423
        %v1425 = vrot.slane %v1416, %v1424
        %v1426 = vlaneseq
        %v1427 = vshrl.u32 %v1426, 7
        %v1428 = vsub.s32 2, %v1427
        %v1429 = vrot.slane %v1416, %v1428
        %1433 = vmatprep.subr.mxu0 %v265
        %1434 = vmatpush1.msra.mxu0 %v264
        %1435 = vmatprep.subr.mxu0 %v268
        %1436 = vmatpush1.msra.mxu0 %v267
        %1437 = vmatprep.subr.mxu0 %v271
        %1438 = vmatpush1.msra.mxu0 %v270
        %1439 = vmatprep.subr.mxu0 %v274
        %1440 = vmatpush1.msra.mxu0 %v273
        %1441 = vmatprep.subr.mxu0 %v277
        %1442 = vmatpush1.msra.mxu0 %v276
        %1443 = vmatprep.subr.mxu0 %v280
        %1444 = vmatpush1.msra.mxu0 %v279
        %1445 = vmatprep.subr.mxu0 %v283
        %1446 = vmatpush1.msra.mxu0 %v282
        %1447 = vmatprep.subr.mxu0 %v286
        %1448 = vmatpush1.msra.mxu0 %v285
        %1449 = vmatprep.subr.mxu0 %v289
        %1450 = vmatpush1.msra.mxu0 %v288
        %1451 = vmatprep.subr.mxu0 %v292
        %1452 = vmatpush1.msra.mxu0 %v291
        %1453 = vmatprep.subr.mxu0 %v295
        %1454 = vmatpush1.msra.mxu0 %v294
        %1455 = vmatprep.subr.mxu0 %v298
        %1456 = vmatpush1.msra.mxu0 %v297
        %1457 = vmatprep.subr.mxu0 %v301
        %1458 = vmatpush1.msra.mxu0 %v300
        %1459 = vmatprep.subr.mxu0 %v304
        %1460 = vmatpush1.msra.mxu0 %v303
        %1461 = vmatprep.subr.mxu0 %v307
        %1462 = vmatpush1.msra.mxu0 %v306
        %1463 = vmatprep.subr.mxu0 %v310
        %1464 = vmatpush1.msra.mxu0 %v309
        %1465 = vmatprep.subr.mxu0 %v313
        %1466 = vmatpush1.msra.mxu0 %v312
        %1467 = vmatprep.subr.mxu0 %v316
        %1468 = vmatpush1.msra.mxu0 %v315
        %1469 = vmatprep.subr.mxu0 %v319
        %1470 = vmatpush1.msra.mxu0 %v318
        %1471 = vmatprep.subr.mxu0 %v322
        %1472 = vmatpush1.msra.mxu0 %v321
        %1473 = vmatprep.subr.mxu0 %v325
        %1474 = vmatpush1.msra.mxu0 %v324
        %1475 = vmatprep.subr.mxu0 %v328
        %1476 = vmatpush1.msra.mxu0 %v327
        %1477 = vmatprep.subr.mxu0 %v331
        %1478 = vmatpush1.msra.mxu0 %v330
        %1479 = vmatprep.subr.mxu0 %v334
        %1480 = vmatpush1.msra.mxu0 %v333
        %1481 = vmatprep.subr.mxu0 %v337
        %1482 = vmatpush1.msra.mxu0 %v336
        %1483 = vmatprep.subr.mxu0 %v340
        %1484 = vmatpush1.msra.mxu0 %v339
        %1485 = vmatprep.subr.mxu0 %v343
        %1486 = vmatpush1.msra.mxu0 %v342
        %1487 = vmatprep.subr.mxu0 %v346
        %1488 = vmatpush1.msra.mxu0 %v345
        %1489 = vmatprep.subr.mxu0 %v349
        %1490 = vmatpush1.msra.mxu0 %v348
        %1491 = vmatprep.subr.mxu0 %v352
        %1492 = vmatpush1.msra.mxu0 %v351
        %1493 = vmatprep.subr.mxu0 %v355
        %1494 = vmatpush1.msra.mxu0 %v354
        %1495 = vmatprep.subr.mxu0 %v358
        %1496 = vmatpush1.msra.mxu0 %v357
        %1497 = vmatprep.mubr.f32.mxu0 %v241
        %1498 = vmatmul.mubr.f32.gmra.mrb[0].mxu0 %v240
        %v1499 = vpop.f32.mrb[0].mxu0
        %v1500 = vadd.f32 %v1421, %v1499
        %v1501 = vpop.f32.mrb[0].mxu0
        %v1502 = vadd.f32 %v1425, %v1501
        %1503 = vdwg.mxu0
        %1504 = vmatprep.subr.mxu0 %v361
        %1505 = vmatpush1.msra.mxu0 %v360
        %1506 = vmatprep.subr.mxu0 %v364
        %1507 = vmatpush1.msra.mxu0 %v363
        %1508 = vmatprep.subr.mxu0 %v367
        %1509 = vmatpush1.msra.mxu0 %v366
        %1510 = vmatprep.subr.mxu0 %v370
        %1511 = vmatpush1.msra.mxu0 %v369
        %1512 = vmatprep.subr.mxu0 %v373
        %1513 = vmatpush1.msra.mxu0 %v372
        %1514 = vmatprep.subr.mxu0 %v376
        %1515 = vmatpush1.msra.mxu0 %v375
        %1516 = vmatprep.subr.mxu0 %v379
        %1517 = vmatpush1.msra.mxu0 %v378
        %1518 = vmatprep.subr.mxu0 %v382
        %1519 = vmatpush1.msra.mxu0 %v381
        %1520 = vmatprep.subr.mxu0 %v385
        %1521 = vmatpush1.msra.mxu0 %v384
        %1522 = vmatprep.subr.mxu0 %v388
        %1523 = vmatpush1.msra.mxu0 %v387
        %1524 = vmatprep.subr.mxu0 %v391
        %1525 = vmatpush1.msra.mxu0 %v390
        %1526 = vmatprep.subr.mxu0 %v394
        %1527 = vmatpush1.msra.mxu0 %v393
        %1528 = vmatprep.subr.mxu0 %v397
        %1529 = vmatpush1.msra.mxu0 %v396
        %1530 = vmatprep.subr.mxu0 %v400
        %1531 = vmatpush1.msra.mxu0 %v399
        %1532 = vmatprep.subr.mxu0 %v403
        %1533 = vmatpush1.msra.mxu0 %v402
        %1534 = vmatprep.subr.mxu0 %v406
        %1535 = vmatpush1.msra.mxu0 %v405
        %1536 = vmatprep.subr.mxu0 %v409
        %1537 = vmatpush1.msra.mxu0 %v408
        %1538 = vmatprep.subr.mxu0 %v412
        %1539 = vmatpush1.msra.mxu0 %v411
        %1540 = vmatprep.subr.mxu0 %v415
        %1541 = vmatpush1.msra.mxu0 %v414
        %1542 = vmatprep.subr.mxu0 %v418
        %1543 = vmatpush1.msra.mxu0 %v417
        %1544 = vmatprep.subr.mxu0 %v421
        %1545 = vmatpush1.msra.mxu0 %v420
        %1546 = vmatprep.subr.mxu0 %v424
        %1547 = vmatpush1.msra.mxu0 %v423
        %1548 = vmatprep.subr.mxu0 %v427
        %1549 = vmatpush1.msra.mxu0 %v426
        %1550 = vmatprep.subr.mxu0 %v430
        %1551 = vmatpush1.msra.mxu0 %v429
        %1552 = vmatprep.subr.mxu0 %v433
        %1553 = vmatpush1.msra.mxu0 %v432
        %1554 = vmatprep.subr.mxu0 %v436
        %1555 = vmatpush1.msra.mxu0 %v435
        %1556 = vmatprep.subr.mxu0 %v439
        %1557 = vmatpush1.msra.mxu0 %v438
        %1558 = vmatprep.subr.mxu0 %v442
        %1559 = vmatpush1.msra.mxu0 %v441
        %1560 = vmatprep.subr.mxu0 %v445
        %1561 = vmatpush1.msra.mxu0 %v444
        %1562 = vmatprep.subr.mxu0 %v448
        %1563 = vmatpush1.msra.mxu0 %v447
        %1564 = vmatprep.subr.mxu0 %v451
        %1565 = vmatpush1.msra.mxu0 %v450
        %1566 = vmatprep.subr.mxu0 %v454
        %1567 = vmatpush1.msra.mxu0 %v453
        %1568 = vmatprep.mubr.f32.mxu0 %v243
        %1569 = vmatmul.mubr.f32.gmra.mrb[0].mxu0 %v242
        %v1570 = vpop.f32.mrb[0].mxu0
        %v1571 = vadd.f32 %v1500, %v1570
        %v1572 = vpop.f32.mrb[0].mxu0
        %v1573 = vadd.f32 %v1502, %v1572
        %1574 = vdwg.mxu0
        %1575 = vmatprep.subr.mxu0 %v457
        %1576 = vmatpush1.msra.mxu0 %v456
        %1577 = vmatprep.subr.mxu0 %v460
        %1578 = vmatpush1.msra.mxu0 %v459
        %1579 = vmatprep.subr.mxu0 %v463
        %1580 = vmatpush1.msra.mxu0 %v462
        %1581 = vmatprep.subr.mxu0 %v466
        %1582 = vmatpush1.msra.mxu0 %v465
        %1583 = vmatprep.subr.mxu0 %v469
        %1584 = vmatpush1.msra.mxu0 %v468
        %1585 = vmatprep.subr.mxu0 %v472
        %1586 = vmatpush1.msra.mxu0 %v471
        %1587 = vmatprep.subr.mxu0 %v475
        %1588 = vmatpush1.msra.mxu0 %v474
        %1589 = vmatprep.subr.mxu0 %v478
        %1590 = vmatpush1.msra.mxu0 %v477
        %1591 = vmatprep.subr.mxu0 %v481
        %1592 = vmatpush1.msra.mxu0 %v480
        %1593 = vmatprep.subr.mxu0 %v484
        %1594 = vmatpush1.msra.mxu0 %v483
        %1595 = vmatprep.subr.mxu0 %v487
        %1596 = vmatpush1.msra.mxu0 %v486
        %1597 = vmatprep.subr.mxu0 %v490
        %1598 = vmatpush1.msra.mxu0 %v489
        %1599 = vmatprep.subr.mxu0 %v493
        %1600 = vmatpush1.msra.mxu0 %v492
        %1601 = vmatprep.subr.mxu0 %v496
        %1602 = vmatpush1.msra.mxu0 %v495
        %1603 = vmatprep.subr.mxu0 %v499
        %1604 = vmatpush1.msra.mxu0 %v498
        %1605 = vmatprep.subr.mxu0 %v502
        %1606 = vmatpush1.msra.mxu0 %v501
        %1607 = vmatprep.subr.mxu0 %v505
        %1608 = vmatpush1.msra.mxu0 %v504
        %1609 = vmatprep.subr.mxu0 %v508
        %1610 = vmatpush1.msra.mxu0 %v507
        %1611 = vmatprep.subr.mxu0 %v511
        %1612 = vmatpush1.msra.mxu0 %v510
        %1613 = vmatprep.subr.mxu0 %v514
        %1614 = vmatpush1.msra.mxu0 %v513
        %1615 = vmatprep.subr.mxu0 %v517
        %1616 = vmatpush1.msra.mxu0 %v516
        %1617 = vmatprep.subr.mxu0 %v520
        %1618 = vmatpush1.msra.mxu0 %v519
        %1619 = vmatprep.subr.mxu0 %v523
        %1620 = vmatpush1.msra.mxu0 %v522
        %1621 = vmatprep.subr.mxu0 %v526
        %1622 = vmatpush1.msra.mxu0 %v525
        %1623 = vmatprep.subr.mxu0 %v529
        %1624 = vmatpush1.msra.mxu0 %v528
        %1625 = vmatprep.subr.mxu0 %v532
        %1626 = vmatpush1.msra.mxu0 %v531
        %1627 = vmatprep.subr.mxu0 %v535
        %1628 = vmatpush1.msra.mxu0 %v534
        %1629 = vmatprep.subr.mxu0 %v538
        %1630 = vmatpush1.msra.mxu0 %v537
        %1631 = vmatprep.subr.mxu0 %v541
        %1632 = vmatpush1.msra.mxu0 %v540
        %1633 = vmatprep.subr.mxu0 %v544
        %1634 = vmatpush1.msra.mxu0 %v543
        %1635 = vmatprep.subr.mxu0 %v547
        %1636 = vmatpush1.msra.mxu0 %v546
        %1637 = vmatprep.subr.mxu0 %v550
        %1638 = vmatpush1.msra.mxu0 %v549
        %1639 = vmatprep.mubr.f32.mxu0 %v245
        %1640 = vmatmul.mubr.f32.gmra.mrb[0].mxu0 %v244
        %v1641 = vpop.f32.mrb[0].mxu0
        %v1642 = vadd.f32 %v1571, %v1641
        %v1643 = vpop.f32.mrb[0].mxu0
        %v1644 = vadd.f32 %v1573, %v1643
        %1645 = vdwg.mxu0
        %1646 = vmatprep.subr.mxu0 %v553
        %1647 = vmatpush1.msra.mxu0 %v552
        %1648 = vmatprep.subr.mxu0 %v556
        %1649 = vmatpush1.msra.mxu0 %v555
        %1650 = vmatprep.subr.mxu0 %v559
        %1651 = vmatpush1.msra.mxu0 %v558
        %1652 = vmatprep.subr.mxu0 %v562
        %1653 = vmatpush1.msra.mxu0 %v561
        %1654 = vmatprep.subr.mxu0 %v565
        %1655 = vmatpush1.msra.mxu0 %v564
        %1656 = vmatprep.subr.mxu0 %v568
        %1657 = vmatpush1.msra.mxu0 %v567
        %1658 = vmatprep.subr.mxu0 %v571
        %1659 = vmatpush1.msra.mxu0 %v570
        %1660 = vmatprep.subr.mxu0 %v574
        %1661 = vmatpush1.msra.mxu0 %v573
        %1662 = vmatprep.subr.mxu0 %v577
        %1663 = vmatpush1.msra.mxu0 %v576
        %1664 = vmatprep.subr.mxu0 %v580
        %1665 = vmatpush1.msra.mxu0 %v579
        %1666 = vmatprep.subr.mxu0 %v583
        %1667 = vmatpush1.msra.mxu0 %v582
        %1668 = vmatprep.subr.mxu0 %v586
        %1669 = vmatpush1.msra.mxu0 %v585
        %1670 = vmatprep.subr.mxu0 %v589
        %1671 = vmatpush1.msra.mxu0 %v588
        %1672 = vmatprep.subr.mxu0 %v592
        %1673 = vmatpush1.msra.mxu0 %v591
        %1674 = vmatprep.subr.mxu0 %v595
        %1675 = vmatpush1.msra.mxu0 %v594
        %1676 = vmatprep.subr.mxu0 %v598
        %1677 = vmatpush1.msra.mxu0 %v597
        %1678 = vmatprep.subr.mxu0 %v601
        %1679 = vmatpush1.msra.mxu0 %v600
        %1680 = vmatprep.subr.mxu0 %v604
        %1681 = vmatpush1.msra.mxu0 %v603
        %1682 = vmatprep.subr.mxu0 %v607
        %1683 = vmatpush1.msra.mxu0 %v606
        %1684 = vmatprep.subr.mxu0 %v610
        %1685 = vmatpush1.msra.mxu0 %v609
        %1686 = vmatprep.subr.mxu0 %v613
        %1687 = vmatpush1.msra.mxu0 %v612
        %1688 = vmatprep.subr.mxu0 %v616
        %1689 = vmatpush1.msra.mxu0 %v615
        %1690 = vmatprep.subr.mxu0 %v619
        %1691 = vmatpush1.msra.mxu0 %v618
        %1692 = vmatprep.subr.mxu0 %v622
        %1693 = vmatpush1.msra.mxu0 %v621
        %1694 = vmatprep.subr.mxu0 %v625
        %1695 = vmatpush1.msra.mxu0 %v624
        %1696 = vmatprep.subr.mxu0 %v628
        %1697 = vmatpush1.msra.mxu0 %v627
        %1698 = vmatprep.subr.mxu0 %v631
        %1699 = vmatpush1.msra.mxu0 %v630
        %1700 = vmatprep.subr.mxu0 %v634
        %1701 = vmatpush1.msra.mxu0 %v633
        %1702 = vmatprep.subr.mxu0 %v637
        %1703 = vmatpush1.msra.mxu0 %v636
        %1704 = vmatprep.subr.mxu0 %v640
        %1705 = vmatpush1.msra.mxu0 %v639
        %1706 = vmatprep.subr.mxu0 %v643
        %1707 = vmatpush1.msra.mxu0 %v642
        %1708 = vmatprep.subr.mxu0 %v646
        %1709 = vmatpush1.msra.mxu0 %v645
        %1710 = vmatprep.mubr.f32.mxu0 %v247
        %1711 = vmatmul.mubr.f32.gmra.mrb[0].mxu0 %v246
        %v1712 = vpop.f32.mrb[0].mxu0
        %v1713 = vadd.f32 %v1642, %v1712
        %v1714 = vpop.f32.mrb[0].mxu0
        %v1715 = vadd.f32 %v1644, %v1714
        %1716 = vdwg.mxu0
        %1717 = vmatprep.subr.mxu0 %v649
        %1718 = vmatpush1.msra.mxu0 %v648
        %1719 = vmatprep.subr.mxu0 %v652
        %1720 = vmatpush1.msra.mxu0 %v651
        %1721 = vmatprep.subr.mxu0 %v655
        %1722 = vmatpush1.msra.mxu0 %v654
        %1723 = vmatprep.subr.mxu0 %v658
        %1724 = vmatpush1.msra.mxu0 %v657
        %1725 = vmatprep.subr.mxu0 %v661
        %1726 = vmatpush1.msra.mxu0 %v660
        %1727 = vmatprep.subr.mxu0 %v664
        %1728 = vmatpush1.msra.mxu0 %v663
        %1729 = vmatprep.subr.mxu0 %v667
        %1730 = vmatpush1.msra.mxu0 %v666
        %1731 = vmatprep.subr.mxu0 %v670
        %1732 = vmatpush1.msra.mxu0 %v669
        %1733 = vmatprep.subr.mxu0 %v673
        %1734 = vmatpush1.msra.mxu0 %v672
        %1735 = vmatprep.subr.mxu0 %v676
        %1736 = vmatpush1.msra.mxu0 %v675
        %1737 = vmatprep.subr.mxu0 %v679
        %1738 = vmatpush1.msra.mxu0 %v678
        %1739 = vmatprep.subr.mxu0 %v682
        %1740 = vmatpush1.msra.mxu0 %v681
        %1741 = vmatprep.subr.mxu0 %v685
        %1742 = vmatpush1.msra.mxu0 %v684
        %1743 = vmatprep.subr.mxu0 %v688
        %1744 = vmatpush1.msra.mxu0 %v687
        %1745 = vmatprep.subr.mxu0 %v691
        %1746 = vmatpush1.msra.mxu0 %v690
        %1747 = vmatprep.subr.mxu0 %v694
        %1748 = vmatpush1.msra.mxu0 %v693
        %1749 = vmatprep.subr.mxu0 %v697
        %1750 = vmatpush1.msra.mxu0 %v696
        %1751 = vmatprep.subr.mxu0 %v700
        %1752 = vmatpush1.msra.mxu0 %v699
        %1753 = vmatprep.subr.mxu0 %v703
        %1754 = vmatpush1.msra.mxu0 %v702
        %1755 = vmatprep.subr.mxu0 %v706
        %1756 = vmatpush1.msra.mxu0 %v705
        %1757 = vmatprep.subr.mxu0 %v709
        %1758 = vmatpush1.msra.mxu0 %v708
        %1759 = vmatprep.subr.mxu0 %v712
        %1760 = vmatpush1.msra.mxu0 %v711
        %1761 = vmatprep.subr.mxu0 %v715
        %1762 = vmatpush1.msra.mxu0 %v714
        %1763 = vmatprep.subr.mxu0 %v718
        %1764 = vmatpush1.msra.mxu0 %v717
        %1765 = vmatprep.subr.mxu0 %v721
        %1766 = vmatpush1.msra.mxu0 %v720
        %1767 = vmatprep.subr.mxu0 %v724
        %1768 = vmatpush1.msra.mxu0 %v723
        %1769 = vmatprep.subr.mxu0 %v727
        %1770 = vmatpush1.msra.mxu0 %v726
        %1771 = vmatprep.subr.mxu0 %v730
        %1772 = vmatpush1.msra.mxu0 %v729
        %1773 = vmatprep.subr.mxu0 %v733
        %1774 = vmatpush1.msra.mxu0 %v732
        %1775 = vmatprep.subr.mxu0 %v736
        %1776 = vmatpush1.msra.mxu0 %v735
        %1777 = vmatprep.subr.mxu0 %v739
        %1778 = vmatpush1.msra.mxu0 %v738
        %1779 = vmatprep.subr.mxu0 %v742
        %1780 = vmatpush1.msra.mxu0 %v741
        %1781 = vmatprep.mubr.f32.mxu0 %v249
        %1782 = vmatmul.mubr.f32.gmra.mrb[0].mxu0 %v248
        %v1783 = vpop.f32.mrb[0].mxu0
        %v1784 = vadd.f32 %v1713, %v1783
        %v1785 = vpop.f32.mrb[0].mxu0
        %v1786 = vadd.f32 %v1715, %v1785
        %1787 = vdwg.mxu0
        %1788 = vmatprep.subr.mxu0 %v745
        %1789 = vmatpush1.msra.mxu0 %v744
        %1790 = vmatprep.subr.mxu0 %v748
        %1791 = vmatpush1.msra.mxu0 %v747
        %1792 = vmatprep.subr.mxu0 %v751
        %1793 = vmatpush1.msra.mxu0 %v750
        %1794 = vmatprep.subr.mxu0 %v754
        %1795 = vmatpush1.msra.mxu0 %v753
        %1796 = vmatprep.subr.mxu0 %v757
        %1797 = vmatpush1.msra.mxu0 %v756
        %1798 = vmatprep.subr.mxu0 %v760
        %1799 = vmatpush1.msra.mxu0 %v759
        %1800 = vmatprep.subr.mxu0 %v763
        %1801 = vmatpush1.msra.mxu0 %v762
        %1802 = vmatprep.subr.mxu0 %v766
        %1803 = vmatpush1.msra.mxu0 %v765
        %1804 = vmatprep.subr.mxu0 %v769
        %1805 = vmatpush1.msra.mxu0 %v768
        %1806 = vmatprep.subr.mxu0 %v772
        %1807 = vmatpush1.msra.mxu0 %v771
        %1808 = vmatprep.subr.mxu0 %v775
        %1809 = vmatpush1.msra.mxu0 %v774
        %1810 = vmatprep.subr.mxu0 %v778
        %1811 = vmatpush1.msra.mxu0 %v777
        %1812 = vmatprep.subr.mxu0 %v781
        %1813 = vmatpush1.msra.mxu0 %v780
        %1814 = vmatprep.subr.mxu0 %v784
        %1815 = vmatpush1.msra.mxu0 %v783
        %1816 = vmatprep.subr.mxu0 %v787
        %1817 = vmatpush1.msra.mxu0 %v786
        %1818 = vmatprep.subr.mxu0 %v790
        %1819 = vmatpush1.msra.mxu0 %v789
        %1820 = vmatprep.subr.mxu0 %v793
        %1821 = vmatpush1.msra.mxu0 %v792
        %1822 = vmatprep.subr.mxu0 %v796
        %1823 = vmatpush1.msra.mxu0 %v795
        %1824 = vmatprep.subr.mxu0 %v799
        %1825 = vmatpush1.msra.mxu0 %v798
        %1826 = vmatprep.subr.mxu0 %v802
        %1827 = vmatpush1.msra.mxu0 %v801
        %1828 = vmatprep.subr.mxu0 %v805
        %1829 = vmatpush1.msra.mxu0 %v804
        %1830 = vmatprep.subr.mxu0 %v808
        %1831 = vmatpush1.msra.mxu0 %v807
        %1832 = vmatprep.subr.mxu0 %v811
        %1833 = vmatpush1.msra.mxu0 %v810
        %1834 = vmatprep.subr.mxu0 %v814
        %1835 = vmatpush1.msra.mxu0 %v813
        %1836 = vmatprep.subr.mxu0 %v817
        %1837 = vmatpush1.msra.mxu0 %v816
        %1838 = vmatprep.subr.mxu0 %v820
        %1839 = vmatpush1.msra.mxu0 %v819
        %1840 = vmatprep.subr.mxu0 %v823
        %1841 = vmatpush1.msra.mxu0 %v822
        %1842 = vmatprep.subr.mxu0 %v826
        %1843 = vmatpush1.msra.mxu0 %v825
        %1844 = vmatprep.subr.mxu0 %v829
        %1845 = vmatpush1.msra.mxu0 %v828
        %1846 = vmatprep.subr.mxu0 %v832
        %1847 = vmatpush1.msra.mxu0 %v831
        %1848 = vmatprep.subr.mxu0 %v835
        %1849 = vmatpush1.msra.mxu0 %v834
        %1850 = vmatprep.subr.mxu0 %v838
        %1851 = vmatpush1.msra.mxu0 %v837
        %1852 = vmatprep.mubr.f32.mxu0 %v251
        %1853 = vmatmul.mubr.f32.gmra.mrb[0].mxu0 %v250
        %v1854 = vpop.f32.mrb[0].mxu0
        %v1855 = vadd.f32 %v1784, %v1854
        %v1856 = vpop.f32.mrb[0].mxu0
        %v1857 = vadd.f32 %v1786, %v1856
        %1858 = vdwg.mxu0
        %1859 = vmatprep.subr.mxu0 %v841
        %1860 = vmatpush1.msra.mxu0 %v840
        %1861 = vmatprep.subr.mxu0 %v844
        %1862 = vmatpush1.msra.mxu0 %v843
        %1863 = vmatprep.subr.mxu0 %v847
        %1864 = vmatpush1.msra.mxu0 %v846
        %1865 = vmatprep.subr.mxu0 %v850
        %1866 = vmatpush1.msra.mxu0 %v849
        %1867 = vmatprep.subr.mxu0 %v853
        %1868 = vmatpush1.msra.mxu0 %v852
        %1869 = vmatprep.subr.mxu0 %v856
        %1870 = vmatpush1.msra.mxu0 %v855
        %1871 = vmatprep.subr.mxu0 %v859
        %1872 = vmatpush1.msra.mxu0 %v858
        %1873 = vmatprep.subr.mxu0 %v862
        %1874 = vmatpush1.msra.mxu0 %v861
        %1875 = vmatprep.subr.mxu0 %v865
        %1876 = vmatpush1.msra.mxu0 %v864
        %1877 = vmatprep.subr.mxu0 %v868
        %1878 = vmatpush1.msra.mxu0 %v867
        %1879 = vmatprep.subr.mxu0 %v871
        %1880 = vmatpush1.msra.mxu0 %v870
        %1881 = vmatprep.subr.mxu0 %v874
        %1882 = vmatpush1.msra.mxu0 %v873
        %1883 = vmatprep.subr.mxu0 %v877
        %1884 = vmatpush1.msra.mxu0 %v876
        %1885 = vmatprep.subr.mxu0 %v880
        %1886 = vmatpush1.msra.mxu0 %v879
        %1887 = vmatprep.subr.mxu0 %v883
        %1888 = vmatpush1.msra.mxu0 %v882
        %1889 = vmatprep.subr.mxu0 %v886
        %1890 = vmatpush1.msra.mxu0 %v885
        %1891 = vmatprep.subr.mxu0 %v889
        %1892 = vmatpush1.msra.mxu0 %v888
        %1893 = vmatprep.subr.mxu0 %v892
        %1894 = vmatpush1.msra.mxu0 %v891
        %1895 = vmatprep.subr.mxu0 %v895
        %1896 = vmatpush1.msra.mxu0 %v894
        %1897 = vmatprep.subr.mxu0 %v898
        %1898 = vmatpush1.msra.mxu0 %v897
        %1899 = vmatprep.subr.mxu0 %v901
        %1900 = vmatpush1.msra.mxu0 %v900
        %1901 = vmatprep.subr.mxu0 %v904
        %1902 = vmatpush1.msra.mxu0 %v903
        %1903 = vmatprep.subr.mxu0 %v907
        %1904 = vmatpush1.msra.mxu0 %v906
        %1905 = vmatprep.subr.mxu0 %v910
        %1906 = vmatpush1.msra.mxu0 %v909
        %1907 = vmatprep.subr.mxu0 %v913
        %1908 = vmatpush1.msra.mxu0 %v912
        %1909 = vmatprep.subr.mxu0 %v916
        %1910 = vmatpush1.msra.mxu0 %v915
        %1911 = vmatprep.subr.mxu0 %v919
        %1912 = vmatpush1.msra.mxu0 %v918
        %1913 = vmatprep.subr.mxu0 %v922
        %1914 = vmatpush1.msra.mxu0 %v921
        %1915 = vmatprep.subr.mxu0 %v925
        %1916 = vmatpush1.msra.mxu0 %v924
        %1917 = vmatprep.subr.mxu0 %v928
        %1918 = vmatpush1.msra.mxu0 %v927
        %1919 = vmatprep.subr.mxu0 %v931
        %1920 = vmatpush1.msra.mxu0 %v930
        %1921 = vmatprep.subr.mxu0 %v934
        %1922 = vmatpush1.msra.mxu0 %v933
        %1923 = vmatprep.mubr.f32.mxu0 %v253
        %1924 = vmatmul.mubr.f32.gmra.mrb[0].mxu0 %v252
        %v1925 = vpop.f32.mrb[0].mxu0
        %v1926 = vadd.f32 %v1855, %v1925
        %v1927 = vpop.f32.mrb[0].mxu0
        %v1928 = vadd.f32 %v1857, %v1927
        %1929 = vdwg.mxu0
        %1930 = vmatprep.subr.mxu0 %v937
        %1931 = vmatpush1.msra.mxu0 %v936
        %1932 = vmatprep.subr.mxu0 %v940
        %1933 = vmatpush1.msra.mxu0 %v939
        %1934 = vmatprep.subr.mxu0 %v943
        %1935 = vmatpush1.msra.mxu0 %v942
        %1936 = vmatprep.subr.mxu0 %v946
        %1937 = vmatpush1.msra.mxu0 %v945
        %1938 = vmatprep.subr.mxu0 %v949
        %1939 = vmatpush1.msra.mxu0 %v948
        %1940 = vmatprep.subr.mxu0 %v952
        %1941 = vmatpush1.msra.mxu0 %v951
        %1942 = vmatprep.subr.mxu0 %v955
        %1943 = vmatpush1.msra.mxu0 %v954
        %1944 = vmatprep.subr.mxu0 %v958
        %1945 = vmatpush1.msra.mxu0 %v957
        %1946 = vmatprep.subr.mxu0 %v961
        %1947 = vmatpush1.msra.mxu0 %v960
        %1948 = vmatprep.subr.mxu0 %v964
        %1949 = vmatpush1.msra.mxu0 %v963
        %1950 = vmatprep.subr.mxu0 %v967
        %1951 = vmatpush1.msra.mxu0 %v966
        %1952 = vmatprep.subr.mxu0 %v970
        %1953 = vmatpush1.msra.mxu0 %v969
        %1954 = vmatprep.subr.mxu0 %v973
        %1955 = vmatpush1.msra.mxu0 %v972
        %1956 = vmatprep.subr.mxu0 %v976
        %1957 = vmatpush1.msra.mxu0 %v975
        %1958 = vmatprep.subr.mxu0 %v979
        %1959 = vmatpush1.msra.mxu0 %v978
        %1960 = vmatprep.subr.mxu0 %v982
        %1961 = vmatpush1.msra.mxu0 %v981
        %1962 = vmatprep.subr.mxu0 %v985
        %1963 = vmatpush1.msra.mxu0 %v984
        %1964 = vmatprep.subr.mxu0 %v988
        %1965 = vmatpush1.msra.mxu0 %v987
        %1966 = vmatprep.subr.mxu0 %v991
        %1967 = vmatpush1.msra.mxu0 %v990
        %1968 = vmatprep.subr.mxu0 %v994
        %1969 = vmatpush1.msra.mxu0 %v993
        %1970 = vmatprep.subr.mxu0 %v997
        %1971 = vmatpush1.msra.mxu0 %v996
        %1972 = vmatprep.subr.mxu0 %v1000
        %1973 = vmatpush1.msra.mxu0 %v999
        %1974 = vmatprep.subr.mxu0 %v1003
        %1975 = vmatpush1.msra.mxu0 %v1002
        %1976 = vmatprep.subr.mxu0 %v1006
        %1977 = vmatpush1.msra.mxu0 %v1005
        %1978 = vmatprep.subr.mxu0 %v1009
        %1979 = vmatpush1.msra.mxu0 %v1008
        %1980 = vmatprep.subr.mxu0 %v1012
        %1981 = vmatpush1.msra.mxu0 %v1011
        %1982 = vmatprep.subr.mxu0 %v1015
        %1983 = vmatpush1.msra.mxu0 %v1014
        %1984 = vmatprep.subr.mxu0 %v1018
        %1985 = vmatpush1.msra.mxu0 %v1017
        %1986 = vmatprep.subr.mxu0 %v1021
        %1987 = vmatpush1.msra.mxu0 %v1020
        %1988 = vmatprep.subr.mxu0 %v1024
        %1989 = vmatpush1.msra.mxu0 %v1023
        %1990 = vmatprep.subr.mxu0 %v1027
        %1991 = vmatpush1.msra.mxu0 %v1026
        %1992 = vmatprep.subr.mxu0 %v1030
        %1993 = vmatpush1.msra.mxu0 %v1029
        %1994 = vmatprep.mubr.f32.mxu0 %v255
        %1995 = vmatmul.mubr.f32.gmra.mrb[0].mxu0 %v254
        %v1996 = vpop.f32.mrb[0].mxu0
        %v1997 = vadd.f32 %v1926, %v1996
        %v1998 = vpop.f32.mrb[0].mxu0
        %v1999 = vadd.f32 %v1928, %v1998
        %2000 = vdwg.mxu0
        %2001 = vmatprep.subr.mxu0 %v1033
        %2002 = vmatpush1.msra.mxu0 %v1032
        %2003 = vmatprep.subr.mxu0 %v1036
        %2004 = vmatpush1.msra.mxu0 %v1035
        %2005 = vmatprep.subr.mxu0 %v1039
        %2006 = vmatpush1.msra.mxu0 %v1038
        %2007 = vmatprep.subr.mxu0 %v1042
        %2008 = vmatpush1.msra.mxu0 %v1041
        %2009 = vmatprep.subr.mxu0 %v1045
        %2010 = vmatpush1.msra.mxu0 %v1044
        %2011 = vmatprep.subr.mxu0 %v1048
        %2012 = vmatpush1.msra.mxu0 %v1047
        %2013 = vmatprep.subr.mxu0 %v1051
        %2014 = vmatpush1.msra.mxu0 %v1050
        %2015 = vmatprep.subr.mxu0 %v1054
        %2016 = vmatpush1.msra.mxu0 %v1053
        %2017 = vmatprep.subr.mxu0 %v1057
        %2018 = vmatpush1.msra.mxu0 %v1056
        %2019 = vmatprep.subr.mxu0 %v1060
        %2020 = vmatpush1.msra.mxu0 %v1059
        %2021 = vmatprep.subr.mxu0 %v1063
        %2022 = vmatpush1.msra.mxu0 %v1062
        %2023 = vmatprep.subr.mxu0 %v1066
        %2024 = vmatpush1.msra.mxu0 %v1065
        %2025 = vmatprep.subr.mxu0 %v1069
        %2026 = vmatpush1.msra.mxu0 %v1068
        %2027 = vmatprep.subr.mxu0 %v1072
        %2028 = vmatpush1.msra.mxu0 %v1071
        %2029 = vmatprep.subr.mxu0 %v1075
        %2030 = vmatpush1.msra.mxu0 %v1074
        %2031 = vmatprep.subr.mxu0 %v1078
        %2032 = vmatpush1.msra.mxu0 %v1077
        %2033 = vmatprep.subr.mxu0 %v1081
        %2034 = vmatpush1.msra.mxu0 %v1080
        %2035 = vmatprep.subr.mxu0 %v1084
        %2036 = vmatpush1.msra.mxu0 %v1083
        %2037 = vmatprep.subr.mxu0 %v1087
        %2038 = vmatpush1.msra.mxu0 %v1086
        %2039 = vmatprep.subr.mxu0 %v1090
        %2040 = vmatpush1.msra.mxu0 %v1089
        %2041 = vmatprep.subr.mxu0 %v1093
        %2042 = vmatpush1.msra.mxu0 %v1092
        %2043 = vmatprep.subr.mxu0 %v1096
        %2044 = vmatpush1.msra.mxu0 %v1095
        %2045 = vmatprep.subr.mxu0 %v1099
        %2046 = vmatpush1.msra.mxu0 %v1098
        %2047 = vmatprep.subr.mxu0 %v1102
        %2048 = vmatpush1.msra.mxu0 %v1101
        %2049 = vmatprep.subr.mxu0 %v1105
        %2050 = vmatpush1.msra.mxu0 %v1104
        %2051 = vmatprep.subr.mxu0 %v1108
        %2052 = vmatpush1.msra.mxu0 %v1107
        %2053 = vmatprep.subr.mxu0 %v1111
        %2054 = vmatpush1.msra.mxu0 %v1110
        %2055 = vmatprep.subr.mxu0 %v1114
        %2056 = vmatpush1.msra.mxu0 %v1113
        %2057 = vmatprep.subr.mxu0 %v1117
        %2058 = vmatpush1.msra.mxu0 %v1116
        %2059 = vmatprep.subr.mxu0 %v1120
        %2060 = vmatpush1.msra.mxu0 %v1119
        %2061 = vmatprep.subr.mxu0 %v1123
        %2062 = vmatpush1.msra.mxu0 %v1122
        %2063 = vmatprep.subr.mxu0 %v1126
        %2064 = vmatpush1.msra.mxu0 %v1125
        %2065 = vmatprep.mubr.f32.mxu0 %v257
        %2066 = vmatmul.mubr.f32.gmra.mrb[0].mxu0 %v256
        %v2067 = vpop.f32.mrb[0].mxu0
        %v2068 = vadd.f32 %v1997, %v2067
        %v2069 = vpop.f32.mrb[0].mxu0
        %v2070 = vadd.f32 %v1999, %v2069
        %2071 = vdwg.mxu0
        %2072 = vmatprep.subr.mxu0 %v1129
        %2073 = vmatpush1.msra.mxu0 %v1128
        %2074 = vmatprep.subr.mxu0 %v1132
        %2075 = vmatpush1.msra.mxu0 %v1131
        %2076 = vmatprep.subr.mxu0 %v1135
        %2077 = vmatpush1.msra.mxu0 %v1134
        %2078 = vmatprep.subr.mxu0 %v1138
        %2079 = vmatpush1.msra.mxu0 %v1137
        %2080 = vmatprep.subr.mxu0 %v1141
        %2081 = vmatpush1.msra.mxu0 %v1140
        %2082 = vmatprep.subr.mxu0 %v1144
        %2083 = vmatpush1.msra.mxu0 %v1143
        %2084 = vmatprep.subr.mxu0 %v1147
        %2085 = vmatpush1.msra.mxu0 %v1146
        %2086 = vmatprep.subr.mxu0 %v1150
        %2087 = vmatpush1.msra.mxu0 %v1149
        %2088 = vmatprep.subr.mxu0 %v1153
        %2089 = vmatpush1.msra.mxu0 %v1152
        %2090 = vmatprep.subr.mxu0 %v1156
        %2091 = vmatpush1.msra.mxu0 %v1155
        %2092 = vmatprep.subr.mxu0 %v1159
        %2093 = vmatpush1.msra.mxu0 %v1158
        %2094 = vmatprep.subr.mxu0 %v1162
        %2095 = vmatpush1.msra.mxu0 %v1161
        %2096 = vmatprep.subr.mxu0 %v1165
        %2097 = vmatpush1.msra.mxu0 %v1164
        %2098 = vmatprep.subr.mxu0 %v1168
        %2099 = vmatpush1.msra.mxu0 %v1167
        %2100 = vmatprep.subr.mxu0 %v1171
        %2101 = vmatpush1.msra.mxu0 %v1170
        %2102 = vmatprep.subr.mxu0 %v1174
        %2103 = vmatpush1.msra.mxu0 %v1173
        %2104 = vmatprep.subr.mxu0 %v1177
        %2105 = vmatpush1.msra.mxu0 %v1176
        %2106 = vmatprep.subr.mxu0 %v1180
        %2107 = vmatpush1.msra.mxu0 %v1179
        %2108 = vmatprep.subr.mxu0 %v1183
        %2109 = vmatpush1.msra.mxu0 %v1182
        %2110 = vmatprep.subr.mxu0 %v1186
        %2111 = vmatpush1.msra.mxu0 %v1185
        %2112 = vmatprep.subr.mxu0 %v1189
        %2113 = vmatpush1.msra.mxu0 %v1188
        %2114 = vmatprep.subr.mxu0 %v1192
        %2115 = vmatpush1.msra.mxu0 %v1191
        %2116 = vmatprep.subr.mxu0 %v1195
        %2117 = vmatpush1.msra.mxu0 %v1194
        %2118 = vmatprep.subr.mxu0 %v1198
        %2119 = vmatpush1.msra.mxu0 %v1197
        %2120 = vmatprep.subr.mxu0 %v1201
        %2121 = vmatpush1.msra.mxu0 %v1200
        %2122 = vmatprep.subr.mxu0 %v1204
        %2123 = vmatpush1.msra.mxu0 %v1203
        %2124 = vmatprep.subr.mxu0 %v1207
        %2125 = vmatpush1.msra.mxu0 %v1206
        %2126 = vmatprep.subr.mxu0 %v1210
        %2127 = vmatpush1.msra.mxu0 %v1209
        %2128 = vmatprep.subr.mxu0 %v1213
        %2129 = vmatpush1.msra.mxu0 %v1212
        %2130 = vmatprep.subr.mxu0 %v1216
        %2131 = vmatpush1.msra.mxu0 %v1215
        %2132 = vmatprep.subr.mxu0 %v1219
        %2133 = vmatpush1.msra.mxu0 %v1218
        %2134 = vmatprep.subr.mxu0 %v1222
        %2135 = vmatpush1.msra.mxu0 %v1221
        %2136 = vmatprep.mubr.f32.mxu0 %v259
        %2137 = vmatmul.mubr.f32.gmra.mrb[0].mxu0 %v258
        %v2138 = vpop.f32.mrb[0].mxu0
        %v2139 = vadd.f32 %v2068, %v2138
        %v2140 = vpop.f32.mrb[0].mxu0
        %v2141 = vadd.f32 %v2070, %v2140
        %2142 = vdwg.mxu0
        %2143 = vmatprep.subr.mxu0 %v1225
        %2144 = vmatpush1.msra.mxu0 %v1224
        %2145 = vmatprep.subr.mxu0 %v1228
        %2146 = vmatpush1.msra.mxu0 %v1227
        %2147 = vmatprep.subr.mxu0 %v1231
        %2148 = vmatpush1.msra.mxu0 %v1230
        %2149 = vmatprep.subr.mxu0 %v1234
        %2150 = vmatpush1.msra.mxu0 %v1233
        %2151 = vmatprep.subr.mxu0 %v1237
        %2152 = vmatpush1.msra.mxu0 %v1236
        %2153 = vmatprep.subr.mxu0 %v1240
        %2154 = vmatpush1.msra.mxu0 %v1239
        %2155 = vmatprep.subr.mxu0 %v1243
        %2156 = vmatpush1.msra.mxu0 %v1242
        %2157 = vmatprep.subr.mxu0 %v1246
        %2158 = vmatpush1.msra.mxu0 %v1245
        %2159 = vmatprep.subr.mxu0 %v1249
        %2160 = vmatpush1.msra.mxu0 %v1248
        %2161 = vmatprep.subr.mxu0 %v1252
        %2162 = vmatpush1.msra.mxu0 %v1251
        %2163 = vmatprep.subr.mxu0 %v1255
        %2164 = vmatpush1.msra.mxu0 %v1254
        %2165 = vmatprep.subr.mxu0 %v1258
        %2166 = vmatpush1.msra.mxu0 %v1257
        %2167 = vmatprep.subr.mxu0 %v1261
        %2168 = vmatpush1.msra.mxu0 %v1260
        %2169 = vmatprep.subr.mxu0 %v1264
        %2170 = vmatpush1.msra.mxu0 %v1263
        %2171 = vmatprep.subr.mxu0 %v1267
        %2172 = vmatpush1.msra.mxu0 %v1266
        %2173 = vmatprep.subr.mxu0 %v1270
        %2174 = vmatpush1.msra.mxu0 %v1269
        %2175 = vmatprep.subr.mxu0 %v1273
        %2176 = vmatpush1.msra.mxu0 %v1272
        %2177 = vmatprep.subr.mxu0 %v1276
        %2178 = vmatpush1.msra.mxu0 %v1275
        %2179 = vmatprep.subr.mxu0 %v1279
        %2180 = vmatpush1.msra.mxu0 %v1278
        %2181 = vmatprep.subr.mxu0 %v1282
        %2182 = vmatpush1.msra.mxu0 %v1281
        %2183 = vmatprep.subr.mxu0 %v1285
        %2184 = vmatpush1.msra.mxu0 %v1284
        %2185 = vmatprep.subr.mxu0 %v1288
        %2186 = vmatpush1.msra.mxu0 %v1287
        %2187 = vmatprep.subr.mxu0 %v1291
        %2188 = vmatpush1.msra.mxu0 %v1290
        %2189 = vmatprep.subr.mxu0 %v1294
        %2190 = vmatpush1.msra.mxu0 %v1293
        %2191 = vmatprep.subr.mxu0 %v1297
        %2192 = vmatpush1.msra.mxu0 %v1296
        %2193 = vmatprep.subr.mxu0 %v1300
        %2194 = vmatpush1.msra.mxu0 %v1299
        %2195 = vmatprep.subr.mxu0 %v1303
        %2196 = vmatpush1.msra.mxu0 %v1302
        %2197 = vmatprep.subr.mxu0 %v1306
        %2198 = vmatpush1.msra.mxu0 %v1305
        %2199 = vmatprep.subr.mxu0 %v1309
        %2200 = vmatpush1.msra.mxu0 %v1308
        %2201 = vmatprep.subr.mxu0 %v1312
        %2202 = vmatpush1.msra.mxu0 %v1311
        %2203 = vmatprep.subr.mxu0 %v1315
        %2204 = vmatpush1.msra.mxu0 %v1314
        %2205 = vmatprep.subr.mxu0 %v1318
        %2206 = vmatpush1.msra.mxu0 %v1317
        %2207 = vmatprep.mubr.f32.mxu0 %v261
        %2208 = vmatmul.mubr.f32.gmra.mrb[0].mxu0 %v260
        %v2209 = vpop.f32.mrb[0].mxu0
        %v2210 = vadd.f32 %v2139, %v2209
        %v2211 = vpop.f32.mrb[0].mxu0
        %v2212 = vadd.f32 %v2141, %v2211
        %2213 = vdwg.mxu0
        %2214 = vmatprep.subr.mxu0 %v1321
        %2215 = vmatpush1.msra.mxu0 %v1320
        %2216 = vmatprep.subr.mxu0 %v1324
        %2217 = vmatpush1.msra.mxu0 %v1323
        %2218 = vmatprep.subr.mxu0 %v1327
        %2219 = vmatpush1.msra.mxu0 %v1326
        %2220 = vmatprep.subr.mxu0 %v1330
        %2221 = vmatpush1.msra.mxu0 %v1329
        %2222 = vmatprep.subr.mxu0 %v1333
        %2223 = vmatpush1.msra.mxu0 %v1332
        %2224 = vmatprep.subr.mxu0 %v1336
        %2225 = vmatpush1.msra.mxu0 %v1335
        %2226 = vmatprep.subr.mxu0 %v1339
        %2227 = vmatpush1.msra.mxu0 %v1338
        %2228 = vmatprep.subr.mxu0 %v1342
        %2229 = vmatpush1.msra.mxu0 %v1341
        %2230 = vmatprep.subr.mxu0 %v1345
        %2231 = vmatpush1.msra.mxu0 %v1344
        %2232 = vmatprep.subr.mxu0 %v1348
        %2233 = vmatpush1.msra.mxu0 %v1347
        %2234 = vmatprep.subr.mxu0 %v1351
        %2235 = vmatpush1.msra.mxu0 %v1350
        %2236 = vmatprep.subr.mxu0 %v1354
        %2237 = vmatpush1.msra.mxu0 %v1353
        %2238 = vmatprep.subr.mxu0 %v1357
        %2239 = vmatpush1.msra.mxu0 %v1356
        %2240 = vmatprep.subr.mxu0 %v1360
        %2241 = vmatpush1.msra.mxu0 %v1359
        %2242 = vmatprep.subr.mxu0 %v1363
        %2243 = vmatpush1.msra.mxu0 %v1362
        %2244 = vmatprep.subr.mxu0 %v1366
        %2245 = vmatpush1.msra.mxu0 %v1365
        %2246 = vmatprep.subr.mxu0 %v1369
        %2247 = vmatpush1.msra.mxu0 %v1368
        %2248 = vmatprep.subr.mxu0 %v1372
        %2249 = vmatpush1.msra.mxu0 %v1371
        %2250 = vmatprep.subr.mxu0 %v1375
        %2251 = vmatpush1.msra.mxu0 %v1374
        %2252 = vmatprep.subr.mxu0 %v1378
        %2253 = vmatpush1.msra.mxu0 %v1377
        %2254 = vmatprep.subr.mxu0 %v1381
        %2255 = vmatpush1.msra.mxu0 %v1380
        %2256 = vmatprep.subr.mxu0 %v1384
        %2257 = vmatpush1.msra.mxu0 %v1383
        %2258 = vmatprep.subr.mxu0 %v1387
        %2259 = vmatpush1.msra.mxu0 %v1386
        %2260 = vmatprep.subr.mxu0 %v1390
        %2261 = vmatpush1.msra.mxu0 %v1389
        %2262 = vmatprep.subr.mxu0 %v1393
        %2263 = vmatpush1.msra.mxu0 %v1392
        %2264 = vmatprep.subr.mxu0 %v1396
        %2265 = vmatpush1.msra.mxu0 %v1395
        %2266 = vmatprep.subr.mxu0 %v1399
        %2267 = vmatpush1.msra.mxu0 %v1398
        %2268 = vmatprep.subr.mxu0 %v1402
        %2269 = vmatpush1.msra.mxu0 %v1401
        %2270 = vmatprep.subr.mxu0 %v1405
        %2271 = vmatpush1.msra.mxu0 %v1404
        %2272 = vmatprep.subr.mxu0 %v1408
        %2273 = vmatpush1.msra.mxu0 %v1407
        %2274 = vmatprep.subr.mxu0 %v1411
        %2275 = vmatpush1.msra.mxu0 %v1410
        %2276 = vmatprep.subr.mxu0 %v1414
        %2277 = vmatpush1.msra.mxu0 %v1413
        %2278 = vmatprep.mubr.f32.mxu0 %v263
        %2279 = vmatmul.mubr.f32.gmra.mrb[0].mxu0 %v262
        %v2280 = vpop.f32.mrb[0].mxu0
        %v2281 = vadd.f32 %v2210, %v2280
        %v2282 = vpop.f32.mrb[0].mxu0
        %v2283 = vadd.f32 %v2212, %v2282
        %2284 = vdwg.mxu0
        %2285 = vmatprep.subr.mxu0 0.0
        %2286 = vmatpush1.msra.mxu0 %v266
        %2287 = vmatprep.subr.mxu0 0.0
        %2288 = vmatpush1.msra.mxu0 %v269
        %2289 = vmatprep.subr.mxu0 0.0
        %2290 = vmatpush1.msra.mxu0 %v272
        %2291 = vmatprep.subr.mxu0 0.0
        %2292 = vmatpush1.msra.mxu0 %v275
        %2293 = vmatprep.subr.mxu0 0.0
        %2294 = vmatpush1.msra.mxu0 %v278
        %2295 = vmatprep.subr.mxu0 0.0
        %2296 = vmatpush1.msra.mxu0 %v281
        %2297 = vmatprep.subr.mxu0 0.0
        %2298 = vmatpush1.msra.mxu0 %v284
        %2299 = vmatprep.subr.mxu0 0.0
        %2300 = vmatpush1.msra.mxu0 %v287
        %2301 = vmatprep.subr.mxu0 0.0
        %2302 = vmatpush1.msra.mxu0 %v290
        %2303 = vmatprep.subr.mxu0 0.0
        %2304 = vmatpush1.msra.mxu0 %v293
        %2305 = vmatprep.subr.mxu0 0.0
        %2306 = vmatpush1.msra.mxu0 %v296
        %2307 = vmatprep.subr.mxu0 0.0
        %2308 = vmatpush1.msra.mxu0 %v299
        %2309 = vmatprep.subr.mxu0 0.0
        %2310 = vmatpush1.msra.mxu0 %v302
        %2311 = vmatprep.subr.mxu0 0.0
        %2312 = vmatpush1.msra.mxu0 %v305
        %2313 = vmatprep.subr.mxu0 0.0
        %2314 = vmatpush1.msra.mxu0 %v308
        %2315 = vmatprep.subr.mxu0 0.0
        %2316 = vmatpush1.msra.mxu0 %v311
        %2317 = vmatprep.subr.mxu0 0.0
        %2318 = vmatpush1.msra.mxu0 %v314
        %2319 = vmatprep.subr.mxu0 0.0
        %2320 = vmatpush1.msra.mxu0 %v317
        %2321 = vmatprep.subr.mxu0 0.0
        %2322 = vmatpush1.msra.mxu0 %v320
        %2323 = vmatprep.subr.mxu0 0.0
        %2324 = vmatpush1.msra.mxu0 %v323
        %2325 = vmatprep.subr.mxu0 0.0
        %2326 = vmatpush1.msra.mxu0 %v326
        %2327 = vmatprep.subr.mxu0 0.0
        %2328 = vmatpush1.msra.mxu0 %v329
        %2329 = vmatprep.subr.mxu0 0.0
        %2330 = vmatpush1.msra.mxu0 %v332
        %2331 = vmatprep.subr.mxu0 0.0
        %2332 = vmatpush1.msra.mxu0 %v335
        %2333 = vmatprep.subr.mxu0 0.0
        %2334 = vmatpush1.msra.mxu0 %v338
        %2335 = vmatprep.subr.mxu0 0.0
        %2336 = vmatpush1.msra.mxu0 %v341
        %2337 = vmatprep.subr.mxu0 0.0
        %2338 = vmatpush1.msra.mxu0 %v344
        %2339 = vmatprep.subr.mxu0 0.0
        %2340 = vmatpush1.msra.mxu0 %v347
        %2341 = vmatprep.subr.mxu0 0.0
        %2342 = vmatpush1.msra.mxu0 %v350
        %2343 = vmatprep.subr.mxu0 0.0
        %2344 = vmatpush1.msra.mxu0 %v353
        %2345 = vmatprep.subr.mxu0 0.0
        %2346 = vmatpush1.msra.mxu0 %v356
        %2347 = vmatprep.subr.mxu0 0.0
        %2348 = vmatpush1.msra.mxu0 %v359
        %2349 = vmatprep.mubr.f32.mxu0 %v241
        %2350 = vmatmul.mubr.f32.gmra.mrb[0].mxu0 %v240
        %v2351 = vpop.f32.mrb[0].mxu0
        %v2352 = vadd.f32 %v1429, %v2351
        %v2353 = vpop.f32.mrb[0].mxu0
        %2354 = vdwg.mxu0
        %2355 = vmatprep.subr.mxu0 0.0
        %2356 = vmatpush1.msra.mxu0 %v362
        %2357 = vmatprep.subr.mxu0 0.0
        %2358 = vmatpush1.msra.mxu0 %v365
        %2359 = vmatprep.subr.mxu0 0.0
        %2360 = vmatpush1.msra.mxu0 %v368
        %2361 = vmatprep.subr.mxu0 0.0
        %2362 = vmatpush1.msra.mxu0 %v371
        %2363 = vmatprep.subr.mxu0 0.0
        %2364 = vmatpush1.msra.mxu0 %v374
        %2365 = vmatprep.subr.mxu0 0.0
        %2366 = vmatpush1.msra.mxu0 %v377
        %2367 = vmatprep.subr.mxu0 0.0
        %2368 = vmatpush1.msra.mxu0 %v380
        %2369 = vmatprep.subr.mxu0 0.0
        %2370 = vmatpush1.msra.mxu0 %v383
        %2371 = vmatprep.subr.mxu0 0.0
        %2372 = vmatpush1.msra.mxu0 %v386
        %2373 = vmatprep.subr.mxu0 0.0
        %2374 = vmatpush1.msra.mxu0 %v389
        %2375 = vmatprep.subr.mxu0 0.0
        %2376 = vmatpush1.msra.mxu0 %v392
        %2377 = vmatprep.subr.mxu0 0.0
        %2378 = vmatpush1.msra.mxu0 %v395
        %2379 = vmatprep.subr.mxu0 0.0
        %2380 = vmatpush1.msra.mxu0 %v398
        %2381 = vmatprep.subr.mxu0 0.0
        %2382 = vmatpush1.msra.mxu0 %v401
        %2383 = vmatprep.subr.mxu0 0.0
        %2384 = vmatpush1.msra.mxu0 %v404
        %2385 = vmatprep.subr.mxu0 0.0
        %2386 = vmatpush1.msra.mxu0 %v407
        %2387 = vmatprep.subr.mxu0 0.0
        %2388 = vmatpush1.msra.mxu0 %v410
        %2389 = vmatprep.subr.mxu0 0.0
        %2390 = vmatpush1.msra.mxu0 %v413
        %2391 = vmatprep.subr.mxu0 0.0
        %2392 = vmatpush1.msra.mxu0 %v416
        %2393 = vmatprep.subr.mxu0 0.0
        %2394 = vmatpush1.msra.mxu0 %v419
        %2395 = vmatprep.subr.mxu0 0.0
        %2396 = vmatpush1.msra.mxu0 %v422
        %2397 = vmatprep.subr.mxu0 0.0
        %2398 = vmatpush1.msra.mxu0 %v425
        %2399 = vmatprep.subr.mxu0 0.0
        %2400 = vmatpush1.msra.mxu0 %v428
        %2401 = vmatprep.subr.mxu0 0.0
        %2402 = vmatpush1.msra.mxu0 %v431
        %2403 = vmatprep.subr.mxu0 0.0
        %2404 = vmatpush1.msra.mxu0 %v434
        %2405 = vmatprep.subr.mxu0 0.0
        %2406 = vmatpush1.msra.mxu0 %v437
        %2407 = vmatprep.subr.mxu0 0.0
        %2408 = vmatpush1.msra.mxu0 %v440
        %2409 = vmatprep.subr.mxu0 0.0
        %2410 = vmatpush1.msra.mxu0 %v443
        %2411 = vmatprep.subr.mxu0 0.0
        %2412 = vmatpush1.msra.mxu0 %v446
        %2413 = vmatprep.subr.mxu0 0.0
        %2414 = vmatpush1.msra.mxu0 %v449
        %2415 = vmatprep.subr.mxu0 0.0
        %2416 = vmatpush1.msra.mxu0 %v452
        %2417 = vmatprep.subr.mxu0 0.0
        %2418 = vmatpush1.msra.mxu0 %v455
        %2419 = vmatprep.mubr.f32.mxu0 %v243
        %2420 = vmatmul.mubr.f32.gmra.mrb[0].mxu0 %v242
        %v2421 = vpop.f32.mrb[0].mxu0
        %v2422 = vadd.f32 %v2352, %v2421
        %v2423 = vpop.f32.mrb[0].mxu0
        %2424 = vdwg.mxu0
        %2425 = vmatprep.subr.mxu0 0.0
        %2426 = vmatpush1.msra.mxu0 %v458
        %2427 = vmatprep.subr.mxu0 0.0
        %2428 = vmatpush1.msra.mxu0 %v461
        %2429 = vmatprep.subr.mxu0 0.0
        %2430 = vmatpush1.msra.mxu0 %v464
        %2431 = vmatprep.subr.mxu0 0.0
        %2432 = vmatpush1.msra.mxu0 %v467
        %2433 = vmatprep.subr.mxu0 0.0
        %2434 = vmatpush1.msra.mxu0 %v470
        %2435 = vmatprep.subr.mxu0 0.0
        %2436 = vmatpush1.msra.mxu0 %v473
        %2437 = vmatprep.subr.mxu0 0.0
        %2438 = vmatpush1.msra.mxu0 %v476
        %2439 = vmatprep.subr.mxu0 0.0
        %2440 = vmatpush1.msra.mxu0 %v479
        %2441 = vmatprep.subr.mxu0 0.0
        %2442 = vmatpush1.msra.mxu0 %v482
        %2443 = vmatprep.subr.mxu0 0.0
        %2444 = vmatpush1.msra.mxu0 %v485
        %2445 = vmatprep.subr.mxu0 0.0
        %2446 = vmatpush1.msra.mxu0 %v488
        %2447 = vmatprep.subr.mxu0 0.0
        %2448 = vmatpush1.msra.mxu0 %v491
        %2449 = vmatprep.subr.mxu0 0.0
        %2450 = vmatpush1.msra.mxu0 %v494
        %2451 = vmatprep.subr.mxu0 0.0
        %2452 = vmatpush1.msra.mxu0 %v497
        %2453 = vmatprep.subr.mxu0 0.0
        %2454 = vmatpush1.msra.mxu0 %v500
        %2455 = vmatprep.subr.mxu0 0.0
        %2456 = vmatpush1.msra.mxu0 %v503
        %2457 = vmatprep.subr.mxu0 0.0
        %2458 = vmatpush1.msra.mxu0 %v506
        %2459 = vmatprep.subr.mxu0 0.0
        %2460 = vmatpush1.msra.mxu0 %v509
        %2461 = vmatprep.subr.mxu0 0.0
        %2462 = vmatpush1.msra.mxu0 %v512
        %2463 = vmatprep.subr.mxu0 0.0
        %2464 = vmatpush1.msra.mxu0 %v515
        %2465 = vmatprep.subr.mxu0 0.0
        %2466 = vmatpush1.msra.mxu0 %v518
        %2467 = vmatprep.subr.mxu0 0.0
        %2468 = vmatpush1.msra.mxu0 %v521
        %2469 = vmatprep.subr.mxu0 0.0
        %2470 = vmatpush1.msra.mxu0 %v524
        %2471 = vmatprep.subr.mxu0 0.0
        %2472 = vmatpush1.msra.mxu0 %v527
        %2473 = vmatprep.subr.mxu0 0.0
        %2474 = vmatpush1.msra.mxu0 %v530
        %2475 = vmatprep.subr.mxu0 0.0
        %2476 = vmatpush1.msra.mxu0 %v533
        %2477 = vmatprep.subr.mxu0 0.0
        %2478 = vmatpush1.msra.mxu0 %v536
        %2479 = vmatprep.subr.mxu0 0.0
        %2480 = vmatpush1.msra.mxu0 %v539
        %2481 = vmatprep.subr.mxu0 0.0
        %2482 = vmatpush1.msra.mxu0 %v542
        %2483 = vmatprep.subr.mxu0 0.0
        %2484 = vmatpush1.msra.mxu0 %v545
        %2485 = vmatprep.subr.mxu0 0.0
        %2486 = vmatpush1.msra.mxu0 %v548
        %2487 = vmatprep.subr.mxu0 0.0
        %2488 = vmatpush1.msra.mxu0 %v551
        %2489 = vmatprep.mubr.f32.mxu0 %v245
        %2490 = vmatmul.mubr.f32.gmra.mrb[0].mxu0 %v244
        %v2491 = vpop.f32.mrb[0].mxu0
        %v2492 = vadd.f32 %v2422, %v2491
        %v2493 = vpop.f32.mrb[0].mxu0
        %2494 = vdwg.mxu0
        %2495 = vmatprep.subr.mxu0 0.0
        %2496 = vmatpush1.msra.mxu0 %v554
        %2497 = vmatprep.subr.mxu0 0.0
        %2498 = vmatpush1.msra.mxu0 %v557
        %2499 = vmatprep.subr.mxu0 0.0
        %2500 = vmatpush1.msra.mxu0 %v560
        %2501 = vmatprep.subr.mxu0 0.0
        %2502 = vmatpush1.msra.mxu0 %v563
        %2503 = vmatprep.subr.mxu0 0.0
        %2504 = vmatpush1.msra.mxu0 %v566
        %2505 = vmatprep.subr.mxu0 0.0
        %2506 = vmatpush1.msra.mxu0 %v569
        %2507 = vmatprep.subr.mxu0 0.0
        %2508 = vmatpush1.msra.mxu0 %v572
        %2509 = vmatprep.subr.mxu0 0.0
        %2510 = vmatpush1.msra.mxu0 %v575
        %2511 = vmatprep.subr.mxu0 0.0
        %2512 = vmatpush1.msra.mxu0 %v578
        %2513 = vmatprep.subr.mxu0 0.0
        %2514 = vmatpush1.msra.mxu0 %v581
        %2515 = vmatprep.subr.mxu0 0.0
        %2516 = vmatpush1.msra.mxu0 %v584
        %2517 = vmatprep.subr.mxu0 0.0
        %2518 = vmatpush1.msra.mxu0 %v587
        %2519 = vmatprep.subr.mxu0 0.0
        %2520 = vmatpush1.msra.mxu0 %v590
        %2521 = vmatprep.subr.mxu0 0.0
        %2522 = vmatpush1.msra.mxu0 %v593
        %2523 = vmatprep.subr.mxu0 0.0
        %2524 = vmatpush1.msra.mxu0 %v596
        %2525 = vmatprep.subr.mxu0 0.0
        %2526 = vmatpush1.msra.mxu0 %v599
        %2527 = vmatprep.subr.mxu0 0.0
        %2528 = vmatpush1.msra.mxu0 %v602
        %2529 = vmatprep.subr.mxu0 0.0
        %2530 = vmatpush1.msra.mxu0 %v605
        %2531 = vmatprep.subr.mxu0 0.0
        %2532 = vmatpush1.msra.mxu0 %v608
        %2533 = vmatprep.subr.mxu0 0.0
        %2534 = vmatpush1.msra.mxu0 %v611
        %2535 = vmatprep.subr.mxu0 0.0
        %2536 = vmatpush1.msra.mxu0 %v614
        %2537 = vmatprep.subr.mxu0 0.0
        %2538 = vmatpush1.msra.mxu0 %v617
        %2539 = vmatprep.subr.mxu0 0.0
        %2540 = vmatpush1.msra.mxu0 %v620
        %2541 = vmatprep.subr.mxu0 0.0
        %2542 = vmatpush1.msra.mxu0 %v623
        %2543 = vmatprep.subr.mxu0 0.0
        %2544 = vmatpush1.msra.mxu0 %v626
        %2545 = vmatprep.subr.mxu0 0.0
        %2546 = vmatpush1.msra.mxu0 %v629
        %2547 = vmatprep.subr.mxu0 0.0
        %2548 = vmatpush1.msra.mxu0 %v632
        %2549 = vmatprep.subr.mxu0 0.0
        %2550 = vmatpush1.msra.mxu0 %v635
        %2551 = vmatprep.subr.mxu0 0.0
        %2552 = vmatpush1.msra.mxu0 %v638
        %2553 = vmatprep.subr.mxu0 0.0
        %2554 = vmatpush1.msra.mxu0 %v641
        %2555 = vmatprep.subr.mxu0 0.0
        %2556 = vmatpush1.msra.mxu0 %v644
        %2557 = vmatprep.subr.mxu0 0.0
        %2558 = vmatpush1.msra.mxu0 %v647
        %2559 = vmatprep.mubr.f32.mxu0 %v247
        %2560 = vmatmul.mubr.f32.gmra.mrb[0].mxu0 %v246
        %v2561 = vpop.f32.mrb[0].mxu0
        %v2562 = vadd.f32 %v2492, %v2561
        %v2563 = vpop.f32.mrb[0].mxu0
        %2564 = vdwg.mxu0
        %2565 = vmatprep.subr.mxu0 0.0
        %2566 = vmatpush1.msra.mxu0 %v650
        %2567 = vmatprep.subr.mxu0 0.0
        %2568 = vmatpush1.msra.mxu0 %v653
        %2569 = vmatprep.subr.mxu0 0.0
        %2570 = vmatpush1.msra.mxu0 %v656
        %2571 = vmatprep.subr.mxu0 0.0
        %2572 = vmatpush1.msra.mxu0 %v659
        %2573 = vmatprep.subr.mxu0 0.0
        %2574 = vmatpush1.msra.mxu0 %v662
        %2575 = vmatprep.subr.mxu0 0.0
        %2576 = vmatpush1.msra.mxu0 %v665
        %2577 = vmatprep.subr.mxu0 0.0
        %2578 = vmatpush1.msra.mxu0 %v668
        %2579 = vmatprep.subr.mxu0 0.0
        %2580 = vmatpush1.msra.mxu0 %v671
        %2581 = vmatprep.subr.mxu0 0.0
        %2582 = vmatpush1.msra.mxu0 %v674
        %2583 = vmatprep.subr.mxu0 0.0
        %2584 = vmatpush1.msra.mxu0 %v677
        %2585 = vmatprep.subr.mxu0 0.0
        %2586 = vmatpush1.msra.mxu0 %v680
        %2587 = vmatprep.subr.mxu0 0.0
        %2588 = vmatpush1.msra.mxu0 %v683
        %2589 = vmatprep.subr.mxu0 0.0
        %2590 = vmatpush1.msra.mxu0 %v686
        %2591 = vmatprep.subr.mxu0 0.0
        %2592 = vmatpush1.msra.mxu0 %v689
        %2593 = vmatprep.subr.mxu0 0.0
        %2594 = vmatpush1.msra.mxu0 %v692
        %2595 = vmatprep.subr.mxu0 0.0
        %2596 = vmatpush1.msra.mxu0 %v695
        %2597 = vmatprep.subr.mxu0 0.0
        %2598 = vmatpush1.msra.mxu0 %v698
        %2599 = vmatprep.subr.mxu0 0.0
        %2600 = vmatpush1.msra.mxu0 %v701
        %2601 = vmatprep.subr.mxu0 0.0
        %2602 = vmatpush1.msra.mxu0 %v704
        %2603 = vmatprep.subr.mxu0 0.0
        %2604 = vmatpush1.msra.mxu0 %v707
        %2605 = vmatprep.subr.mxu0 0.0
        %2606 = vmatpush1.msra.mxu0 %v710
        %2607 = vmatprep.subr.mxu0 0.0
        %2608 = vmatpush1.msra.mxu0 %v713
        %2609 = vmatprep.subr.mxu0 0.0
        %2610 = vmatpush1.msra.mxu0 %v716
        %2611 = vmatprep.subr.mxu0 0.0
        %2612 = vmatpush1.msra.mxu0 %v719
        %2613 = vmatprep.subr.mxu0 0.0
        %2614 = vmatpush1.msra.mxu0 %v722
        %2615 = vmatprep.subr.mxu0 0.0
        %2616 = vmatpush1.msra.mxu0 %v725
        %2617 = vmatprep.subr.mxu0 0.0
        %2618 = vmatpush1.msra.mxu0 %v728
        %2619 = vmatprep.subr.mxu0 0.0
        %2620 = vmatpush1.msra.mxu0 %v731
        %2621 = vmatprep.subr.mxu0 0.0
        %2622 = vmatpush1.msra.mxu0 %v734
        %2623 = vmatprep.subr.mxu0 0.0
        %2624 = vmatpush1.msra.mxu0 %v737
        %2625 = vmatprep.subr.mxu0 0.0
        %2626 = vmatpush1.msra.mxu0 %v740
        %2627 = vmatprep.subr.mxu0 0.0
        %2628 = vmatpush1.msra.mxu0 %v743
        %2629 = vmatprep.mubr.f32.mxu0 %v249
        %2630 = vmatmul.mubr.f32.gmra.mrb[0].mxu0 %v248
        %v2631 = vpop.f32.mrb[0].mxu0
        %v2632 = vadd.f32 %v2562, %v2631
        %v2633 = vpop.f32.mrb[0].mxu0
        %2634 = vdwg.mxu0
        %2635 = vmatprep.subr.mxu0 0.0
        %2636 = vmatpush1.msra.mxu0 %v746
        %2637 = vmatprep.subr.mxu0 0.0
        %2638 = vmatpush1.msra.mxu0 %v749
        %2639 = vmatprep.subr.mxu0 0.0
        %2640 = vmatpush1.msra.mxu0 %v752
        %2641 = vmatprep.subr.mxu0 0.0
        %2642 = vmatpush1.msra.mxu0 %v755
        %2643 = vmatprep.subr.mxu0 0.0
        %2644 = vmatpush1.msra.mxu0 %v758
        %2645 = vmatprep.subr.mxu0 0.0
        %2646 = vmatpush1.msra.mxu0 %v761
        %2647 = vmatprep.subr.mxu0 0.0
        %2648 = vmatpush1.msra.mxu0 %v764
        %2649 = vmatprep.subr.mxu0 0.0
        %2650 = vmatpush1.msra.mxu0 %v767
        %2651 = vmatprep.subr.mxu0 0.0
        %2652 = vmatpush1.msra.mxu0 %v770
        %2653 = vmatprep.subr.mxu0 0.0
        %2654 = vmatpush1.msra.mxu0 %v773
        %2655 = vmatprep.subr.mxu0 0.0
        %2656 = vmatpush1.msra.mxu0 %v776
        %2657 = vmatprep.subr.mxu0 0.0
        %2658 = vmatpush1.msra.mxu0 %v779
        %2659 = vmatprep.subr.mxu0 0.0
        %2660 = vmatpush1.msra.mxu0 %v782
        %2661 = vmatprep.subr.mxu0 0.0
        %2662 = vmatpush1.msra.mxu0 %v785
        %2663 = vmatprep.subr.mxu0 0.0
        %2664 = vmatpush1.msra.mxu0 %v788
        %2665 = vmatprep.subr.mxu0 0.0
        %2666 = vmatpush1.msra.mxu0 %v791
        %2667 = vmatprep.subr.mxu0 0.0
        %2668 = vmatpush1.msra.mxu0 %v794
        %2669 = vmatprep.subr.mxu0 0.0
        %2670 = vmatpush1.msra.mxu0 %v797
        %2671 = vmatprep.subr.mxu0 0.0
        %2672 = vmatpush1.msra.mxu0 %v800
        %2673 = vmatprep.subr.mxu0 0.0
        %2674 = vmatpush1.msra.mxu0 %v803
        %2675 = vmatprep.subr.mxu0 0.0
        %2676 = vmatpush1.msra.mxu0 %v806
        %2677 = vmatprep.subr.mxu0 0.0
        %2678 = vmatpush1.msra.mxu0 %v809
        %2679 = vmatprep.subr.mxu0 0.0
        %2680 = vmatpush1.msra.mxu0 %v812
        %2681 = vmatprep.subr.mxu0 0.0
        %2682 = vmatpush1.msra.mxu0 %v815
        %2683 = vmatprep.subr.mxu0 0.0
        %2684 = vmatpush1.msra.mxu0 %v818
        %2685 = vmatprep.subr.mxu0 0.0
        %2686 = vmatpush1.msra.mxu0 %v821
        %2687 = vmatprep.subr.mxu0 0.0
        %2688 = vmatpush1.msra.mxu0 %v824
        %2689 = vmatprep.subr.mxu0 0.0
        %2690 = vmatpush1.msra.mxu0 %v827
        %2691 = vmatprep.subr.mxu0 0.0
        %2692 = vmatpush1.msra.mxu0 %v830
        %2693 = vmatprep.subr.mxu0 0.0
        %2694 = vmatpush1.msra.mxu0 %v833
        %2695 = vmatprep.subr.mxu0 0.0
        %2696 = vmatpush1.msra.mxu0 %v836
        %2697 = vmatprep.subr.mxu0 0.0
        %2698 = vmatpush1.msra.mxu0 %v839
        %2699 = vmatprep.mubr.f32.mxu0 %v251
        %2700 = vmatmul.mubr.f32.gmra.mrb[0].mxu0 %v250
        %v2701 = vpop.f32.mrb[0].mxu0
        %v2702 = vadd.f32 %v2632, %v2701
        %v2703 = vpop.f32.mrb[0].mxu0
        %2704 = vdwg.mxu0
        %2705 = vmatprep.subr.mxu0 0.0
        %2706 = vmatpush1.msra.mxu0 %v842
        %2707 = vmatprep.subr.mxu0 0.0
        %2708 = vmatpush1.msra.mxu0 %v845
        %2709 = vmatprep.subr.mxu0 0.0
        %2710 = vmatpush1.msra.mxu0 %v848
        %2711 = vmatprep.subr.mxu0 0.0
        %2712 = vmatpush1.msra.mxu0 %v851
        %2713 = vmatprep.subr.mxu0 0.0
        %2714 = vmatpush1.msra.mxu0 %v854
        %2715 = vmatprep.subr.mxu0 0.0
        %2716 = vmatpush1.msra.mxu0 %v857
        %2717 = vmatprep.subr.mxu0 0.0
        %2718 = vmatpush1.msra.mxu0 %v860
        %2719 = vmatprep.subr.mxu0 0.0
        %2720 = vmatpush1.msra.mxu0 %v863
        %2721 = vmatprep.subr.mxu0 0.0
        %2722 = vmatpush1.msra.mxu0 %v866
        %2723 = vmatprep.subr.mxu0 0.0
        %2724 = vmatpush1.msra.mxu0 %v869
        %2725 = vmatprep.subr.mxu0 0.0
        %2726 = vmatpush1.msra.mxu0 %v872
        %2727 = vmatprep.subr.mxu0 0.0
        %2728 = vmatpush1.msra.mxu0 %v875
        %2729 = vmatprep.subr.mxu0 0.0
        %2730 = vmatpush1.msra.mxu0 %v878
        %2731 = vmatprep.subr.mxu0 0.0
        %2732 = vmatpush1.msra.mxu0 %v881
        %2733 = vmatprep.subr.mxu0 0.0
        %2734 = vmatpush1.msra.mxu0 %v884
        %2735 = vmatprep.subr.mxu0 0.0
        %2736 = vmatpush1.msra.mxu0 %v887
        %2737 = vmatprep.subr.mxu0 0.0
        %2738 = vmatpush1.msra.mxu0 %v890
        %2739 = vmatprep.subr.mxu0 0.0
        %2740 = vmatpush1.msra.mxu0 %v893
        %2741 = vmatprep.subr.mxu0 0.0
        %2742 = vmatpush1.msra.mxu0 %v896
        %2743 = vmatprep.subr.mxu0 0.0
        %2744 = vmatpush1.msra.mxu0 %v899
        %2745 = vmatprep.subr.mxu0 0.0
        %2746 = vmatpush1.msra.mxu0 %v902
        %2747 = vmatprep.subr.mxu0 0.0
        %2748 = vmatpush1.msra.mxu0 %v905
        %2749 = vmatprep.subr.mxu0 0.0
        %2750 = vmatpush1.msra.mxu0 %v908
        %2751 = vmatprep.subr.mxu0 0.0
        %2752 = vmatpush1.msra.mxu0 %v911
        %2753 = vmatprep.subr.mxu0 0.0
        %2754 = vmatpush1.msra.mxu0 %v914
        %2755 = vmatprep.subr.mxu0 0.0
        %2756 = vmatpush1.msra.mxu0 %v917
        %2757 = vmatprep.subr.mxu0 0.0
        %2758 = vmatpush1.msra.mxu0 %v920
        %2759 = vmatprep.subr.mxu0 0.0
        %2760 = vmatpush1.msra.mxu0 %v923
        %2761 = vmatprep.subr.mxu0 0.0
        %2762 = vmatpush1.msra.mxu0 %v926
        %2763 = vmatprep.subr.mxu0 0.0
        %2764 = vmatpush1.msra.mxu0 %v929
        %2765 = vmatprep.subr.mxu0 0.0
        %2766 = vmatpush1.msra.mxu0 %v932
        %2767 = vmatprep.subr.mxu0 0.0
        %2768 = vmatpush1.msra.mxu0 %v935
        %2769 = vmatprep.mubr.f32.mxu0 %v253
        %2770 = vmatmul.mubr.f32.gmra.mrb[0].mxu0 %v252
        %v2771 = vpop.f32.mrb[0].mxu0
        %v2772 = vadd.f32 %v2702, %v2771
        %v2773 = vpop.f32.mrb[0].mxu0
        %2774 = vdwg.mxu0
        %2775 = vmatprep.subr.mxu0 0.0
        %2776 = vmatpush1.msra.mxu0 %v938
        %2777 = vmatprep.subr.mxu0 0.0
        %2778 = vmatpush1.msra.mxu0 %v941
        %2779 = vmatprep.subr.mxu0 0.0
        %2780 = vmatpush1.msra.mxu0 %v944
        %2781 = vmatprep.subr.mxu0 0.0
        %2782 = vmatpush1.msra.mxu0 %v947
        %2783 = vmatprep.subr.mxu0 0.0
        %2784 = vmatpush1.msra.mxu0 %v950
        %2785 = vmatprep.subr.mxu0 0.0
        %2786 = vmatpush1.msra.mxu0 %v953
        %2787 = vmatprep.subr.mxu0 0.0
        %2788 = vmatpush1.msra.mxu0 %v956
        %2789 = vmatprep.subr.mxu0 0.0
        %2790 = vmatpush1.msra.mxu0 %v959
        %2791 = vmatprep.subr.mxu0 0.0
        %2792 = vmatpush1.msra.mxu0 %v962
        %2793 = vmatprep.subr.mxu0 0.0
        %2794 = vmatpush1.msra.mxu0 %v965
        %2795 = vmatprep.subr.mxu0 0.0
        %2796 = vmatpush1.msra.mxu0 %v968
        %2797 = vmatprep.subr.mxu0 0.0
        %2798 = vmatpush1.msra.mxu0 %v971
        %2799 = vmatprep.subr.mxu0 0.0
        %2800 = vmatpush1.msra.mxu0 %v974
        %2801 = vmatprep.subr.mxu0 0.0
        %2802 = vmatpush1.msra.mxu0 %v977
        %2803 = vmatprep.subr.mxu0 0.0
        %2804 = vmatpush1.msra.mxu0 %v980
        %2805 = vmatprep.subr.mxu0 0.0
        %2806 = vmatpush1.msra.mxu0 %v983
        %2807 = vmatprep.subr.mxu0 0.0
        %2808 = vmatpush1.msra.mxu0 %v986
        %2809 = vmatprep.subr.mxu0 0.0
        %2810 = vmatpush1.msra.mxu0 %v989
        %2811 = vmatprep.subr.mxu0 0.0
        %2812 = vmatpush1.msra.mxu0 %v992
        %2813 = vmatprep.subr.mxu0 0.0
        %2814 = vmatpush1.msra.mxu0 %v995
        %2815 = vmatprep.subr.mxu0 0.0
        %2816 = vmatpush1.msra.mxu0 %v998
        %2817 = vmatprep.subr.mxu0 0.0
        %2818 = vmatpush1.msra.mxu0 %v1001
        %2819 = vmatprep.subr.mxu0 0.0
        %2820 = vmatpush1.msra.mxu0 %v1004
        %2821 = vmatprep.subr.mxu0 0.0
        %2822 = vmatpush1.msra.mxu0 %v1007
        %2823 = vmatprep.subr.mxu0 0.0
        %2824 = vmatpush1.msra.mxu0 %v1010
        %2825 = vmatprep.subr.mxu0 0.0
        %2826 = vmatpush1.msra.mxu0 %v1013
        %2827 = vmatprep.subr.mxu0 0.0
        %2828 = vmatpush1.msra.mxu0 %v1016
        %2829 = vmatprep.subr.mxu0 0.0
        %2830 = vmatpush1.msra.mxu0 %v1019
        %2831 = vmatprep.subr.mxu0 0.0
        %2832 = vmatpush1.msra.mxu0 %v1022
        %2833 = vmatprep.subr.mxu0 0.0
        %2834 = vmatpush1.msra.mxu0 %v1025
        %2835 = vmatprep.subr.mxu0 0.0
        %2836 = vmatpush1.msra.mxu0 %v1028
        %2837 = vmatprep.subr.mxu0 0.0
        %2838 = vmatpush1.msra.mxu0 %v1031
        %2839 = vmatprep.mubr.f32.mxu0 %v255
        %2840 = vmatmul.mubr.f32.gmra.mrb[0].mxu0 %v254
        %v2841 = vpop.f32.mrb[0].mxu0
        %v2842 = vadd.f32 %v2772, %v2841
        %v2843 = vpop.f32.mrb[0].mxu0
        %2844 = vdwg.mxu0
        %2845 = vmatprep.subr.mxu0 0.0
        %2846 = vmatpush1.msra.mxu0 %v1034
        %2847 = vmatprep.subr.mxu0 0.0
        %2848 = vmatpush1.msra.mxu0 %v1037
        %2849 = vmatprep.subr.mxu0 0.0
        %2850 = vmatpush1.msra.mxu0 %v1040
        %2851 = vmatprep.subr.mxu0 0.0
        %2852 = vmatpush1.msra.mxu0 %v1043
        %2853 = vmatprep.subr.mxu0 0.0
        %2854 = vmatpush1.msra.mxu0 %v1046
        %2855 = vmatprep.subr.mxu0 0.0
        %2856 = vmatpush1.msra.mxu0 %v1049
        %2857 = vmatprep.subr.mxu0 0.0
        %2858 = vmatpush1.msra.mxu0 %v1052
        %2859 = vmatprep.subr.mxu0 0.0
        %2860 = vmatpush1.msra.mxu0 %v1055
        %2861 = vmatprep.subr.mxu0 0.0
        %2862 = vmatpush1.msra.mxu0 %v1058
        %2863 = vmatprep.subr.mxu0 0.0
        %2864 = vmatpush1.msra.mxu0 %v1061
        %2865 = vmatprep.subr.mxu0 0.0
        %2866 = vmatpush1.msra.mxu0 %v1064
        %2867 = vmatprep.subr.mxu0 0.0
        %2868 = vmatpush1.msra.mxu0 %v1067
        %2869 = vmatprep.subr.mxu0 0.0
        %2870 = vmatpush1.msra.mxu0 %v1070
        %2871 = vmatprep.subr.mxu0 0.0
        %2872 = vmatpush1.msra.mxu0 %v1073
        %2873 = vmatprep.subr.mxu0 0.0
        %2874 = vmatpush1.msra.mxu0 %v1076
        %2875 = vmatprep.subr.mxu0 0.0
        %2876 = vmatpush1.msra.mxu0 %v1079
        %2877 = vmatprep.subr.mxu0 0.0
        %2878 = vmatpush1.msra.mxu0 %v1082
        %2879 = vmatprep.subr.mxu0 0.0
        %2880 = vmatpush1.msra.mxu0 %v1085
        %2881 = vmatprep.subr.mxu0 0.0
        %2882 = vmatpush1.msra.mxu0 %v1088
        %2883 = vmatprep.subr.mxu0 0.0
        %2884 = vmatpush1.msra.mxu0 %v1091
        %2885 = vmatprep.subr.mxu0 0.0
        %2886 = vmatpush1.msra.mxu0 %v1094
        %2887 = vmatprep.subr.mxu0 0.0
        %2888 = vmatpush1.msra.mxu0 %v1097
        %2889 = vmatprep.subr.mxu0 0.0
        %2890 = vmatpush1.msra.mxu0 %v1100
        %2891 = vmatprep.subr.mxu0 0.0
        %2892 = vmatpush1.msra.mxu0 %v1103
        %2893 = vmatprep.subr.mxu0 0.0
        %2894 = vmatpush1.msra.mxu0 %v1106
        %2895 = vmatprep.subr.mxu0 0.0
        %2896 = vmatpush1.msra.mxu0 %v1109
        %2897 = vmatprep.subr.mxu0 0.0
        %2898 = vmatpush1.msra.mxu0 %v1112
        %2899 = vmatprep.subr.mxu0 0.0
        %2900 = vmatpush1.msra.mxu0 %v1115
        %2901 = vmatprep.subr.mxu0 0.0
        %2902 = vmatpush1.msra.mxu0 %v1118
        %2903 = vmatprep.subr.mxu0 0.0
        %2904 = vmatpush1.msra.mxu0 %v1121
        %2905 = vmatprep.subr.mxu0 0.0
        %2906 = vmatpush1.msra.mxu0 %v1124
        %2907 = vmatprep.subr.mxu0 0.0
        %2908 = vmatpush1.msra.mxu0 %v1127
        %2909 = vmatprep.mubr.f32.mxu0 %v257
        %2910 = vmatmul.mubr.f32.gmra.mrb[0].mxu0 %v256
        %v2911 = vpop.f32.mrb[0].mxu0
        %v2912 = vadd.f32 %v2842, %v2911
        %v2913 = vpop.f32.mrb[0].mxu0
        %2914 = vdwg.mxu0
        %2915 = vmatprep.subr.mxu0 0.0
        %2916 = vmatpush1.msra.mxu0 %v1130
        %2917 = vmatprep.subr.mxu0 0.0
        %2918 = vmatpush1.msra.mxu0 %v1133
        %2919 = vmatprep.subr.mxu0 0.0
        %2920 = vmatpush1.msra.mxu0 %v1136
        %2921 = vmatprep.subr.mxu0 0.0
        %2922 = vmatpush1.msra.mxu0 %v1139
        %2923 = vmatprep.subr.mxu0 0.0
        %2924 = vmatpush1.msra.mxu0 %v1142
        %2925 = vmatprep.subr.mxu0 0.0
        %2926 = vmatpush1.msra.mxu0 %v1145
        %2927 = vmatprep.subr.mxu0 0.0
        %2928 = vmatpush1.msra.mxu0 %v1148
        %2929 = vmatprep.subr.mxu0 0.0
        %2930 = vmatpush1.msra.mxu0 %v1151
        %2931 = vmatprep.subr.mxu0 0.0
        %2932 = vmatpush1.msra.mxu0 %v1154
        %2933 = vmatprep.subr.mxu0 0.0
        %2934 = vmatpush1.msra.mxu0 %v1157
        %2935 = vmatprep.subr.mxu0 0.0
        %2936 = vmatpush1.msra.mxu0 %v1160
        %2937 = vmatprep.subr.mxu0 0.0
        %2938 = vmatpush1.msra.mxu0 %v1163
        %2939 = vmatprep.subr.mxu0 0.0
        %2940 = vmatpush1.msra.mxu0 %v1166
        %2941 = vmatprep.subr.mxu0 0.0
        %2942 = vmatpush1.msra.mxu0 %v1169
        %2943 = vmatprep.subr.mxu0 0.0
        %2944 = vmatpush1.msra.mxu0 %v1172
        %2945 = vmatprep.subr.mxu0 0.0
        %2946 = vmatpush1.msra.mxu0 %v1175
        %2947 = vmatprep.subr.mxu0 0.0
        %2948 = vmatpush1.msra.mxu0 %v1178
        %2949 = vmatprep.subr.mxu0 0.0
        %2950 = vmatpush1.msra.mxu0 %v1181
        %2951 = vmatprep.subr.mxu0 0.0
        %2952 = vmatpush1.msra.mxu0 %v1184
        %2953 = vmatprep.subr.mxu0 0.0
        %2954 = vmatpush1.msra.mxu0 %v1187
        %2955 = vmatprep.subr.mxu0 0.0
        %2956 = vmatpush1.msra.mxu0 %v1190
        %2957 = vmatprep.subr.mxu0 0.0
        %2958 = vmatpush1.msra.mxu0 %v1193
        %2959 = vmatprep.subr.mxu0 0.0
        %2960 = vmatpush1.msra.mxu0 %v1196
        %2961 = vmatprep.subr.mxu0 0.0
        %2962 = vmatpush1.msra.mxu0 %v1199
        %2963 = vmatprep.subr.mxu0 0.0
        %2964 = vmatpush1.msra.mxu0 %v1202
        %2965 = vmatprep.subr.mxu0 0.0
        %2966 = vmatpush1.msra.mxu0 %v1205
        %2967 = vmatprep.subr.mxu0 0.0
        %2968 = vmatpush1.msra.mxu0 %v1208
        %2969 = vmatprep.subr.mxu0 0.0
        %2970 = vmatpush1.msra.mxu0 %v1211
        %2971 = vmatprep.subr.mxu0 0.0
        %2972 = vmatpush1.msra.mxu0 %v1214
        %2973 = vmatprep.subr.mxu0 0.0
        %2974 = vmatpush1.msra.mxu0 %v1217
        %2975 = vmatprep.subr.mxu0 0.0
        %2976 = vmatpush1.msra.mxu0 %v1220
        %2977 = vmatprep.subr.mxu0 0.0
        %2978 = vmatpush1.msra.mxu0 %v1223
        %2979 = vmatprep.mubr.f32.mxu0 %v259
        %2980 = vmatmul.mubr.f32.gmra.mrb[0].mxu0 %v258
        %v2981 = vpop.f32.mrb[0].mxu0
        %v2982 = vadd.f32 %v2912, %v2981
        %v2983 = vpop.f32.mrb[0].mxu0
        %2984 = vdwg.mxu0
        %2985 = vmatprep.subr.mxu0 0.0
        %2986 = vmatpush1.msra.mxu0 %v1226
        %2987 = vmatprep.subr.mxu0 0.0
        %2988 = vmatpush1.msra.mxu0 %v1229
        %2989 = vmatprep.subr.mxu0 0.0
        %2990 = vmatpush1.msra.mxu0 %v1232
        %2991 = vmatprep.subr.mxu0 0.0
        %2992 = vmatpush1.msra.mxu0 %v1235
        %2993 = vmatprep.subr.mxu0 0.0
        %2994 = vmatpush1.msra.mxu0 %v1238
        %2995 = vmatprep.subr.mxu0 0.0
        %2996 = vmatpush1.msra.mxu0 %v1241
        %2997 = vmatprep.subr.mxu0 0.0
        %2998 = vmatpush1.msra.mxu0 %v1244
        %2999 = vmatprep.subr.mxu0 0.0
        %3000 = vmatpush1.msra.mxu0 %v1247
        %3001 = vmatprep.subr.mxu0 0.0
        %3002 = vmatpush1.msra.mxu0 %v1250
        %3003 = vmatprep.subr.mxu0 0.0
        %3004 = vmatpush1.msra.mxu0 %v1253
        %3005 = vmatprep.subr.mxu0 0.0
        %3006 = vmatpush1.msra.mxu0 %v1256
        %3007 = vmatprep.subr.mxu0 0.0
        %3008 = vmatpush1.msra.mxu0 %v1259
        %3009 = vmatprep.subr.mxu0 0.0
        %3010 = vmatpush1.msra.mxu0 %v1262
        %3011 = vmatprep.subr.mxu0 0.0
        %3012 = vmatpush1.msra.mxu0 %v1265
        %3013 = vmatprep.subr.mxu0 0.0
        %3014 = vmatpush1.msra.mxu0 %v1268
        %3015 = vmatprep.subr.mxu0 0.0
        %3016 = vmatpush1.msra.mxu0 %v1271
        %3017 = vmatprep.subr.mxu0 0.0
        %3018 = vmatpush1.msra.mxu0 %v1274
        %3019 = vmatprep.subr.mxu0 0.0
        %3020 = vmatpush1.msra.mxu0 %v1277
        %3021 = vmatprep.subr.mxu0 0.0
        %3022 = vmatpush1.msra.mxu0 %v1280
        %3023 = vmatprep.subr.mxu0 0.0
        %3024 = vmatpush1.msra.mxu0 %v1283
        %3025 = vmatprep.subr.mxu0 0.0
        %3026 = vmatpush1.msra.mxu0 %v1286
        %3027 = vmatprep.subr.mxu0 0.0
        %3028 = vmatpush1.msra.mxu0 %v1289
        %3029 = vmatprep.subr.mxu0 0.0
        %3030 = vmatpush1.msra.mxu0 %v1292
        %3031 = vmatprep.subr.mxu0 0.0
        %3032 = vmatpush1.msra.mxu0 %v1295
        %3033 = vmatprep.subr.mxu0 0.0
        %3034 = vmatpush1.msra.mxu0 %v1298
        %3035 = vmatprep.subr.mxu0 0.0
        %3036 = vmatpush1.msra.mxu0 %v1301
        %3037 = vmatprep.subr.mxu0 0.0
        %3038 = vmatpush1.msra.mxu0 %v1304
        %3039 = vmatprep.subr.mxu0 0.0
        %3040 = vmatpush1.msra.mxu0 %v1307
        %3041 = vmatprep.subr.mxu0 0.0
        %3042 = vmatpush1.msra.mxu0 %v1310
        %3043 = vmatprep.subr.mxu0 0.0
        %3044 = vmatpush1.msra.mxu0 %v1313
        %3045 = vmatprep.subr.mxu0 0.0
        %3046 = vmatpush1.msra.mxu0 %v1316
        %3047 = vmatprep.subr.mxu0 0.0
        %3048 = vmatpush1.msra.mxu0 %v1319
        %3049 = vmatprep.mubr.f32.mxu0 %v261
        %3050 = vmatmul.mubr.f32.gmra.mrb[0].mxu0 %v260
        %v3051 = vpop.f32.mrb[0].mxu0
        %v3052 = vadd.f32 %v2982, %v3051
        %v3053 = vpop.f32.mrb[0].mxu0
        %3054 = vdwg.mxu0
        %3055 = vmatprep.subr.mxu0 0.0
        %3056 = vmatpush1.msra.mxu0 %v1322
        %3057 = vmatprep.subr.mxu0 0.0
        %3058 = vmatpush1.msra.mxu0 %v1325
        %3059 = vmatprep.subr.mxu0 0.0
        %3060 = vmatpush1.msra.mxu0 %v1328
        %3061 = vmatprep.subr.mxu0 0.0
        %3062 = vmatpush1.msra.mxu0 %v1331
        %3063 = vmatprep.subr.mxu0 0.0
        %3064 = vmatpush1.msra.mxu0 %v1334
        %3065 = vmatprep.subr.mxu0 0.0
        %3066 = vmatpush1.msra.mxu0 %v1337
        %3067 = vmatprep.subr.mxu0 0.0
        %3068 = vmatpush1.msra.mxu0 %v1340
        %3069 = vmatprep.subr.mxu0 0.0
        %3070 = vmatpush1.msra.mxu0 %v1343
        %3071 = vmatprep.subr.mxu0 0.0
        %3072 = vmatpush1.msra.mxu0 %v1346
        %3073 = vmatprep.subr.mxu0 0.0
        %3074 = vmatpush1.msra.mxu0 %v1349
        %3075 = vmatprep.subr.mxu0 0.0
        %3076 = vmatpush1.msra.mxu0 %v1352
        %3077 = vmatprep.subr.mxu0 0.0
        %3078 = vmatpush1.msra.mxu0 %v1355
        %3079 = vmatprep.subr.mxu0 0.0
        %3080 = vmatpush1.msra.mxu0 %v1358
        %3081 = vmatprep.subr.mxu0 0.0
        %3082 = vmatpush1.msra.mxu0 %v1361
        %3083 = vmatprep.subr.mxu0 0.0
        %3084 = vmatpush1.msra.mxu0 %v1364
        %3085 = vmatprep.subr.mxu0 0.0
        %3086 = vmatpush1.msra.mxu0 %v1367
        %3087 = vmatprep.subr.mxu0 0.0
        %3088 = vmatpush1.msra.mxu0 %v1370
        %3089 = vmatprep.subr.mxu0 0.0
        %3090 = vmatpush1.msra.mxu0 %v1373
        %3091 = vmatprep.subr.mxu0 0.0
        %3092 = vmatpush1.msra.mxu0 %v1376
        %3093 = vmatprep.subr.mxu0 0.0
        %3094 = vmatpush1.msra.mxu0 %v1379
        %3095 = vmatprep.subr.mxu0 0.0
        %3096 = vmatpush1.msra.mxu0 %v1382
        %3097 = vmatprep.subr.mxu0 0.0
        %3098 = vmatpush1.msra.mxu0 %v1385
        %3099 = vmatprep.subr.mxu0 0.0
        %3100 = vmatpush1.msra.mxu0 %v1388
        %3101 = vmatprep.subr.mxu0 0.0
        %3102 = vmatpush1.msra.mxu0 %v1391
        %3103 = vmatprep.subr.mxu0 0.0
        %3104 = vmatpush1.msra.mxu0 %v1394
        %3105 = vmatprep.subr.mxu0 0.0
        %3106 = vmatpush1.msra.mxu0 %v1397
        %3107 = vmatprep.subr.mxu0 0.0
        %3108 = vmatpush1.msra.mxu0 %v1400
        %3109 = vmatprep.subr.mxu0 0.0
        %3110 = vmatpush1.msra.mxu0 %v1403
        %3111 = vmatprep.subr.mxu0 0.0
        %3112 = vmatpush1.msra.mxu0 %v1406
        %3113 = vmatprep.subr.mxu0 0.0
        %3114 = vmatpush1.msra.mxu0 %v1409
        %3115 = vmatprep.subr.mxu0 0.0
        %3116 = vmatpush1.msra.mxu0 %v1412
        %3117 = vmatprep.subr.mxu0 0.0
        %3118 = vmatpush1.msra.mxu0 %v1415
        %3119 = vmatprep.mubr.f32.mxu0 %v263
        %3120 = vmatmul.mubr.f32.gmra.mrb[0].mxu0 %v262
        %v3121 = vpop.f32.mrb[0].mxu0
        %v3122 = vadd.f32 %v3052, %v3121
        %v3123 = vpop.f32.mrb[0].mxu0
        %3124 = vdwg.mxu0
        %v3125 = vmax.f32 %v2281, -0.25142986
        %v3126 = vmax.f32 %v2283, -0.25142986
        %v3127 = vmax.f32 %v3122, -0.25142986
        %v3128 = vmin.f32 %v3125, 0.5333022
        %v3129 = vmin.f32 %v3126, 0.5333022
        %v3130 = vmin.f32 %v3127, 0.5333022
        %3131 = vst [vmem:[%s236] sm:$0xff] %v3128
        %3132 = vst [vmem:[%s236 + $0x8] sm:$0xff] %v3129
        %3133 = vst [vmem:[%s236 + $0x10] sm:$0xff] %v3130
        %s3134 = sand.u32 %s102, 1
        %s3135 = scalar_lea.sflag [#allocation4], %s3134
        %s3136 = sand.u32 %s102, 1
        %s3137 = smul.addr %s3136, 24
        %s3138 = scalar_lea.vmem [#allocation8], %s3137
        // Predicated region
        $region45: #{tpu_custom_call.1} parent=31 // pred_check
          %p3139 = pneg %p112
        $region46: #{tpu_custom_call.1} parent=31 // pred_check_branch
          %3141 = sbr.rel (%p3139) target = $region48
        $region47: #{tpu_custom_call.1} parent=31 // pred_region
          %s3142 = smul.u32 3, %s21
          %s3144 = ssub.s32 384, 384
          %3145 = vsyncadd %s3135, %s3144
          %s3146 = smul.addr %s3142, 128
          %s3147 = scalar_lea.hbm %s3, %s3146
          %s3149 = sshll.u32 %s3138, 4
          %s3150 = int_to_ptr.vmem [resolvable:$true] %s3149
          %3152 = dma.vmem_to_hbm [thread:$0]  %s3150, 384, %s3147, %s3135
        $region48: #{tpu_custom_call.1} parent=31 // pred_fallthru
          _
      $region32: #{tpu_custom_call.1} parent=5 // pred_fallthru
        _
      %p3153 = scmp.le.s32.totalorder 2, %s16
      // Predicated region
      $region49: #{tpu_custom_call.1} parent=5 // pred_check
        %p3154 = pneg %p3153
      $region50: #{tpu_custom_call.1} parent=5 // pred_check_branch
        %3156 = sbr.rel (%p3154) target = $region52
      $region51: #{tpu_custom_call.1} parent=5 // pred_region
        %s3157 = ssub.s32 %s16, 2
        // Predicated region
        $region53: #{tpu_custom_call.1} parent=51 // pred_check
          %p3158 = pneg %p118
        $region54: #{tpu_custom_call.1} parent=51 // pred_check_branch
          %3160 = sbr.rel (%p3158) target = $region56
        $region55: #{tpu_custom_call.1} parent=51 // pred_region
          %s3161 = sand.u32 %s103, 1
          %s3162 = scalar_lea.sflag [#allocation4], %s3161
          %s3163 = sand.u32 %s103, 1
          %s3164 = smul.addr %s3163, 24
          %s3165 = scalar_lea.vmem [#allocation8], %s3164
          %3166 = dma.done %s3162, 384
        $region56: #{tpu_custom_call.1} parent=51 // pred_fallthru
          _
      $region52: #{tpu_custom_call.1} parent=5 // pred_fallthru
        _
    $region6: #{tpu_custom_call.1} parent=1 // loop_footer
      %s20 = sadd.s32 1, %s16
    $region7: #{tpu_custom_call.1} parent=1 // loop_footer_branch
      %15 = sbr.rel target = $region3
    $region8: #{tpu_custom_call.1} parent=1 // loop_exit
      _
    %3167 = vsyncpa [#allocation3], 1
    %s3168 = scalar_lea.sflag [#allocation3], 1
    %3169 = vsyncpa %s3168, 1
    %3170 = vsyncpa [#allocation6], 1
    %s3171 = scalar_lea.sflag [#allocation6], 1
    %3172 = vsyncpa %s3171, 1
    %3173 = vsyncpa [#allocation4], 1
    %s3174 = scalar_lea.sflag [#allocation4], 1
    %3175 = vsyncpa %s3174, 1

</llo_original>
